<compile_context>
chip_gen: v7x
topology: tpu7x:2x2x1
jax: 0.10.0
libtpu: 0.0.40
codegen_flags: <defaults>
</compile_context>

<pallas_src>
import jax
import jax.numpy as jnp
from jax.experimental import pallas as pl
from jax.experimental.pallas import tpu as pltpu


def _round_up(x: int, m: int) -> int:
    return (x + m - 1) // m * m


def critic_kernel(xT_ref, w1_ref, b1_ref, w2_ref, b2_ref, w3_ref, b3_ref, o_ref):
    """One batch tile (feature-major) of the 3-layer value MLP, fully in VMEM."""
    cdt = w1_ref.dtype          # MXU input dtype (f32 or bf16)
    f32 = jnp.float32

    x = xT_ref[...]             # (D, TM), batch on lanes
    if x.dtype != cdt:
        x = x.astype(cdt)

    # Layer 1: (H, D) @ (D, TM) on the MXU, f32 accumulation; bias + ReLU on VPU.
    h1 = jnp.dot(w1_ref[...], x, preferred_element_type=f32)
    h1 = jnp.maximum(h1 + b1_ref[...].astype(f32), 0.0)
    if cdt != f32:
        h1 = h1.astype(cdt)

    # Layer 2: (H, H) @ (H, TM).
    h2 = jnp.dot(w2_ref[...], h1, preferred_element_type=f32)
    h2 = jnp.maximum(h2 + b2_ref[...].astype(f32), 0.0)
    if cdt != f32:
        h2 = h2.astype(cdt)

    # Value head: (1, H) @ (H, TM) -> lane-dense (1, TM); b3 is an SMEM scalar.
    v = jnp.dot(w3_ref[...], h2, preferred_element_type=f32)
    o_ref[...] = (v + b3_ref[0, 0]).astype(o_ref.dtype)


def _pick_batch_tile(B: int, max_tile: int) -> int:
    """Lane-axis batch tile.

    Small batches get one full-extent block.  Otherwise pick a 128-multiple
    tile with as few grid steps as possible, preferring an even step count so
    v7x's two TensorCores each get the same number of tiles (best effort;
    harmless on single-TC v5e/v6e)."""
    if B <= 256:
        return B
    fallback = None
    min_steps = pl.cdiv(B, max_tile)
    for steps in range(min_steps, min_steps + 8):
        tm = min(max_tile, _round_up(pl.cdiv(B, steps), 128))
        if tm >= B:                      # single full-extent block
            tm = B
        if fallback is None:
            fallback = tm                # fewest-step choice
        if pl.cdiv(B, tm) % 2 == 0:
            return tm                    # fewest-step EVEN choice
    return fallback


def critic_forward(state, params, *, max_batch_tile=4096,
                   vmem_limit_bytes=48 * 1024 * 1024):
    """state: (B, input_dim) -> (B, 1) float32 value estimates."""
    w1, b1, w2, b2, w3, b3 = params      # PyTorch layout: w (out, in), b (out,)
    B, D = state.shape
    H = w1.shape[0]

    xT = state.T                                   # (D, B): batch on lanes
    b1c = b1.reshape(H, 1).astype(jnp.float32)     # lane-broadcast columns
    b2c = b2.reshape(H, 1).astype(jnp.float32)
    w3r = w3.reshape(1, H)
    b3s = b3.reshape(1, 1).astype(jnp.float32)     # SMEM scalar

    tm = _pick_batch_tile(B, max_batch_tile)
    grid = (pl.cdiv(B, tm),)

    # Same block every step -> DMA'd once, VMEM-resident across the grid.
    resident = lambda arr: pl.BlockSpec(arr.shape, lambda i: (0, 0))

    out = pl.pallas_call(
        critic_kernel,
        out_shape=jax.ShapeDtypeStruct((1, B), jnp.float32),
        grid=grid,
        in_specs=[
            # Streamed batch tile (double-buffered by the Pallas pipeline).
            pl.BlockSpec((D, tm), lambda i: (0, i)),
            resident(w1), resident(b1c),
            resident(w2), resident(b2c),
            resident(w3r),
            # Final bias: a single scalar, lives in SMEM (no VMEM tile / DMA pair).
            pl.BlockSpec(memory_space=pltpu.MemorySpace.SMEM),
        ],
        # Lane-dense output slab: last dim is the batch tile.
        out_specs=pl.BlockSpec((1, tm), lambda i: (0, i)),
        compiler_params=pltpu.CompilerParams(
            dimension_semantics=("parallel",),   # shard batch tiles across TCs (v7x)
            vmem_limit_bytes=vmem_limit_bytes,
        ),
    )(xT, w1, b1c, w2, b2c, w3r, b3s)

    return out.reshape(B, 1)


def init_params(key, input_dim, hidden_dim=256, weight_dtype=jnp.float32):
    """PyTorch default Linear init: U(-1/sqrt(fan_in), 1/sqrt(fan_in)).
    Weights in PyTorch (out_features, in_features) layout; biases kept f32."""
    keys = jax.random.split(key, 6)

    def linear(kw, kb, fan_in, fan_out):
        bound = 1.0 / (fan_in ** 0.5)
        w = jax.random.uniform(kw, (fan_out, fan_in), jnp.float32, -bound, bound)
        b = jax.random.uniform(kb, (fan_out,), jnp.float32, -bound, bound)
        return w.astype(weight_dtype), b

    w1, b1 = linear(keys[0], keys[1], input_dim, hidden_dim)
    w2, b2 = linear(keys[2], keys[3], hidden_dim, hidden_dim)
    w3, b3 = linear(keys[4], keys[5], hidden_dim, 1)
    return (w1, b1, w2, b2, w3, b3)


def reference_forward(state, params):
    """Pure-JAX f32 reference (batch-major, like the PyTorch module)."""
    w1, b1, w2, b2, w3, b3 = params
    f32 = lambda a: a.astype(jnp.float32)
    h1 = jnp.maximum(state @ f32(w1).T + b1, 0.0)
    h2 = jnp.maximum(h1 @ f32(w2).T + b2, 0.0)
    return h2 @ f32(w3).T + b3


def reference_forward_bf16(state, params):
    """Reference matching the kernel's bf16 cast points (f32 accumulation)."""
    w1, b1, w2, b2, w3, b3 = params          # weights already bf16
    f32 = jnp.float32
    x = state.astype(jnp.bfloat16)
    h1 = jnp.maximum(jnp.dot(x, w1.T, preferred_element_type=f32) + b1, 0.0)
    h1 = h1.astype(jnp.bfloat16)
    h2 = jnp.maximum(jnp.dot(h1, w2.T, preferred_element_type=f32) + b2, 0.0)
    h2 = h2.astype(jnp.bfloat16)
    return jnp.dot(h2, w3.T, preferred_element_type=f32) + b3


if __name__ == "__main__":
    jax.config.update("jax_default_matmul_precision", "highest")

    key = jax.random.PRNGKey(0)
    k_param, k_small, k_large = jax.random.split(key, 3)

    input_dim, hidden_dim = 16, 256      # hidden_dim = module default (128-lane multiple)
    params = init_params(k_param, input_dim, hidden_dim)

    # Small odd batch: single full-extent block (no padding needed).
    state_small = jax.random.normal(k_small, (10, input_dim), jnp.float32)
    out_small = jax.block_until_ready(critic_forward(state_small, params))
    ref_small = reference_forward(state_small, params)
    assert out_small.shape == (10, 1), out_small.shape
    assert jnp.allclose(out_small, ref_small, atol=2e-3, rtol=2e-3)

    # Larger batch with max_batch_tile lowered to exercise a multi-step pipelined
    # grid and a partial (masked) last block: 1025 rows -> 3 tiles of 384 lanes.
    state_large = jax.random.normal(k_large, (1025, input_dim), jnp.float32)
    out_large = jax.block_until_ready(
        critic_forward(state_large, params, max_batch_tile=512))
    ref_large = reference_forward(state_large, params)
    assert out_large.shape == (1025, 1), out_large.shape
    assert jnp.allclose(out_large, ref_large, atol=2e-3, rtol=2e-3)

    # bf16 weights (bf16 MXU inputs, f32 accumulation) vs a matching bf16 reference.
    # (On v5e prefer f32 weights -- the bf16 casts are pure VALU filler there.)
    params_bf16 = init_params(k_param, input_dim, hidden_dim,
                              weight_dtype=jnp.bfloat16)
    out_bf16 = jax.block_until_ready(critic_forward(state_small, params_bf16))
    ref_bf16 = reference_forward_bf16(state_small, params_bf16)
    assert out_bf16.shape == (10, 1)
    assert bool(jnp.all(jnp.isfinite(out_bf16)))
    assert jnp.allclose(out_bf16, ref_bf16, atol=2e-2, rtol=2e-2)

    print("KERNEL_OK")
</pallas_src>

<mosaic_0001>
module attributes {stable_mosaic.version = 11 : i64} {
  func.func @critic_kernel(%arg0: i32, %arg1: memref<16x10xf32, #tpu.memory_space<vmem>>, %arg2: memref<256x16xf32, #tpu.memory_space<vmem>>, %arg3: memref<256x1xf32, #tpu.memory_space<vmem>>, %arg4: memref<256x256xf32, #tpu.memory_space<vmem>>, %arg5: memref<256x1xf32, #tpu.memory_space<vmem>>, %arg6: memref<1x256xf32, #tpu.memory_space<vmem>>, %arg7: memref<1x1xf32, #tpu.memory_space<smem>>, %arg8: memref<1x10xf32, #tpu.memory_space<vmem>>) attributes {dimension_semantics = [#tpu.dimension_semantics<parallel>], iteration_bounds = array<i64: 1>, scalar_prefetch = 0 : i64, scratch_operands = 0 : i64, tpu.core_type = #tpu.core_type<tc>, window_params = [{transform_indices = @transform_0, window_bounds = array<i64: 16, 10>}, {pipeline_mode = #tpu.pipeline_mode<synchronous>, transform_indices = @transform_1, window_bounds = array<i64: 256, 16>}, {pipeline_mode = #tpu.pipeline_mode<synchronous>, transform_indices = @transform_2, window_bounds = array<i64: 256, 1>}, {pipeline_mode = #tpu.pipeline_mode<synchronous>, transform_indices = @transform_3, window_bounds = array<i64: 256, 256>}, {pipeline_mode = #tpu.pipeline_mode<synchronous>, transform_indices = @transform_4, window_bounds = array<i64: 256, 1>}, {pipeline_mode = #tpu.pipeline_mode<synchronous>, transform_indices = @transform_5, window_bounds = array<i64: 1, 256>}, {transform_indices = @transform_6, window_bounds = array<i64: 1, 1>}, {transform_indices = @transform_7, window_bounds = array<i64: 1, 10>}]} {
    %c0 = arith.constant 0 : index
    %c0_0 = arith.constant 0 : index
    %0 = vector.load %arg1[%c0, %c0_0] : memref<16x10xf32, #tpu.memory_space<vmem>>, vector<16x10xf32>
    %c0_1 = arith.constant 0 : index
    %c0_2 = arith.constant 0 : index
    %1 = vector.load %arg2[%c0_1, %c0_2] : memref<256x16xf32, #tpu.memory_space<vmem>>, vector<256x16xf32>
    %cst = arith.constant dense<0.000000e+00> : vector<256x10xf32>
    %2 = tpu.matmul %1, %0, %cst {dimension_numbers = #tpu.dot_dimension_numbers<[1], [0], [0], [1], [0, 0, 1, 1], [], []>, precision = #tpu.contract_precision<fp32>} : vector<256x16xf32>, vector<16x10xf32>, vector<256x10xf32> -> vector<256x10xf32>
    %c0_3 = arith.constant 0 : index
    %c0_4 = arith.constant 0 : index
    %3 = vector.load %arg3[%c0_3, %c0_4] : memref<256x1xf32, #tpu.memory_space<vmem>>, vector<256x1xf32>
    %4 = vector.broadcast %3 : vector<256x1xf32> to vector<256x10xf32>
    %5 = arith.addf %2, %4 : vector<256x10xf32>
    %cst_5 = arith.constant 0.000000e+00 : f32
    %6 = vector.broadcast %cst_5 : f32 to vector<256x10xf32>
    %7 = arith.maximumf %5, %6 : vector<256x10xf32>
    %c0_6 = arith.constant 0 : index
    %c0_7 = arith.constant 0 : index
    %8 = vector.load %arg4[%c0_6, %c0_7] : memref<256x256xf32, #tpu.memory_space<vmem>>, vector<256x256xf32>
    %cst_8 = arith.constant dense<0.000000e+00> : vector<256x10xf32>
    %9 = tpu.matmul %8, %7, %cst_8 {dimension_numbers = #tpu.dot_dimension_numbers<[1], [0], [0], [1], [0, 0, 1, 1], [], []>, precision = #tpu.contract_precision<fp32>} : vector<256x256xf32>, vector<256x10xf32>, vector<256x10xf32> -> vector<256x10xf32>
    %c0_9 = arith.constant 0 : index
    %c0_10 = arith.constant 0 : index
    %10 = vector.load %arg5[%c0_9, %c0_10] : memref<256x1xf32, #tpu.memory_space<vmem>>, vector<256x1xf32>
    %11 = vector.broadcast %10 : vector<256x1xf32> to vector<256x10xf32>
    %12 = arith.addf %9, %11 : vector<256x10xf32>
    %cst_11 = arith.constant 0.000000e+00 : f32
    %13 = vector.broadcast %cst_11 : f32 to vector<256x10xf32>
    %14 = arith.maximumf %12, %13 : vector<256x10xf32>
    %c0_12 = arith.constant 0 : index
    %c0_13 = arith.constant 0 : index
    %15 = vector.load %arg6[%c0_12, %c0_13] : memref<1x256xf32, #tpu.memory_space<vmem>>, vector<1x256xf32>
    %cst_14 = arith.constant dense<0.000000e+00> : vector<1x10xf32>
    %16 = tpu.matmul %15, %14, %cst_14 {dimension_numbers = #tpu.dot_dimension_numbers<[1], [0], [0], [1], [0, 0, 1, 1], [], []>, precision = #tpu.contract_precision<fp32>} : vector<1x256xf32>, vector<256x10xf32>, vector<1x10xf32> -> vector<1x10xf32>
    %c0_15 = arith.constant 0 : index
    %c0_16 = arith.constant 0 : index
    %17 = memref.load %arg7[%c0_15, %c0_16] : memref<1x1xf32, #tpu.memory_space<smem>>
    %18 = vector.broadcast %17 : f32 to vector<1x10xf32>
    %19 = arith.addf %16, %18 : vector<1x10xf32>
    %c0_17 = arith.constant 0 : index
    %c0_18 = arith.constant 0 : index
    %20 = vector.load %arg8[%c0_17, %c0_18] : memref<1x10xf32, #tpu.memory_space<vmem>>, vector<1x10xf32>
    tpu.vector_store %arg8[%c0_17, %c0_18], %19 {strides = array<i32>} : memref<1x10xf32, #tpu.memory_space<vmem>>, vector<1x10xf32>,
    return
  }
  func.func @transform_0(%arg0: i32) -> (i32, i32) {
    %c0_i32 = arith.constant 0 : i32
    %c0_i32_0 = arith.constant 0 : i32
    return %c0_i32, %arg0 : i32, i32
  }
  func.func @transform_1(%arg0: i32) -> (i32, i32) {
    %c0_i32 = arith.constant 0 : i32
    %c0_i32_0 = arith.constant 0 : i32
    %c0_i32_1 = arith.constant 0 : i32
    return %c0_i32, %c0_i32_0 : i32, i32
  }
  func.func @transform_2(%arg0: i32) -> (i32, i32) {
    %c0_i32 = arith.constant 0 : i32
    %c0_i32_0 = arith.constant 0 : i32
    %c0_i32_1 = arith.constant 0 : i32
    return %c0_i32, %c0_i32_0 : i32, i32
  }
  func.func @transform_3(%arg0: i32) -> (i32, i32) {
    %c0_i32 = arith.constant 0 : i32
    %c0_i32_0 = arith.constant 0 : i32
    %c0_i32_1 = arith.constant 0 : i32
    return %c0_i32, %c0_i32_0 : i32, i32
  }
  func.func @transform_4(%arg0: i32) -> (i32, i32) {
    %c0_i32 = arith.constant 0 : i32
    %c0_i32_0 = arith.constant 0 : i32
    %c0_i32_1 = arith.constant 0 : i32
    return %c0_i32, %c0_i32_0 : i32, i32
  }
  func.func @transform_5(%arg0: i32) -> (i32, i32) {
    %c0_i32 = arith.constant 0 : i32
    %c0_i32_0 = arith.constant 0 : i32
    %c0_i32_1 = arith.constant 0 : i32
    return %c0_i32, %c0_i32_0 : i32, i32
  }
  func.func @transform_6(%arg0: i32) -> (i32, i32) {
    %c0_i32 = arith.constant 0 : i32
    %c0_i32_0 = arith.constant 0 : i32
    %c0_i32_1 = arith.constant 0 : i32
    return %c0_i32, %c0_i32_0 : i32, i32
  }
  func.func @transform_7(%arg0: i32) -> (i32, i32) {
    %c0_i32 = arith.constant 0 : i32
    %c0_i32_0 = arith.constant 0 : i32
    return %c0_i32, %arg0 : i32, i32
  }
}

</mosaic_0001>

<llo_original>
// kernel: tpu_custom_call.1
$region0: #{tpu_custom_call.1}
  #allocation0 [shape = 'u32[]', space=smem, size = 0x4, offset = 0x4, fixed_abs, tag = 'smem constant byte address 0x4 - core index']
  #allocation1 [shape = 'u32[144,128]{1,0:T(1,128)}', space=vmem, size = 0x12000, scoped, tag = 'internal scratch']
  #allocation2 [shape = 'f32[1,1]{1,0:T(1,128)S(6)}', space=smem, size = 0x200, scoped, tag = 'scoped memory for tpu_custom_call.1']
  %s0 = inlined_call_operand.vmem [shape: f32[16,10], index: 0, kind: input, shape index: {}]
  %s1 = inlined_call_operand.vmem [shape: f32[256,16], index: 1, kind: input, shape index: {}]
  %s2 = inlined_call_operand.vmem [shape: f32[256,1], index: 2, kind: input, shape index: {}]
  %s3 = inlined_call_operand.vmem [shape: f32[256,256], index: 3, kind: input, shape index: {}]
  %s4 = inlined_call_operand.vmem [shape: f32[256,1], index: 4, kind: input, shape index: {}]
  %s5 = inlined_call_operand.vmem [shape: f32[1,256], index: 5, kind: input, shape index: {}]
  %s6 = inlined_call_operand.<no memory space> [shape: f32[1,1], index: 6, kind: input, shape index: {}]
  %s7 = inlined_call_operand.hbm [shape: f32[1,10], index: 7, kind: output, shape index: {}]
  %s8 = sld [smem:[#allocation0]]
  $region38: #{tpu_custom_call.1} parent=0
    _
  %s10 = ssub.s32 1, %s8
  %s11 = scalar_select 0, %s10, %s8
  %12 = sst [smem:[#allocation2]] %s6
  $region1: #{tpu_custom_call.1} parent=0
    #allocation3 [shape = 'u8[512]{0}', space=vmem, size = 0x400, scoped, tag = 'output window, operand 0, single buffered']
    #allocation4 [shape = 's32[1]{0}', space=sflag, size = 0x4, scoped, tag = 'scoped memory for tpu_custom_call.1']
    %13 = vsyncpa [#allocation4], 0
    // Predicated region
    $region2: #{tpu_custom_call.1} parent=1 // pred_check
      _
    $region3: #{tpu_custom_call.1} parent=1 // pred_check_branch
      %15 = sbr.rel (0) target = $region5
    $region4: #{tpu_custom_call.1} parent=1 // pred_region
      _
    $region5: #{tpu_custom_call.1} parent=1 // pred_fallthru
      _
    // Predicated region
    $region6: #{tpu_custom_call.1} parent=1 // pred_check
      _
    $region7: #{tpu_custom_call.1} parent=1 // pred_check_branch
      %17 = sbr.rel (0) target = $region9
    $region8: #{tpu_custom_call.1} parent=1 // pred_region
      _
    $region9: #{tpu_custom_call.1} parent=1 // pred_fallthru
      _
    // Predicated region
    $region10: #{tpu_custom_call.1} parent=1 // pred_check
      _
    $region11: #{tpu_custom_call.1} parent=1 // pred_check_branch
      %19 = sbr.rel (0) target = $region13
    $region12: #{tpu_custom_call.1} parent=1 // pred_region
      _
    $region13: #{tpu_custom_call.1} parent=1 // pred_fallthru
      _
    // Predicated region
    $region14: #{tpu_custom_call.1} parent=1 // pred_check
      _
    $region15: #{tpu_custom_call.1} parent=1 // pred_check_branch
      %21 = sbr.rel (0) target = $region17
    $region16: #{tpu_custom_call.1} parent=1 // pred_region
      _
    $region17: #{tpu_custom_call.1} parent=1 // pred_fallthru
      _
    // Predicated region
    $region18: #{tpu_custom_call.1} parent=1 // pred_check
      _
    $region19: #{tpu_custom_call.1} parent=1 // pred_check_branch
      %23 = sbr.rel (0) target = $region21
    $region20: #{tpu_custom_call.1} parent=1 // pred_region
      _
    $region21: #{tpu_custom_call.1} parent=1 // pred_fallthru
      _
    // Predicated region
    $region22: #{tpu_custom_call.1} parent=1 // pred_check
      _
    $region23: #{tpu_custom_call.1} parent=1 // pred_check_branch
      %25 = sbr.rel (0) target = $region25
    $region24: #{tpu_custom_call.1} parent=1 // pred_region
      _
    $region25: #{tpu_custom_call.1} parent=1 // pred_fallthru
      _
    // Predicated region
    $region26: #{tpu_custom_call.1} parent=1 // pred_check
      _
    $region27: #{tpu_custom_call.1} parent=1 // pred_check_branch
      %27 = sbr.rel (0) target = $region29
    $region28: #{tpu_custom_call.1} parent=1 // pred_region
      _
    $region29: #{tpu_custom_call.1} parent=1 // pred_fallthru
      _
    %v28 = vld [vmem:[%s0] sm:$0xff]
    %v29 = vld [vmem:[%s0 + $0x8] sm:$0xff]
    %v30 = vld [vmem:[%s1] sm:$0xff]
    %v31 = vld [vmem:[%s1 + $0x8] sm:$0xff]
    %v32 = vld [vmem:[%s1 + $0x10] sm:$0xff]
    %v33 = vld [vmem:[%s1 + $0x18] sm:$0xff]
    %v34 = vld [vmem:[%s1 + $0x20] sm:$0xff]
    %v35 = vld [vmem:[%s1 + $0x28] sm:$0xff]
    %v36 = vld [vmem:[%s1 + $0x30] sm:$0xff]
    %v37 = vld [vmem:[%s1 + $0x38] sm:$0xff]
    %v38 = vld [vmem:[%s1 + $0x40] sm:$0xff]
    %v39 = vld [vmem:[%s1 + $0x48] sm:$0xff]
    %v40 = vld [vmem:[%s1 + $0x50] sm:$0xff]
    %v41 = vld [vmem:[%s1 + $0x58] sm:$0xff]
    %v42 = vld [vmem:[%s1 + $0x60] sm:$0xff]
    %v43 = vld [vmem:[%s1 + $0x68] sm:$0xff]
    %v44 = vld [vmem:[%s1 + $0x70] sm:$0xff]
    %v45 = vld [vmem:[%s1 + $0x78] sm:$0xff]
    %v46 = vld [vmem:[%s1 + $0x80] sm:$0xff]
    %v47 = vld [vmem:[%s1 + $0x88] sm:$0xff]
    %v48 = vld [vmem:[%s1 + $0x90] sm:$0xff]
    %v49 = vld [vmem:[%s1 + $0x98] sm:$0xff]
    %v50 = vld [vmem:[%s1 + $0xa0] sm:$0xff]
    %v51 = vld [vmem:[%s1 + $0xa8] sm:$0xff]
    %v52 = vld [vmem:[%s1 + $0xb0] sm:$0xff]
    %v53 = vld [vmem:[%s1 + $0xb8] sm:$0xff]
    %v54 = vld [vmem:[%s1 + $0xc0] sm:$0xff]
    %v55 = vld [vmem:[%s1 + $0xc8] sm:$0xff]
    %v56 = vld [vmem:[%s1 + $0xd0] sm:$0xff]
    %v57 = vld [vmem:[%s1 + $0xd8] sm:$0xff]
    %v58 = vld [vmem:[%s1 + $0xe0] sm:$0xff]
    %v59 = vld [vmem:[%s1 + $0xe8] sm:$0xff]
    %v60 = vld [vmem:[%s1 + $0xf0] sm:$0xff]
    %v61 = vld [vmem:[%s1 + $0xf8] sm:$0xff]
    %v62 = vld [vmem:[%s2] sm:$0xff]
    %v63 = vld [vmem:[%s2 + $0x8] sm:$0xff]
    %v64 = vld [vmem:[%s2 + $0x10] sm:$0xff]
    %v65 = vld [vmem:[%s2 + $0x18] sm:$0xff]
    %v66 = vld [vmem:[%s2 + $0x20] sm:$0xff]
    %v67 = vld [vmem:[%s2 + $0x28] sm:$0xff]
    %v68 = vld [vmem:[%s2 + $0x30] sm:$0xff]
    %v69 = vld [vmem:[%s2 + $0x38] sm:$0xff]
    %v70 = vld [vmem:[%s2 + $0x40] sm:$0xff]
    %v71 = vld [vmem:[%s2 + $0x48] sm:$0xff]
    %v72 = vld [vmem:[%s2 + $0x50] sm:$0xff]
    %v73 = vld [vmem:[%s2 + $0x58] sm:$0xff]
    %v74 = vld [vmem:[%s2 + $0x60] sm:$0xff]
    %v75 = vld [vmem:[%s2 + $0x68] sm:$0xff]
    %v76 = vld [vmem:[%s2 + $0x70] sm:$0xff]
    %v77 = vld [vmem:[%s2 + $0x78] sm:$0xff]
    %v78 = vld [vmem:[%s2 + $0x80] sm:$0xff]
    %v79 = vld [vmem:[%s2 + $0x88] sm:$0xff]
    %v80 = vld [vmem:[%s2 + $0x90] sm:$0xff]
    %v81 = vld [vmem:[%s2 + $0x98] sm:$0xff]
    %v82 = vld [vmem:[%s2 + $0xa0] sm:$0xff]
    %v83 = vld [vmem:[%s2 + $0xa8] sm:$0xff]
    %v84 = vld [vmem:[%s2 + $0xb0] sm:$0xff]
    %v85 = vld [vmem:[%s2 + $0xb8] sm:$0xff]
    %v86 = vld [vmem:[%s2 + $0xc0] sm:$0xff]
    %v87 = vld [vmem:[%s2 + $0xc8] sm:$0xff]
    %v88 = vld [vmem:[%s2 + $0xd0] sm:$0xff]
    %v89 = vld [vmem:[%s2 + $0xd8] sm:$0xff]
    %v90 = vld [vmem:[%s2 + $0xe0] sm:$0xff]
    %v91 = vld [vmem:[%s2 + $0xe8] sm:$0xff]
    %v92 = vld [vmem:[%s2 + $0xf0] sm:$0xff]
    %v93 = vld [vmem:[%s2 + $0xf8] sm:$0xff]
    %95 = vset.pattern.permute.xlu0 0
    %96 = vperm.xlu0 %95, %v62
    %v97 = vpop.permute.xlu0 %96
    %100 = vset.pattern.permute.xlu0 0
    %101 = vperm.xlu0 %100, %v63
    %v102 = vpop.permute.xlu0 %101
    %105 = vset.pattern.permute.xlu0 0
    %106 = vperm.xlu0 %105, %v64
    %v107 = vpop.permute.xlu0 %106
    %110 = vset.pattern.permute.xlu0 0
    %111 = vperm.xlu0 %110, %v65
    %v112 = vpop.permute.xlu0 %111
    %115 = vset.pattern.permute.xlu0 0
    %116 = vperm.xlu0 %115, %v66
    %v117 = vpop.permute.xlu0 %116
    %120 = vset.pattern.permute.xlu0 0
    %121 = vperm.xlu0 %120, %v67
    %v122 = vpop.permute.xlu0 %121
    %125 = vset.pattern.permute.xlu0 0
    %126 = vperm.xlu0 %125, %v68
    %v127 = vpop.permute.xlu0 %126
    %130 = vset.pattern.permute.xlu0 0
    %131 = vperm.xlu0 %130, %v69
    %v132 = vpop.permute.xlu0 %131
    %135 = vset.pattern.permute.xlu0 0
    %136 = vperm.xlu0 %135, %v70
    %v137 = vpop.permute.xlu0 %136
    %140 = vset.pattern.permute.xlu0 0
    %141 = vperm.xlu0 %140, %v71
    %v142 = vpop.permute.xlu0 %141
    %145 = vset.pattern.permute.xlu0 0
    %146 = vperm.xlu0 %145, %v72
    %v147 = vpop.permute.xlu0 %146
    %150 = vset.pattern.permute.xlu0 0
    %151 = vperm.xlu0 %150, %v73
    %v152 = vpop.permute.xlu0 %151
    %155 = vset.pattern.permute.xlu0 0
    %156 = vperm.xlu0 %155, %v74
    %v157 = vpop.permute.xlu0 %156
    %160 = vset.pattern.permute.xlu0 0
    %161 = vperm.xlu0 %160, %v75
    %v162 = vpop.permute.xlu0 %161
    %165 = vset.pattern.permute.xlu0 0
    %166 = vperm.xlu0 %165, %v76
    %v167 = vpop.permute.xlu0 %166
    %170 = vset.pattern.permute.xlu0 0
    %171 = vperm.xlu0 %170, %v77
    %v172 = vpop.permute.xlu0 %171
    %175 = vset.pattern.permute.xlu0 0
    %176 = vperm.xlu0 %175, %v78
    %v177 = vpop.permute.xlu0 %176
    %180 = vset.pattern.permute.xlu0 0
    %181 = vperm.xlu0 %180, %v79
    %v182 = vpop.permute.xlu0 %181
    %185 = vset.pattern.permute.xlu0 0
    %186 = vperm.xlu0 %185, %v80
    %v187 = vpop.permute.xlu0 %186
    %190 = vset.pattern.permute.xlu0 0
    %191 = vperm.xlu0 %190, %v81
    %v192 = vpop.permute.xlu0 %191
    %195 = vset.pattern.permute.xlu0 0
    %196 = vperm.xlu0 %195, %v82
    %v197 = vpop.permute.xlu0 %196
    %200 = vset.pattern.permute.xlu0 0
    %201 = vperm.xlu0 %200, %v83
    %v202 = vpop.permute.xlu0 %201
    %205 = vset.pattern.permute.xlu0 0
    %206 = vperm.xlu0 %205, %v84
    %v207 = vpop.permute.xlu0 %206
    %210 = vset.pattern.permute.xlu0 0
    %211 = vperm.xlu0 %210, %v85
    %v212 = vpop.permute.xlu0 %211
    %215 = vset.pattern.permute.xlu0 0
    %216 = vperm.xlu0 %215, %v86
    %v217 = vpop.permute.xlu0 %216
    %220 = vset.pattern.permute.xlu0 0
    %221 = vperm.xlu0 %220, %v87
    %v222 = vpop.permute.xlu0 %221
    %225 = vset.pattern.permute.xlu0 0
    %226 = vperm.xlu0 %225, %v88
    %v227 = vpop.permute.xlu0 %226
    %230 = vset.pattern.permute.xlu0 0
    %231 = vperm.xlu0 %230, %v89
    %v232 = vpop.permute.xlu0 %231
    %235 = vset.pattern.permute.xlu0 0
    %236 = vperm.xlu0 %235, %v90
    %v237 = vpop.permute.xlu0 %236
    %240 = vset.pattern.permute.xlu0 0
    %241 = vperm.xlu0 %240, %v91
    %v242 = vpop.permute.xlu0 %241
    %245 = vset.pattern.permute.xlu0 0
    %246 = vperm.xlu0 %245, %v92
    %v247 = vpop.permute.xlu0 %246
    %250 = vset.pattern.permute.xlu0 0
    %251 = vperm.xlu0 %250, %v93
    %v252 = vpop.permute.xlu0 %251
    %vm254 = vcmask 130048
    %v256 = vsel %vm254, %v30, 0
    %v259 = vsel %vm254, %v31, 0
    %v262 = vsel %vm254, %v32, 0
    %v265 = vsel %vm254, %v33, 0
    %v268 = vsel %vm254, %v34, 0
    %v271 = vsel %vm254, %v35, 0
    %v274 = vsel %vm254, %v36, 0
    %v277 = vsel %vm254, %v37, 0
    %v280 = vsel %vm254, %v38, 0
    %v283 = vsel %vm254, %v39, 0
    %v286 = vsel %vm254, %v40, 0
    %v289 = vsel %vm254, %v41, 0
    %v292 = vsel %vm254, %v42, 0
    %v295 = vsel %vm254, %v43, 0
    %v298 = vsel %vm254, %v44, 0
    %v301 = vsel %vm254, %v45, 0
    %v304 = vsel %vm254, %v46, 0
    %v307 = vsel %vm254, %v47, 0
    %v310 = vsel %vm254, %v48, 0
    %v313 = vsel %vm254, %v49, 0
    %v316 = vsel %vm254, %v50, 0
    %v319 = vsel %vm254, %v51, 0
    %v322 = vsel %vm254, %v52, 0
    %v325 = vsel %vm254, %v53, 0
    %v328 = vsel %vm254, %v54, 0
    %v331 = vsel %vm254, %v55, 0
    %v334 = vsel %vm254, %v56, 0
    %v337 = vsel %vm254, %v57, 0
    %v340 = vsel %vm254, %v58, 0
    %v343 = vsel %vm254, %v59, 0
    %v346 = vsel %vm254, %v60, 0
    %v349 = vsel %vm254, %v61, 0
    %351 = vmatprep.subr.mxu0 0.0
    %v352 = vand.u32 %v28, 4294901760
    %353 = vmatpush1.msra.mxu0 %v352
    %354 = vmatprep.subr.mxu0 0.0
    %v355 = vand.u32 %v29, 4294901760
    %356 = vmatpush1.msra.mxu0 %v355
    %357 = vmatprep.subr.mxu0 0.0
    %358 = vmatpush1.msra.mxu0 0.0
    %359 = vmatprep.subr.mxu0 0.0
    %360 = vmatpush1.msra.mxu0 0.0
    %361 = vmatprep.subr.mxu0 0.0
    %362 = vmatpush1.msra.mxu0 0.0
    %363 = vmatprep.subr.mxu0 0.0
    %364 = vmatpush1.msra.mxu0 0.0
    %365 = vmatprep.subr.mxu0 0.0
    %366 = vmatpush1.msra.mxu0 0.0
    %367 = vmatprep.subr.mxu0 0.0
    %368 = vmatpush1.msra.mxu0 0.0
    %369 = vmatprep.subr.mxu0 0.0
    %370 = vmatpush1.msra.mxu0 0.0
    %371 = vmatprep.subr.mxu0 0.0
    %372 = vmatpush1.msra.mxu0 0.0
    %373 = vmatprep.subr.mxu0 0.0
    %374 = vmatpush1.msra.mxu0 0.0
    %375 = vmatprep.subr.mxu0 0.0
    %376 = vmatpush1.msra.mxu0 0.0
    %377 = vmatprep.subr.mxu0 0.0
    %378 = vmatpush1.msra.mxu0 0.0
    %379 = vmatprep.subr.mxu0 0.0
    %380 = vmatpush1.msra.mxu0 0.0
    %381 = vmatprep.subr.mxu0 0.0
    %382 = vmatpush1.msra.mxu0 0.0
    %383 = vmatprep.subr.mxu0 0.0
    %384 = vmatpush1.msra.mxu0 0.0
    %385 = vmatprep.subr.mxu0 0.0
    %386 = vmatpush1.msra.mxu0 0.0
    %387 = vmatprep.subr.mxu0 0.0
    %388 = vmatpush1.msra.mxu0 0.0
    %389 = vmatprep.subr.mxu0 0.0
    %390 = vmatpush1.msra.mxu0 0.0
    %391 = vmatprep.subr.mxu0 0.0
    %392 = vmatpush1.msra.mxu0 0.0
    %393 = vmatprep.subr.mxu0 0.0
    %394 = vmatpush1.msra.mxu0 0.0
    %395 = vmatprep.subr.mxu0 0.0
    %396 = vmatpush1.msra.mxu0 0.0
    %397 = vmatprep.subr.mxu0 0.0
    %398 = vmatpush1.msra.mxu0 0.0
    %399 = vmatprep.subr.mxu0 0.0
    %400 = vmatpush1.msra.mxu0 0.0
    %401 = vmatprep.subr.mxu0 0.0
    %402 = vmatpush1.msra.mxu0 0.0
    %403 = vmatprep.subr.mxu0 0.0
    %404 = vmatpush1.msra.mxu0 0.0
    %405 = vmatprep.subr.mxu0 0.0
    %406 = vmatpush1.msra.mxu0 0.0
    %407 = vmatprep.subr.mxu0 0.0
    %408 = vmatpush1.msra.mxu0 0.0
    %409 = vmatprep.subr.mxu0 0.0
    %410 = vmatpush1.msra.mxu0 0.0
    %411 = vmatprep.subr.mxu0 0.0
    %412 = vmatpush1.msra.mxu0 0.0
    %413 = vmatprep.subr.mxu0 0.0
    %414 = vmatpush1.msra.mxu0 0.0
    %415 = vmatprep.subr.mxu0 0.0
    %416 = vmatpush1.msra.mxu0 0.0
    %417 = vmatprep.mubr.f32.mxu0 0.0
    %v418 = vand.u32 %v256, 4294901760
    %v419 = vsub.f32 %v256, %v418
    %v420 = vand.u32 %v419, 4294901760
    %v421 = vsub.f32 %v419, %v420
    %v422 = vand.u32 %v421, 4294901760
    %423 = vmatmul.mubr.f32.gmra.mrb[0].mxu0 %v422
    %v424 = vpop.f32.mrb[0].mxu0
    %v425 = vadd.f32 %v97, %v424
    %v426 = vpop.f32.mrb[0].mxu0
    %427 = vmatprep.mubr.f32.mxu0 0.0
    %v428 = vand.u32 %v259, 4294901760
    %v429 = vsub.f32 %v259, %v428
    %v430 = vand.u32 %v429, 4294901760
    %v431 = vsub.f32 %v429, %v430
    %v432 = vand.u32 %v431, 4294901760
    %433 = vmatmul.mubr.f32.gmra.mrb[0].mxu0 %v432
    %v434 = vpop.f32.mrb[0].mxu0
    %v435 = vadd.f32 %v102, %v434
    %v436 = vpop.f32.mrb[0].mxu0
    %437 = vmatprep.mubr.f32.mxu0 0.0
    %v438 = vand.u32 %v262, 4294901760
    %v439 = vsub.f32 %v262, %v438
    %v440 = vand.u32 %v439, 4294901760
    %v441 = vsub.f32 %v439, %v440
    %v442 = vand.u32 %v441, 4294901760
    %443 = vmatmul.mubr.f32.gmra.mrb[0].mxu0 %v442
    %v444 = vpop.f32.mrb[0].mxu0
    %v445 = vadd.f32 %v107, %v444
    %v446 = vpop.f32.mrb[0].mxu0
    %447 = vmatprep.mubr.f32.mxu0 0.0
    %v448 = vand.u32 %v265, 4294901760
    %v449 = vsub.f32 %v265, %v448
    %v450 = vand.u32 %v449, 4294901760
    %v451 = vsub.f32 %v449, %v450
    %v452 = vand.u32 %v451, 4294901760
    %453 = vmatmul.mubr.f32.gmra.mrb[0].mxu0 %v452
    %v454 = vpop.f32.mrb[0].mxu0
    %v455 = vadd.f32 %v112, %v454
    %v456 = vpop.f32.mrb[0].mxu0
    %457 = vmatprep.mubr.f32.mxu0 0.0
    %v458 = vand.u32 %v268, 4294901760
    %v459 = vsub.f32 %v268, %v458
    %v460 = vand.u32 %v459, 4294901760
    %v461 = vsub.f32 %v459, %v460
    %v462 = vand.u32 %v461, 4294901760
    %463 = vmatmul.mubr.f32.gmra.mrb[0].mxu0 %v462
    %v464 = vpop.f32.mrb[0].mxu0
    %v465 = vadd.f32 %v117, %v464
    %v466 = vpop.f32.mrb[0].mxu0
    %467 = vmatprep.mubr.f32.mxu0 0.0
    %v468 = vand.u32 %v271, 4294901760
    %v469 = vsub.f32 %v271, %v468
    %v470 = vand.u32 %v469, 4294901760
    %v471 = vsub.f32 %v469, %v470
    %v472 = vand.u32 %v471, 4294901760
    %473 = vmatmul.mubr.f32.gmra.mrb[0].mxu0 %v472
    %v474 = vpop.f32.mrb[0].mxu0
    %v475 = vadd.f32 %v122, %v474
    %v476 = vpop.f32.mrb[0].mxu0
    %477 = vmatprep.mubr.f32.mxu0 0.0
    %v478 = vand.u32 %v274, 4294901760
    %v479 = vsub.f32 %v274, %v478
    %v480 = vand.u32 %v479, 4294901760
    %v481 = vsub.f32 %v479, %v480
    %v482 = vand.u32 %v481, 4294901760
    %483 = vmatmul.mubr.f32.gmra.mrb[0].mxu0 %v482
    %v484 = vpop.f32.mrb[0].mxu0
    %v485 = vadd.f32 %v127, %v484
    %v486 = vpop.f32.mrb[0].mxu0
    %487 = vmatprep.mubr.f32.mxu0 0.0
    %v488 = vand.u32 %v277, 4294901760
    %v489 = vsub.f32 %v277, %v488
    %v490 = vand.u32 %v489, 4294901760
    %v491 = vsub.f32 %v489, %v490
    %v492 = vand.u32 %v491, 4294901760
    %493 = vmatmul.mubr.f32.gmra.mrb[0].mxu0 %v492
    %v494 = vpop.f32.mrb[0].mxu0
    %v495 = vadd.f32 %v132, %v494
    %v496 = vpop.f32.mrb[0].mxu0
    %497 = vmatprep.mubr.f32.mxu0 0.0
    %v498 = vand.u32 %v280, 4294901760
    %v499 = vsub.f32 %v280, %v498
    %v500 = vand.u32 %v499, 4294901760
    %v501 = vsub.f32 %v499, %v500
    %v502 = vand.u32 %v501, 4294901760
    %503 = vmatmul.mubr.f32.gmra.mrb[0].mxu0 %v502
    %v504 = vpop.f32.mrb[0].mxu0
    %v505 = vadd.f32 %v137, %v504
    %v506 = vpop.f32.mrb[0].mxu0
    %507 = vmatprep.mubr.f32.mxu0 0.0
    %v508 = vand.u32 %v283, 4294901760
    %v509 = vsub.f32 %v283, %v508
    %v510 = vand.u32 %v509, 4294901760
    %v511 = vsub.f32 %v509, %v510
    %v512 = vand.u32 %v511, 4294901760
    %513 = vmatmul.mubr.f32.gmra.mrb[0].mxu0 %v512
    %v514 = vpop.f32.mrb[0].mxu0
    %v515 = vadd.f32 %v142, %v514
    %v516 = vpop.f32.mrb[0].mxu0
    %517 = vmatprep.mubr.f32.mxu0 0.0
    %v518 = vand.u32 %v286, 4294901760
    %v519 = vsub.f32 %v286, %v518
    %v520 = vand.u32 %v519, 4294901760
    %v521 = vsub.f32 %v519, %v520
    %v522 = vand.u32 %v521, 4294901760
    %523 = vmatmul.mubr.f32.gmra.mrb[0].mxu0 %v522
    %v524 = vpop.f32.mrb[0].mxu0
    %v525 = vadd.f32 %v147, %v524
    %v526 = vpop.f32.mrb[0].mxu0
    %527 = vmatprep.mubr.f32.mxu0 0.0
    %v528 = vand.u32 %v289, 4294901760
    %v529 = vsub.f32 %v289, %v528
    %v530 = vand.u32 %v529, 4294901760
    %v531 = vsub.f32 %v529, %v530
    %v532 = vand.u32 %v531, 4294901760
    %533 = vmatmul.mubr.f32.gmra.mrb[0].mxu0 %v532
    %v534 = vpop.f32.mrb[0].mxu0
    %v535 = vadd.f32 %v152, %v534
    %v536 = vpop.f32.mrb[0].mxu0
    %537 = vmatprep.mubr.f32.mxu0 0.0
    %v538 = vand.u32 %v292, 4294901760
    %v539 = vsub.f32 %v292, %v538
    %v540 = vand.u32 %v539, 4294901760
    %v541 = vsub.f32 %v539, %v540
    %v542 = vand.u32 %v541, 4294901760
    %543 = vmatmul.mubr.f32.gmra.mrb[0].mxu0 %v542
    %v544 = vpop.f32.mrb[0].mxu0
    %v545 = vadd.f32 %v157, %v544
    %v546 = vpop.f32.mrb[0].mxu0
    %547 = vmatprep.mubr.f32.mxu0 0.0
    %v548 = vand.u32 %v295, 4294901760
    %v549 = vsub.f32 %v295, %v548
    %v550 = vand.u32 %v549, 4294901760
    %v551 = vsub.f32 %v549, %v550
    %v552 = vand.u32 %v551, 4294901760
    %553 = vmatmul.mubr.f32.gmra.mrb[0].mxu0 %v552
    %v554 = vpop.f32.mrb[0].mxu0
    %v555 = vadd.f32 %v162, %v554
    %v556 = vpop.f32.mrb[0].mxu0
    %557 = vmatprep.mubr.f32.mxu0 0.0
    %v558 = vand.u32 %v298, 4294901760
    %v559 = vsub.f32 %v298, %v558
    %v560 = vand.u32 %v559, 4294901760
    %v561 = vsub.f32 %v559, %v560
    %v562 = vand.u32 %v561, 4294901760
    %563 = vmatmul.mubr.f32.gmra.mrb[0].mxu0 %v562
    %v564 = vpop.f32.mrb[0].mxu0
    %v565 = vadd.f32 %v167, %v564
    %v566 = vpop.f32.mrb[0].mxu0
    %567 = vmatprep.mubr.f32.mxu0 0.0
    %v568 = vand.u32 %v301, 4294901760
    %v569 = vsub.f32 %v301, %v568
    %v570 = vand.u32 %v569, 4294901760
    %v571 = vsub.f32 %v569, %v570
    %v572 = vand.u32 %v571, 4294901760
    %573 = vmatmul.mubr.f32.gmra.mrb[0].mxu0 %v572
    %v574 = vpop.f32.mrb[0].mxu0
    %v575 = vadd.f32 %v172, %v574
    %v576 = vpop.f32.mrb[0].mxu0
    %577 = vmatprep.mubr.f32.mxu0 0.0
    %v578 = vand.u32 %v304, 4294901760
    %v579 = vsub.f32 %v304, %v578
    %v580 = vand.u32 %v579, 4294901760
    %v581 = vsub.f32 %v579, %v580
    %v582 = vand.u32 %v581, 4294901760
    %583 = vmatmul.mubr.f32.gmra.mrb[0].mxu0 %v582
    %v584 = vpop.f32.mrb[0].mxu0
    %v585 = vadd.f32 %v177, %v584
    %v586 = vpop.f32.mrb[0].mxu0
    %587 = vmatprep.mubr.f32.mxu0 0.0
    %v588 = vand.u32 %v307, 4294901760
    %v589 = vsub.f32 %v307, %v588
    %v590 = vand.u32 %v589, 4294901760
    %v591 = vsub.f32 %v589, %v590
    %v592 = vand.u32 %v591, 4294901760
    %593 = vmatmul.mubr.f32.gmra.mrb[0].mxu0 %v592
    %v594 = vpop.f32.mrb[0].mxu0
    %v595 = vadd.f32 %v182, %v594
    %v596 = vpop.f32.mrb[0].mxu0
    %597 = vmatprep.mubr.f32.mxu0 0.0
    %v598 = vand.u32 %v310, 4294901760
    %v599 = vsub.f32 %v310, %v598
    %v600 = vand.u32 %v599, 4294901760
    %v601 = vsub.f32 %v599, %v600
    %v602 = vand.u32 %v601, 4294901760
    %603 = vmatmul.mubr.f32.gmra.mrb[0].mxu0 %v602
    %v604 = vpop.f32.mrb[0].mxu0
    %v605 = vadd.f32 %v187, %v604
    %v606 = vpop.f32.mrb[0].mxu0
    %607 = vmatprep.mubr.f32.mxu0 0.0
    %v608 = vand.u32 %v313, 4294901760
    %v609 = vsub.f32 %v313, %v608
    %v610 = vand.u32 %v609, 4294901760
    %v611 = vsub.f32 %v609, %v610
    %v612 = vand.u32 %v611, 4294901760
    %613 = vmatmul.mubr.f32.gmra.mrb[0].mxu0 %v612
    %v614 = vpop.f32.mrb[0].mxu0
    %v615 = vadd.f32 %v192, %v614
    %v616 = vpop.f32.mrb[0].mxu0
    %617 = vmatprep.mubr.f32.mxu0 0.0
    %v618 = vand.u32 %v316, 4294901760
    %v619 = vsub.f32 %v316, %v618
    %v620 = vand.u32 %v619, 4294901760
    %v621 = vsub.f32 %v619, %v620
    %v622 = vand.u32 %v621, 4294901760
    %623 = vmatmul.mubr.f32.gmra.mrb[0].mxu0 %v622
    %v624 = vpop.f32.mrb[0].mxu0
    %v625 = vadd.f32 %v197, %v624
    %v626 = vpop.f32.mrb[0].mxu0
    %627 = vmatprep.mubr.f32.mxu0 0.0
    %v628 = vand.u32 %v319, 4294901760
    %v629 = vsub.f32 %v319, %v628
    %v630 = vand.u32 %v629, 4294901760
    %v631 = vsub.f32 %v629, %v630
    %v632 = vand.u32 %v631, 4294901760
    %633 = vmatmul.mubr.f32.gmra.mrb[0].mxu0 %v632
    %v634 = vpop.f32.mrb[0].mxu0
    %v635 = vadd.f32 %v202, %v634
    %v636 = vpop.f32.mrb[0].mxu0
    %637 = vmatprep.mubr.f32.mxu0 0.0
    %v638 = vand.u32 %v322, 4294901760
    %v639 = vsub.f32 %v322, %v638
    %v640 = vand.u32 %v639, 4294901760
    %v641 = vsub.f32 %v639, %v640
    %v642 = vand.u32 %v641, 4294901760
    %643 = vmatmul.mubr.f32.gmra.mrb[0].mxu0 %v642
    %v644 = vpop.f32.mrb[0].mxu0
    %v645 = vadd.f32 %v207, %v644
    %v646 = vpop.f32.mrb[0].mxu0
    %647 = vmatprep.mubr.f32.mxu0 0.0
    %v648 = vand.u32 %v325, 4294901760
    %v649 = vsub.f32 %v325, %v648
    %v650 = vand.u32 %v649, 4294901760
    %v651 = vsub.f32 %v649, %v650
    %v652 = vand.u32 %v651, 4294901760
    %653 = vmatmul.mubr.f32.gmra.mrb[0].mxu0 %v652
    %v654 = vpop.f32.mrb[0].mxu0
    %v655 = vadd.f32 %v212, %v654
    %v656 = vpop.f32.mrb[0].mxu0
    %657 = vmatprep.mubr.f32.mxu0 0.0
    %v658 = vand.u32 %v328, 4294901760
    %v659 = vsub.f32 %v328, %v658
    %v660 = vand.u32 %v659, 4294901760
    %v661 = vsub.f32 %v659, %v660
    %v662 = vand.u32 %v661, 4294901760
    %663 = vmatmul.mubr.f32.gmra.mrb[0].mxu0 %v662
    %v664 = vpop.f32.mrb[0].mxu0
    %v665 = vadd.f32 %v217, %v664
    %v666 = vpop.f32.mrb[0].mxu0
    %667 = vmatprep.mubr.f32.mxu0 0.0
    %v668 = vand.u32 %v331, 4294901760
    %v669 = vsub.f32 %v331, %v668
    %v670 = vand.u32 %v669, 4294901760
    %v671 = vsub.f32 %v669, %v670
    %v672 = vand.u32 %v671, 4294901760
    %673 = vmatmul.mubr.f32.gmra.mrb[0].mxu0 %v672
    %v674 = vpop.f32.mrb[0].mxu0
    %v675 = vadd.f32 %v222, %v674
    %v676 = vpop.f32.mrb[0].mxu0
    %677 = vmatprep.mubr.f32.mxu0 0.0
    %v678 = vand.u32 %v334, 4294901760
    %v679 = vsub.f32 %v334, %v678
    %v680 = vand.u32 %v679, 4294901760
    %v681 = vsub.f32 %v679, %v680
    %v682 = vand.u32 %v681, 4294901760
    %683 = vmatmul.mubr.f32.gmra.mrb[0].mxu0 %v682
    %v684 = vpop.f32.mrb[0].mxu0
    %v685 = vadd.f32 %v227, %v684
    %v686 = vpop.f32.mrb[0].mxu0
    %687 = vmatprep.mubr.f32.mxu0 0.0
    %v688 = vand.u32 %v337, 4294901760
    %v689 = vsub.f32 %v337, %v688
    %v690 = vand.u32 %v689, 4294901760
    %v691 = vsub.f32 %v689, %v690
    %v692 = vand.u32 %v691, 4294901760
    %693 = vmatmul.mubr.f32.gmra.mrb[0].mxu0 %v692
    %v694 = vpop.f32.mrb[0].mxu0
    %v695 = vadd.f32 %v232, %v694
    %v696 = vpop.f32.mrb[0].mxu0
    %697 = vmatprep.mubr.f32.mxu0 0.0
    %v698 = vand.u32 %v340, 4294901760
    %v699 = vsub.f32 %v340, %v698
    %v700 = vand.u32 %v699, 4294901760
    %v701 = vsub.f32 %v699, %v700
    %v702 = vand.u32 %v701, 4294901760
    %703 = vmatmul.mubr.f32.gmra.mrb[0].mxu0 %v702
    %v704 = vpop.f32.mrb[0].mxu0
    %v705 = vadd.f32 %v237, %v704
    %v706 = vpop.f32.mrb[0].mxu0
    %707 = vmatprep.mubr.f32.mxu0 0.0
    %v708 = vand.u32 %v343, 4294901760
    %v709 = vsub.f32 %v343, %v708
    %v710 = vand.u32 %v709, 4294901760
    %v711 = vsub.f32 %v709, %v710
    %v712 = vand.u32 %v711, 4294901760
    %713 = vmatmul.mubr.f32.gmra.mrb[0].mxu0 %v712
    %v714 = vpop.f32.mrb[0].mxu0
    %v715 = vadd.f32 %v242, %v714
    %v716 = vpop.f32.mrb[0].mxu0
    %717 = vmatprep.mubr.f32.mxu0 0.0
    %v718 = vand.u32 %v346, 4294901760
    %v719 = vsub.f32 %v346, %v718
    %v720 = vand.u32 %v719, 4294901760
    %v721 = vsub.f32 %v719, %v720
    %v722 = vand.u32 %v721, 4294901760
    %723 = vmatmul.mubr.f32.gmra.mrb[0].mxu0 %v722
    %v724 = vpop.f32.mrb[0].mxu0
    %v725 = vadd.f32 %v247, %v724
    %v726 = vpop.f32.mrb[0].mxu0
    %727 = vmatprep.mubr.f32.mxu0 0.0
    %v728 = vand.u32 %v349, 4294901760
    %v729 = vsub.f32 %v349, %v728
    %v730 = vand.u32 %v729, 4294901760
    %v731 = vsub.f32 %v729, %v730
    %v732 = vand.u32 %v731, 4294901760
    %733 = vmatmul.mubr.f32.gmra.mrb[0].mxu0 %v732
    %v734 = vpop.f32.mrb[0].mxu0
    %v735 = vadd.f32 %v252, %v734
    %v736 = vpop.f32.mrb[0].mxu0
    %737 = vdwg.mxu0
    %738 = vmatprep.subr.mxu0 0.0
    %v739 = vand.u32 %v28, 4294901760
    %v740 = vsub.f32 %v28, %v739
    %v741 = vand.u32 %v740, 4294901760
    %v742 = vsub.f32 %v740, %v741
    %v743 = vand.u32 %v742, 4294901760
    %744 = vmatpush1.msra.mxu0 %v743
    %745 = vmatprep.subr.mxu0 0.0
    %v746 = vand.u32 %v29, 4294901760
    %v747 = vsub.f32 %v29, %v746
    %v748 = vand.u32 %v747, 4294901760
    %v749 = vsub.f32 %v747, %v748
    %v750 = vand.u32 %v749, 4294901760
    %751 = vmatpush1.msra.mxu0 %v750
    %752 = vmatprep.subr.mxu0 0.0
    %753 = vmatpush1.msra.mxu0 0.0
    %754 = vmatprep.subr.mxu0 0.0
    %755 = vmatpush1.msra.mxu0 0.0
    %756 = vmatprep.subr.mxu0 0.0
    %757 = vmatpush1.msra.mxu0 0.0
    %758 = vmatprep.subr.mxu0 0.0
    %759 = vmatpush1.msra.mxu0 0.0
    %760 = vmatprep.subr.mxu0 0.0
    %761 = vmatpush1.msra.mxu0 0.0
    %762 = vmatprep.subr.mxu0 0.0
    %763 = vmatpush1.msra.mxu0 0.0
    %764 = vmatprep.subr.mxu0 0.0
    %765 = vmatpush1.msra.mxu0 0.0
    %766 = vmatprep.subr.mxu0 0.0
    %767 = vmatpush1.msra.mxu0 0.0
    %768 = vmatprep.subr.mxu0 0.0
    %769 = vmatpush1.msra.mxu0 0.0
    %770 = vmatprep.subr.mxu0 0.0
    %771 = vmatpush1.msra.mxu0 0.0
    %772 = vmatprep.subr.mxu0 0.0
    %773 = vmatpush1.msra.mxu0 0.0
    %774 = vmatprep.subr.mxu0 0.0
    %775 = vmatpush1.msra.mxu0 0.0
    %776 = vmatprep.subr.mxu0 0.0
    %777 = vmatpush1.msra.mxu0 0.0
    %778 = vmatprep.subr.mxu0 0.0
    %779 = vmatpush1.msra.mxu0 0.0
    %780 = vmatprep.subr.mxu0 0.0
    %781 = vmatpush1.msra.mxu0 0.0
    %782 = vmatprep.subr.mxu0 0.0
    %783 = vmatpush1.msra.mxu0 0.0
    %784 = vmatprep.subr.mxu0 0.0
    %785 = vmatpush1.msra.mxu0 0.0
    %786 = vmatprep.subr.mxu0 0.0
    %787 = vmatpush1.msra.mxu0 0.0
    %788 = vmatprep.subr.mxu0 0.0
    %789 = vmatpush1.msra.mxu0 0.0
    %790 = vmatprep.subr.mxu0 0.0
    %791 = vmatpush1.msra.mxu0 0.0
    %792 = vmatprep.subr.mxu0 0.0
    %793 = vmatpush1.msra.mxu0 0.0
    %794 = vmatprep.subr.mxu0 0.0
    %795 = vmatpush1.msra.mxu0 0.0
    %796 = vmatprep.subr.mxu0 0.0
    %797 = vmatpush1.msra.mxu0 0.0
    %798 = vmatprep.subr.mxu0 0.0
    %799 = vmatpush1.msra.mxu0 0.0
    %800 = vmatprep.subr.mxu0 0.0
    %801 = vmatpush1.msra.mxu0 0.0
    %802 = vmatprep.subr.mxu0 0.0
    %803 = vmatpush1.msra.mxu0 0.0
    %804 = vmatprep.subr.mxu0 0.0
    %805 = vmatpush1.msra.mxu0 0.0
    %806 = vmatprep.subr.mxu0 0.0
    %807 = vmatpush1.msra.mxu0 0.0
    %808 = vmatprep.subr.mxu0 0.0
    %809 = vmatpush1.msra.mxu0 0.0
    %810 = vmatprep.subr.mxu0 0.0
    %811 = vmatpush1.msra.mxu0 0.0
    %812 = vmatprep.mubr.f32.mxu0 0.0
    %v813 = vand.u32 %v256, 4294901760
    %814 = vmatmul.mubr.f32.gmra.mrb[0].mxu0 %v813
    %v815 = vpop.f32.mrb[0].mxu0
    %v816 = vadd.f32 %v425, %v815
    %v817 = vpop.f32.mrb[0].mxu0
    %818 = vmatprep.mubr.f32.mxu0 0.0
    %v819 = vand.u32 %v259, 4294901760
    %820 = vmatmul.mubr.f32.gmra.mrb[0].mxu0 %v819
    %v821 = vpop.f32.mrb[0].mxu0
    %v822 = vadd.f32 %v435, %v821
    %v823 = vpop.f32.mrb[0].mxu0
    %824 = vmatprep.mubr.f32.mxu0 0.0
    %v825 = vand.u32 %v262, 4294901760
    %826 = vmatmul.mubr.f32.gmra.mrb[0].mxu0 %v825
    %v827 = vpop.f32.mrb[0].mxu0
    %v828 = vadd.f32 %v445, %v827
    %v829 = vpop.f32.mrb[0].mxu0
    %830 = vmatprep.mubr.f32.mxu0 0.0
    %v831 = vand.u32 %v265, 4294901760
    %832 = vmatmul.mubr.f32.gmra.mrb[0].mxu0 %v831
    %v833 = vpop.f32.mrb[0].mxu0
    %v834 = vadd.f32 %v455, %v833
    %v835 = vpop.f32.mrb[0].mxu0
    %836 = vmatprep.mubr.f32.mxu0 0.0
    %v837 = vand.u32 %v268, 4294901760
    %838 = vmatmul.mubr.f32.gmra.mrb[0].mxu0 %v837
    %v839 = vpop.f32.mrb[0].mxu0
    %v840 = vadd.f32 %v465, %v839
    %v841 = vpop.f32.mrb[0].mxu0
    %842 = vmatprep.mubr.f32.mxu0 0.0
    %v843 = vand.u32 %v271, 4294901760
    %844 = vmatmul.mubr.f32.gmra.mrb[0].mxu0 %v843
    %v845 = vpop.f32.mrb[0].mxu0
    %v846 = vadd.f32 %v475, %v845
    %v847 = vpop.f32.mrb[0].mxu0
    %848 = vmatprep.mubr.f32.mxu0 0.0
    %v849 = vand.u32 %v274, 4294901760
    %850 = vmatmul.mubr.f32.gmra.mrb[0].mxu0 %v849
    %v851 = vpop.f32.mrb[0].mxu0
    %v852 = vadd.f32 %v485, %v851
    %v853 = vpop.f32.mrb[0].mxu0
    %854 = vmatprep.mubr.f32.mxu0 0.0
    %v855 = vand.u32 %v277, 4294901760
    %856 = vmatmul.mubr.f32.gmra.mrb[0].mxu0 %v855
    %v857 = vpop.f32.mrb[0].mxu0
    %v858 = vadd.f32 %v495, %v857
    %v859 = vpop.f32.mrb[0].mxu0
    %860 = vmatprep.mubr.f32.mxu0 0.0
    %v861 = vand.u32 %v280, 4294901760
    %862 = vmatmul.mubr.f32.gmra.mrb[0].mxu0 %v861
    %v863 = vpop.f32.mrb[0].mxu0
    %v864 = vadd.f32 %v505, %v863
    %v865 = vpop.f32.mrb[0].mxu0
    %866 = vmatprep.mubr.f32.mxu0 0.0
    %v867 = vand.u32 %v283, 4294901760
    %868 = vmatmul.mubr.f32.gmra.mrb[0].mxu0 %v867
    %v869 = vpop.f32.mrb[0].mxu0
    %v870 = vadd.f32 %v515, %v869
    %v871 = vpop.f32.mrb[0].mxu0
    %872 = vmatprep.mubr.f32.mxu0 0.0
    %v873 = vand.u32 %v286, 4294901760
    %874 = vmatmul.mubr.f32.gmra.mrb[0].mxu0 %v873
    %v875 = vpop.f32.mrb[0].mxu0
    %v876 = vadd.f32 %v525, %v875
    %v877 = vpop.f32.mrb[0].mxu0
    %878 = vmatprep.mubr.f32.mxu0 0.0
    %v879 = vand.u32 %v289, 4294901760
    %880 = vmatmul.mubr.f32.gmra.mrb[0].mxu0 %v879
    %v881 = vpop.f32.mrb[0].mxu0
    %v882 = vadd.f32 %v535, %v881
    %v883 = vpop.f32.mrb[0].mxu0
    %884 = vmatprep.mubr.f32.mxu0 0.0
    %v885 = vand.u32 %v292, 4294901760
    %886 = vmatmul.mubr.f32.gmra.mrb[0].mxu0 %v885
    %v887 = vpop.f32.mrb[0].mxu0
    %v888 = vadd.f32 %v545, %v887
    %v889 = vpop.f32.mrb[0].mxu0
    %890 = vmatprep.mubr.f32.mxu0 0.0
    %v891 = vand.u32 %v295, 4294901760
    %892 = vmatmul.mubr.f32.gmra.mrb[0].mxu0 %v891
    %v893 = vpop.f32.mrb[0].mxu0
    %v894 = vadd.f32 %v555, %v893
    %v895 = vpop.f32.mrb[0].mxu0
    %896 = vmatprep.mubr.f32.mxu0 0.0
    %v897 = vand.u32 %v298, 4294901760
    %898 = vmatmul.mubr.f32.gmra.mrb[0].mxu0 %v897
    %v899 = vpop.f32.mrb[0].mxu0
    %v900 = vadd.f32 %v565, %v899
    %v901 = vpop.f32.mrb[0].mxu0
    %902 = vmatprep.mubr.f32.mxu0 0.0
    %v903 = vand.u32 %v301, 4294901760
    %904 = vmatmul.mubr.f32.gmra.mrb[0].mxu0 %v903
    %v905 = vpop.f32.mrb[0].mxu0
    %v906 = vadd.f32 %v575, %v905
    %v907 = vpop.f32.mrb[0].mxu0
    %908 = vmatprep.mubr.f32.mxu0 0.0
    %v909 = vand.u32 %v304, 4294901760
    %910 = vmatmul.mubr.f32.gmra.mrb[0].mxu0 %v909
    %v911 = vpop.f32.mrb[0].mxu0
    %v912 = vadd.f32 %v585, %v911
    %v913 = vpop.f32.mrb[0].mxu0
    %914 = vmatprep.mubr.f32.mxu0 0.0
    %v915 = vand.u32 %v307, 4294901760
    %916 = vmatmul.mubr.f32.gmra.mrb[0].mxu0 %v915
    %v917 = vpop.f32.mrb[0].mxu0
    %v918 = vadd.f32 %v595, %v917
    %v919 = vpop.f32.mrb[0].mxu0
    %920 = vmatprep.mubr.f32.mxu0 0.0
    %v921 = vand.u32 %v310, 4294901760
    %922 = vmatmul.mubr.f32.gmra.mrb[0].mxu0 %v921
    %v923 = vpop.f32.mrb[0].mxu0
    %v924 = vadd.f32 %v605, %v923
    %v925 = vpop.f32.mrb[0].mxu0
    %926 = vmatprep.mubr.f32.mxu0 0.0
    %v927 = vand.u32 %v313, 4294901760
    %928 = vmatmul.mubr.f32.gmra.mrb[0].mxu0 %v927
    %v929 = vpop.f32.mrb[0].mxu0
    %v930 = vadd.f32 %v615, %v929
    %v931 = vpop.f32.mrb[0].mxu0
    %932 = vmatprep.mubr.f32.mxu0 0.0
    %v933 = vand.u32 %v316, 4294901760
    %934 = vmatmul.mubr.f32.gmra.mrb[0].mxu0 %v933
    %v935 = vpop.f32.mrb[0].mxu0
    %v936 = vadd.f32 %v625, %v935
    %v937 = vpop.f32.mrb[0].mxu0
    %938 = vmatprep.mubr.f32.mxu0 0.0
    %v939 = vand.u32 %v319, 4294901760
    %940 = vmatmul.mubr.f32.gmra.mrb[0].mxu0 %v939
    %v941 = vpop.f32.mrb[0].mxu0
    %v942 = vadd.f32 %v635, %v941
    %v943 = vpop.f32.mrb[0].mxu0
    %944 = vmatprep.mubr.f32.mxu0 0.0
    %v945 = vand.u32 %v322, 4294901760
    %946 = vmatmul.mubr.f32.gmra.mrb[0].mxu0 %v945
    %v947 = vpop.f32.mrb[0].mxu0
    %v948 = vadd.f32 %v645, %v947
    %v949 = vpop.f32.mrb[0].mxu0
    %950 = vmatprep.mubr.f32.mxu0 0.0
    %v951 = vand.u32 %v325, 4294901760
    %952 = vmatmul.mubr.f32.gmra.mrb[0].mxu0 %v951
    %v953 = vpop.f32.mrb[0].mxu0
    %v954 = vadd.f32 %v655, %v953
    %v955 = vpop.f32.mrb[0].mxu0
    %956 = vmatprep.mubr.f32.mxu0 0.0
    %v957 = vand.u32 %v328, 4294901760
    %958 = vmatmul.mubr.f32.gmra.mrb[0].mxu0 %v957
    %v959 = vpop.f32.mrb[0].mxu0
    %v960 = vadd.f32 %v665, %v959
    %v961 = vpop.f32.mrb[0].mxu0
    %962 = vmatprep.mubr.f32.mxu0 0.0
    %v963 = vand.u32 %v331, 4294901760
    %964 = vmatmul.mubr.f32.gmra.mrb[0].mxu0 %v963
    %v965 = vpop.f32.mrb[0].mxu0
    %v966 = vadd.f32 %v675, %v965
    %v967 = vpop.f32.mrb[0].mxu0
    %968 = vmatprep.mubr.f32.mxu0 0.0
    %v969 = vand.u32 %v334, 4294901760
    %970 = vmatmul.mubr.f32.gmra.mrb[0].mxu0 %v969
    %v971 = vpop.f32.mrb[0].mxu0
    %v972 = vadd.f32 %v685, %v971
    %v973 = vpop.f32.mrb[0].mxu0
    %974 = vmatprep.mubr.f32.mxu0 0.0
    %v975 = vand.u32 %v337, 4294901760
    %976 = vmatmul.mubr.f32.gmra.mrb[0].mxu0 %v975
    %v977 = vpop.f32.mrb[0].mxu0
    %v978 = vadd.f32 %v695, %v977
    %v979 = vpop.f32.mrb[0].mxu0
    %980 = vmatprep.mubr.f32.mxu0 0.0
    %v981 = vand.u32 %v340, 4294901760
    %982 = vmatmul.mubr.f32.gmra.mrb[0].mxu0 %v981
    %v983 = vpop.f32.mrb[0].mxu0
    %v984 = vadd.f32 %v705, %v983
    %v985 = vpop.f32.mrb[0].mxu0
    %986 = vmatprep.mubr.f32.mxu0 0.0
    %v987 = vand.u32 %v343, 4294901760
    %988 = vmatmul.mubr.f32.gmra.mrb[0].mxu0 %v987
    %v989 = vpop.f32.mrb[0].mxu0
    %v990 = vadd.f32 %v715, %v989
    %v991 = vpop.f32.mrb[0].mxu0
    %992 = vmatprep.mubr.f32.mxu0 0.0
    %v993 = vand.u32 %v346, 4294901760
    %994 = vmatmul.mubr.f32.gmra.mrb[0].mxu0 %v993
    %v995 = vpop.f32.mrb[0].mxu0
    %v996 = vadd.f32 %v725, %v995
    %v997 = vpop.f32.mrb[0].mxu0
    %998 = vmatprep.mubr.f32.mxu0 0.0
    %v999 = vand.u32 %v349, 4294901760
    %1000 = vmatmul.mubr.f32.gmra.mrb[0].mxu0 %v999
    %v1001 = vpop.f32.mrb[0].mxu0
    %v1002 = vadd.f32 %v735, %v1001
    %v1003 = vpop.f32.mrb[0].mxu0
    %1004 = vdwg.mxu0
    %1005 = vmatprep.subr.mxu0 0.0
    %v1006 = vand.u32 %v28, 4294901760
    %v1007 = vsub.f32 %v28, %v1006
    %1008 = vmatpush1.msra.mxu0 %v1007
    %1009 = vmatprep.subr.mxu0 0.0
    %v1010 = vand.u32 %v29, 4294901760
    %v1011 = vsub.f32 %v29, %v1010
    %1012 = vmatpush1.msra.mxu0 %v1011
    %1013 = vmatprep.subr.mxu0 0.0
    %1014 = vmatpush1.msra.mxu0 0.0
    %1015 = vmatprep.subr.mxu0 0.0
    %1016 = vmatpush1.msra.mxu0 0.0
    %1017 = vmatprep.subr.mxu0 0.0
    %1018 = vmatpush1.msra.mxu0 0.0
    %1019 = vmatprep.subr.mxu0 0.0
    %1020 = vmatpush1.msra.mxu0 0.0
    %1021 = vmatprep.subr.mxu0 0.0
    %1022 = vmatpush1.msra.mxu0 0.0
    %1023 = vmatprep.subr.mxu0 0.0
    %1024 = vmatpush1.msra.mxu0 0.0
    %1025 = vmatprep.subr.mxu0 0.0
    %1026 = vmatpush1.msra.mxu0 0.0
    %1027 = vmatprep.subr.mxu0 0.0
    %1028 = vmatpush1.msra.mxu0 0.0
    %1029 = vmatprep.subr.mxu0 0.0
    %1030 = vmatpush1.msra.mxu0 0.0
    %1031 = vmatprep.subr.mxu0 0.0
    %1032 = vmatpush1.msra.mxu0 0.0
    %1033 = vmatprep.subr.mxu0 0.0
    %1034 = vmatpush1.msra.mxu0 0.0
    %1035 = vmatprep.subr.mxu0 0.0
    %1036 = vmatpush1.msra.mxu0 0.0
    %1037 = vmatprep.subr.mxu0 0.0
    %1038 = vmatpush1.msra.mxu0 0.0
    %1039 = vmatprep.subr.mxu0 0.0
    %1040 = vmatpush1.msra.mxu0 0.0
    %1041 = vmatprep.subr.mxu0 0.0
    %1042 = vmatpush1.msra.mxu0 0.0
    %1043 = vmatprep.subr.mxu0 0.0
    %1044 = vmatpush1.msra.mxu0 0.0
    %1045 = vmatprep.subr.mxu0 0.0
    %1046 = vmatpush1.msra.mxu0 0.0
    %1047 = vmatprep.subr.mxu0 0.0
    %1048 = vmatpush1.msra.mxu0 0.0
    %1049 = vmatprep.subr.mxu0 0.0
    %1050 = vmatpush1.msra.mxu0 0.0
    %1051 = vmatprep.subr.mxu0 0.0
    %1052 = vmatpush1.msra.mxu0 0.0
    %1053 = vmatprep.subr.mxu0 0.0
    %1054 = vmatpush1.msra.mxu0 0.0
    %1055 = vmatprep.subr.mxu0 0.0
    %1056 = vmatpush1.msra.mxu0 0.0
    %1057 = vmatprep.subr.mxu0 0.0
    %1058 = vmatpush1.msra.mxu0 0.0
    %1059 = vmatprep.subr.mxu0 0.0
    %1060 = vmatpush1.msra.mxu0 0.0
    %1061 = vmatprep.subr.mxu0 0.0
    %1062 = vmatpush1.msra.mxu0 0.0
    %1063 = vmatprep.subr.mxu0 0.0
    %1064 = vmatpush1.msra.mxu0 0.0
    %1065 = vmatprep.subr.mxu0 0.0
    %1066 = vmatpush1.msra.mxu0 0.0
    %1067 = vmatprep.subr.mxu0 0.0
    %1068 = vmatpush1.msra.mxu0 0.0
    %1069 = vmatprep.subr.mxu0 0.0
    %1070 = vmatpush1.msra.mxu0 0.0
    %1071 = vmatprep.subr.mxu0 0.0
    %1072 = vmatpush1.msra.mxu0 0.0
    %1073 = vmatprep.mubr.f32.mxu0 0.0
    %v1074 = vand.u32 %v256, 4294901760
    %v1075 = vsub.f32 %v256, %v1074
    %1076 = vmatmul.mubr.f32.gmra.mrb[0].mxu0 %v1075
    %v1077 = vpop.f32.mrb[0].mxu0
    %v1078 = vadd.f32 %v816, %v1077
    %v1079 = vpop.f32.mrb[0].mxu0
    %1080 = vmatprep.mubr.f32.mxu0 0.0
    %v1081 = vand.u32 %v259, 4294901760
    %v1082 = vsub.f32 %v259, %v1081
    %1083 = vmatmul.mubr.f32.gmra.mrb[0].mxu0 %v1082
    %v1084 = vpop.f32.mrb[0].mxu0
    %v1085 = vadd.f32 %v822, %v1084
    %v1086 = vpop.f32.mrb[0].mxu0
    %1087 = vmatprep.mubr.f32.mxu0 0.0
    %v1088 = vand.u32 %v262, 4294901760
    %v1089 = vsub.f32 %v262, %v1088
    %1090 = vmatmul.mubr.f32.gmra.mrb[0].mxu0 %v1089
    %v1091 = vpop.f32.mrb[0].mxu0
    %v1092 = vadd.f32 %v828, %v1091
    %v1093 = vpop.f32.mrb[0].mxu0
    %1094 = vmatprep.mubr.f32.mxu0 0.0
    %v1095 = vand.u32 %v265, 4294901760
    %v1096 = vsub.f32 %v265, %v1095
    %1097 = vmatmul.mubr.f32.gmra.mrb[0].mxu0 %v1096
    %v1098 = vpop.f32.mrb[0].mxu0
    %v1099 = vadd.f32 %v834, %v1098
    %v1100 = vpop.f32.mrb[0].mxu0
    %1101 = vmatprep.mubr.f32.mxu0 0.0
    %v1102 = vand.u32 %v268, 4294901760
    %v1103 = vsub.f32 %v268, %v1102
    %1104 = vmatmul.mubr.f32.gmra.mrb[0].mxu0 %v1103
    %v1105 = vpop.f32.mrb[0].mxu0
    %v1106 = vadd.f32 %v840, %v1105
    %v1107 = vpop.f32.mrb[0].mxu0
    %1108 = vmatprep.mubr.f32.mxu0 0.0
    %v1109 = vand.u32 %v271, 4294901760
    %v1110 = vsub.f32 %v271, %v1109
    %1111 = vmatmul.mubr.f32.gmra.mrb[0].mxu0 %v1110
    %v1112 = vpop.f32.mrb[0].mxu0
    %v1113 = vadd.f32 %v846, %v1112
    %v1114 = vpop.f32.mrb[0].mxu0
    %1115 = vmatprep.mubr.f32.mxu0 0.0
    %v1116 = vand.u32 %v274, 4294901760
    %v1117 = vsub.f32 %v274, %v1116
    %1118 = vmatmul.mubr.f32.gmra.mrb[0].mxu0 %v1117
    %v1119 = vpop.f32.mrb[0].mxu0
    %v1120 = vadd.f32 %v852, %v1119
    %v1121 = vpop.f32.mrb[0].mxu0
    %1122 = vmatprep.mubr.f32.mxu0 0.0
    %v1123 = vand.u32 %v277, 4294901760
    %v1124 = vsub.f32 %v277, %v1123
    %1125 = vmatmul.mubr.f32.gmra.mrb[0].mxu0 %v1124
    %v1126 = vpop.f32.mrb[0].mxu0
    %v1127 = vadd.f32 %v858, %v1126
    %v1128 = vpop.f32.mrb[0].mxu0
    %1129 = vmatprep.mubr.f32.mxu0 0.0
    %v1130 = vand.u32 %v280, 4294901760
    %v1131 = vsub.f32 %v280, %v1130
    %1132 = vmatmul.mubr.f32.gmra.mrb[0].mxu0 %v1131
    %v1133 = vpop.f32.mrb[0].mxu0
    %v1134 = vadd.f32 %v864, %v1133
    %v1135 = vpop.f32.mrb[0].mxu0
    %1136 = vmatprep.mubr.f32.mxu0 0.0
    %v1137 = vand.u32 %v283, 4294901760
    %v1138 = vsub.f32 %v283, %v1137
    %1139 = vmatmul.mubr.f32.gmra.mrb[0].mxu0 %v1138
    %v1140 = vpop.f32.mrb[0].mxu0
    %v1141 = vadd.f32 %v870, %v1140
    %v1142 = vpop.f32.mrb[0].mxu0
    %1143 = vmatprep.mubr.f32.mxu0 0.0
    %v1144 = vand.u32 %v286, 4294901760
    %v1145 = vsub.f32 %v286, %v1144
    %1146 = vmatmul.mubr.f32.gmra.mrb[0].mxu0 %v1145
    %v1147 = vpop.f32.mrb[0].mxu0
    %v1148 = vadd.f32 %v876, %v1147
    %v1149 = vpop.f32.mrb[0].mxu0
    %1150 = vmatprep.mubr.f32.mxu0 0.0
    %v1151 = vand.u32 %v289, 4294901760
    %v1152 = vsub.f32 %v289, %v1151
    %1153 = vmatmul.mubr.f32.gmra.mrb[0].mxu0 %v1152
    %v1154 = vpop.f32.mrb[0].mxu0
    %v1155 = vadd.f32 %v882, %v1154
    %v1156 = vpop.f32.mrb[0].mxu0
    %1157 = vmatprep.mubr.f32.mxu0 0.0
    %v1158 = vand.u32 %v292, 4294901760
    %v1159 = vsub.f32 %v292, %v1158
    %1160 = vmatmul.mubr.f32.gmra.mrb[0].mxu0 %v1159
    %v1161 = vpop.f32.mrb[0].mxu0
    %v1162 = vadd.f32 %v888, %v1161
    %v1163 = vpop.f32.mrb[0].mxu0
    %1164 = vmatprep.mubr.f32.mxu0 0.0
    %v1165 = vand.u32 %v295, 4294901760
    %v1166 = vsub.f32 %v295, %v1165
    %1167 = vmatmul.mubr.f32.gmra.mrb[0].mxu0 %v1166
    %v1168 = vpop.f32.mrb[0].mxu0
    %v1169 = vadd.f32 %v894, %v1168
    %v1170 = vpop.f32.mrb[0].mxu0
    %1171 = vmatprep.mubr.f32.mxu0 0.0
    %v1172 = vand.u32 %v298, 4294901760
    %v1173 = vsub.f32 %v298, %v1172
    %1174 = vmatmul.mubr.f32.gmra.mrb[0].mxu0 %v1173
    %v1175 = vpop.f32.mrb[0].mxu0
    %v1176 = vadd.f32 %v900, %v1175
    %v1177 = vpop.f32.mrb[0].mxu0
    %1178 = vmatprep.mubr.f32.mxu0 0.0
    %v1179 = vand.u32 %v301, 4294901760
    %v1180 = vsub.f32 %v301, %v1179
    %1181 = vmatmul.mubr.f32.gmra.mrb[0].mxu0 %v1180
    %v1182 = vpop.f32.mrb[0].mxu0
    %v1183 = vadd.f32 %v906, %v1182
    %v1184 = vpop.f32.mrb[0].mxu0
    %1185 = vmatprep.mubr.f32.mxu0 0.0
    %v1186 = vand.u32 %v304, 4294901760
    %v1187 = vsub.f32 %v304, %v1186
    %1188 = vmatmul.mubr.f32.gmra.mrb[0].mxu0 %v1187
    %v1189 = vpop.f32.mrb[0].mxu0
    %v1190 = vadd.f32 %v912, %v1189
    %v1191 = vpop.f32.mrb[0].mxu0
    %1192 = vmatprep.mubr.f32.mxu0 0.0
    %v1193 = vand.u32 %v307, 4294901760
    %v1194 = vsub.f32 %v307, %v1193
    %1195 = vmatmul.mubr.f32.gmra.mrb[0].mxu0 %v1194
    %v1196 = vpop.f32.mrb[0].mxu0
    %v1197 = vadd.f32 %v918, %v1196
    %v1198 = vpop.f32.mrb[0].mxu0
    %1199 = vmatprep.mubr.f32.mxu0 0.0
    %v1200 = vand.u32 %v310, 4294901760
    %v1201 = vsub.f32 %v310, %v1200
    %1202 = vmatmul.mubr.f32.gmra.mrb[0].mxu0 %v1201
    %v1203 = vpop.f32.mrb[0].mxu0
    %v1204 = vadd.f32 %v924, %v1203
    %v1205 = vpop.f32.mrb[0].mxu0
    %1206 = vmatprep.mubr.f32.mxu0 0.0
    %v1207 = vand.u32 %v313, 4294901760
    %v1208 = vsub.f32 %v313, %v1207
    %1209 = vmatmul.mubr.f32.gmra.mrb[0].mxu0 %v1208
    %v1210 = vpop.f32.mrb[0].mxu0
    %v1211 = vadd.f32 %v930, %v1210
    %v1212 = vpop.f32.mrb[0].mxu0
    %1213 = vmatprep.mubr.f32.mxu0 0.0
    %v1214 = vand.u32 %v316, 4294901760
    %v1215 = vsub.f32 %v316, %v1214
    %1216 = vmatmul.mubr.f32.gmra.mrb[0].mxu0 %v1215
    %v1217 = vpop.f32.mrb[0].mxu0
    %v1218 = vadd.f32 %v936, %v1217
    %v1219 = vpop.f32.mrb[0].mxu0
    %1220 = vmatprep.mubr.f32.mxu0 0.0
    %v1221 = vand.u32 %v319, 4294901760
    %v1222 = vsub.f32 %v319, %v1221
    %1223 = vmatmul.mubr.f32.gmra.mrb[0].mxu0 %v1222
    %v1224 = vpop.f32.mrb[0].mxu0
    %v1225 = vadd.f32 %v942, %v1224
    %v1226 = vpop.f32.mrb[0].mxu0
    %1227 = vmatprep.mubr.f32.mxu0 0.0
    %v1228 = vand.u32 %v322, 4294901760
    %v1229 = vsub.f32 %v322, %v1228
    %1230 = vmatmul.mubr.f32.gmra.mrb[0].mxu0 %v1229
    %v1231 = vpop.f32.mrb[0].mxu0
    %v1232 = vadd.f32 %v948, %v1231
    %v1233 = vpop.f32.mrb[0].mxu0
    %1234 = vmatprep.mubr.f32.mxu0 0.0
    %v1235 = vand.u32 %v325, 4294901760
    %v1236 = vsub.f32 %v325, %v1235
    %1237 = vmatmul.mubr.f32.gmra.mrb[0].mxu0 %v1236
    %v1238 = vpop.f32.mrb[0].mxu0
    %v1239 = vadd.f32 %v954, %v1238
    %v1240 = vpop.f32.mrb[0].mxu0
    %1241 = vmatprep.mubr.f32.mxu0 0.0
    %v1242 = vand.u32 %v328, 4294901760
    %v1243 = vsub.f32 %v328, %v1242
    %1244 = vmatmul.mubr.f32.gmra.mrb[0].mxu0 %v1243
    %v1245 = vpop.f32.mrb[0].mxu0
    %v1246 = vadd.f32 %v960, %v1245
    %v1247 = vpop.f32.mrb[0].mxu0
    %1248 = vmatprep.mubr.f32.mxu0 0.0
    %v1249 = vand.u32 %v331, 4294901760
    %v1250 = vsub.f32 %v331, %v1249
    %1251 = vmatmul.mubr.f32.gmra.mrb[0].mxu0 %v1250
    %v1252 = vpop.f32.mrb[0].mxu0
    %v1253 = vadd.f32 %v966, %v1252
    %v1254 = vpop.f32.mrb[0].mxu0
    %1255 = vmatprep.mubr.f32.mxu0 0.0
    %v1256 = vand.u32 %v334, 4294901760
    %v1257 = vsub.f32 %v334, %v1256
    %1258 = vmatmul.mubr.f32.gmra.mrb[0].mxu0 %v1257
    %v1259 = vpop.f32.mrb[0].mxu0
    %v1260 = vadd.f32 %v972, %v1259
    %v1261 = vpop.f32.mrb[0].mxu0
    %1262 = vmatprep.mubr.f32.mxu0 0.0
    %v1263 = vand.u32 %v337, 4294901760
    %v1264 = vsub.f32 %v337, %v1263
    %1265 = vmatmul.mubr.f32.gmra.mrb[0].mxu0 %v1264
    %v1266 = vpop.f32.mrb[0].mxu0
    %v1267 = vadd.f32 %v978, %v1266
    %v1268 = vpop.f32.mrb[0].mxu0
    %1269 = vmatprep.mubr.f32.mxu0 0.0
    %v1270 = vand.u32 %v340, 4294901760
    %v1271 = vsub.f32 %v340, %v1270
    %1272 = vmatmul.mubr.f32.gmra.mrb[0].mxu0 %v1271
    %v1273 = vpop.f32.mrb[0].mxu0
    %v1274 = vadd.f32 %v984, %v1273
    %v1275 = vpop.f32.mrb[0].mxu0
    %1276 = vmatprep.mubr.f32.mxu0 0.0
    %v1277 = vand.u32 %v343, 4294901760
    %v1278 = vsub.f32 %v343, %v1277
    %1279 = vmatmul.mubr.f32.gmra.mrb[0].mxu0 %v1278
    %v1280 = vpop.f32.mrb[0].mxu0
    %v1281 = vadd.f32 %v990, %v1280
    %v1282 = vpop.f32.mrb[0].mxu0
    %1283 = vmatprep.mubr.f32.mxu0 0.0
    %v1284 = vand.u32 %v346, 4294901760
    %v1285 = vsub.f32 %v346, %v1284
    %1286 = vmatmul.mubr.f32.gmra.mrb[0].mxu0 %v1285
    %v1287 = vpop.f32.mrb[0].mxu0
    %v1288 = vadd.f32 %v996, %v1287
    %v1289 = vpop.f32.mrb[0].mxu0
    %1290 = vmatprep.mubr.f32.mxu0 0.0
    %v1291 = vand.u32 %v349, 4294901760
    %v1292 = vsub.f32 %v349, %v1291
    %1293 = vmatmul.mubr.f32.gmra.mrb[0].mxu0 %v1292
    %v1294 = vpop.f32.mrb[0].mxu0
    %v1295 = vadd.f32 %v1002, %v1294
    %v1296 = vpop.f32.mrb[0].mxu0
    %1297 = vdwg.mxu0
    %1298 = vmatprep.subr.mxu0 0.0
    %v1299 = vand.u32 %v28, 4294901760
    %1300 = vmatpush1.msra.mxu0 %v1299
    %1301 = vmatprep.subr.mxu0 0.0
    %v1302 = vand.u32 %v29, 4294901760
    %1303 = vmatpush1.msra.mxu0 %v1302
    %1304 = vmatprep.subr.mxu0 0.0
    %1305 = vmatpush1.msra.mxu0 0.0
    %1306 = vmatprep.subr.mxu0 0.0
    %1307 = vmatpush1.msra.mxu0 0.0
    %1308 = vmatprep.subr.mxu0 0.0
    %1309 = vmatpush1.msra.mxu0 0.0
    %1310 = vmatprep.subr.mxu0 0.0
    %1311 = vmatpush1.msra.mxu0 0.0
    %1312 = vmatprep.subr.mxu0 0.0
    %1313 = vmatpush1.msra.mxu0 0.0
    %1314 = vmatprep.subr.mxu0 0.0
    %1315 = vmatpush1.msra.mxu0 0.0
    %1316 = vmatprep.subr.mxu0 0.0
    %1317 = vmatpush1.msra.mxu0 0.0
    %1318 = vmatprep.subr.mxu0 0.0
    %1319 = vmatpush1.msra.mxu0 0.0
    %1320 = vmatprep.subr.mxu0 0.0
    %1321 = vmatpush1.msra.mxu0 0.0
    %1322 = vmatprep.subr.mxu0 0.0
    %1323 = vmatpush1.msra.mxu0 0.0
    %1324 = vmatprep.subr.mxu0 0.0
    %1325 = vmatpush1.msra.mxu0 0.0
    %1326 = vmatprep.subr.mxu0 0.0
    %1327 = vmatpush1.msra.mxu0 0.0
    %1328 = vmatprep.subr.mxu0 0.0
    %1329 = vmatpush1.msra.mxu0 0.0
    %1330 = vmatprep.subr.mxu0 0.0
    %1331 = vmatpush1.msra.mxu0 0.0
    %1332 = vmatprep.subr.mxu0 0.0
    %1333 = vmatpush1.msra.mxu0 0.0
    %1334 = vmatprep.subr.mxu0 0.0
    %1335 = vmatpush1.msra.mxu0 0.0
    %1336 = vmatprep.subr.mxu0 0.0
    %1337 = vmatpush1.msra.mxu0 0.0
    %1338 = vmatprep.subr.mxu0 0.0
    %1339 = vmatpush1.msra.mxu0 0.0
    %1340 = vmatprep.subr.mxu0 0.0
    %1341 = vmatpush1.msra.mxu0 0.0
    %1342 = vmatprep.subr.mxu0 0.0
    %1343 = vmatpush1.msra.mxu0 0.0
    %1344 = vmatprep.subr.mxu0 0.0
    %1345 = vmatpush1.msra.mxu0 0.0
    %1346 = vmatprep.subr.mxu0 0.0
    %1347 = vmatpush1.msra.mxu0 0.0
    %1348 = vmatprep.subr.mxu0 0.0
    %1349 = vmatpush1.msra.mxu0 0.0
    %1350 = vmatprep.subr.mxu0 0.0
    %1351 = vmatpush1.msra.mxu0 0.0
    %1352 = vmatprep.subr.mxu0 0.0
    %1353 = vmatpush1.msra.mxu0 0.0
    %1354 = vmatprep.subr.mxu0 0.0
    %1355 = vmatpush1.msra.mxu0 0.0
    %1356 = vmatprep.subr.mxu0 0.0
    %1357 = vmatpush1.msra.mxu0 0.0
    %1358 = vmatprep.subr.mxu0 0.0
    %1359 = vmatpush1.msra.mxu0 0.0
    %1360 = vmatprep.subr.mxu0 0.0
    %1361 = vmatpush1.msra.mxu0 0.0
    %1362 = vmatprep.subr.mxu0 0.0
    %1363 = vmatpush1.msra.mxu0 0.0
    %1364 = vmatprep.mubr.f32.mxu0 0.0
    %v1365 = vand.u32 %v256, 4294901760
    %v1366 = vsub.f32 %v256, %v1365
    %v1367 = vand.u32 %v1366, 4294901760
    %1368 = vmatmul.mubr.f32.gmra.mrb[0].mxu0 %v1367
    %v1369 = vpop.f32.mrb[0].mxu0
    %v1370 = vadd.f32 %v1078, %v1369
    %v1371 = vpop.f32.mrb[0].mxu0
    %1372 = vmatprep.mubr.f32.mxu0 0.0
    %v1373 = vand.u32 %v259, 4294901760
    %v1374 = vsub.f32 %v259, %v1373
    %v1375 = vand.u32 %v1374, 4294901760
    %1376 = vmatmul.mubr.f32.gmra.mrb[0].mxu0 %v1375
    %v1377 = vpop.f32.mrb[0].mxu0
    %v1378 = vadd.f32 %v1085, %v1377
    %v1379 = vpop.f32.mrb[0].mxu0
    %1380 = vmatprep.mubr.f32.mxu0 0.0
    %v1381 = vand.u32 %v262, 4294901760
    %v1382 = vsub.f32 %v262, %v1381
    %v1383 = vand.u32 %v1382, 4294901760
    %1384 = vmatmul.mubr.f32.gmra.mrb[0].mxu0 %v1383
    %v1385 = vpop.f32.mrb[0].mxu0
    %v1386 = vadd.f32 %v1092, %v1385
    %v1387 = vpop.f32.mrb[0].mxu0
    %1388 = vmatprep.mubr.f32.mxu0 0.0
    %v1389 = vand.u32 %v265, 4294901760
    %v1390 = vsub.f32 %v265, %v1389
    %v1391 = vand.u32 %v1390, 4294901760
    %1392 = vmatmul.mubr.f32.gmra.mrb[0].mxu0 %v1391
    %v1393 = vpop.f32.mrb[0].mxu0
    %v1394 = vadd.f32 %v1099, %v1393
    %v1395 = vpop.f32.mrb[0].mxu0
    %1396 = vmatprep.mubr.f32.mxu0 0.0
    %v1397 = vand.u32 %v268, 4294901760
    %v1398 = vsub.f32 %v268, %v1397
    %v1399 = vand.u32 %v1398, 4294901760
    %1400 = vmatmul.mubr.f32.gmra.mrb[0].mxu0 %v1399
    %v1401 = vpop.f32.mrb[0].mxu0
    %v1402 = vadd.f32 %v1106, %v1401
    %v1403 = vpop.f32.mrb[0].mxu0
    %1404 = vmatprep.mubr.f32.mxu0 0.0
    %v1405 = vand.u32 %v271, 4294901760
    %v1406 = vsub.f32 %v271, %v1405
    %v1407 = vand.u32 %v1406, 4294901760
    %1408 = vmatmul.mubr.f32.gmra.mrb[0].mxu0 %v1407
    %v1409 = vpop.f32.mrb[0].mxu0
    %v1410 = vadd.f32 %v1113, %v1409
    %v1411 = vpop.f32.mrb[0].mxu0
    %1412 = vmatprep.mubr.f32.mxu0 0.0
    %v1413 = vand.u32 %v274, 4294901760
    %v1414 = vsub.f32 %v274, %v1413
    %v1415 = vand.u32 %v1414, 4294901760
    %1416 = vmatmul.mubr.f32.gmra.mrb[0].mxu0 %v1415
    %v1417 = vpop.f32.mrb[0].mxu0
    %v1418 = vadd.f32 %v1120, %v1417
    %v1419 = vpop.f32.mrb[0].mxu0
    %1420 = vmatprep.mubr.f32.mxu0 0.0
    %v1421 = vand.u32 %v277, 4294901760
    %v1422 = vsub.f32 %v277, %v1421
    %v1423 = vand.u32 %v1422, 4294901760
    %1424 = vmatmul.mubr.f32.gmra.mrb[0].mxu0 %v1423
    %v1425 = vpop.f32.mrb[0].mxu0
    %v1426 = vadd.f32 %v1127, %v1425
    %v1427 = vpop.f32.mrb[0].mxu0
    %1428 = vmatprep.mubr.f32.mxu0 0.0
    %v1429 = vand.u32 %v280, 4294901760
    %v1430 = vsub.f32 %v280, %v1429
    %v1431 = vand.u32 %v1430, 4294901760
    %1432 = vmatmul.mubr.f32.gmra.mrb[0].mxu0 %v1431
    %v1433 = vpop.f32.mrb[0].mxu0
    %v1434 = vadd.f32 %v1134, %v1433
    %v1435 = vpop.f32.mrb[0].mxu0
    %1436 = vmatprep.mubr.f32.mxu0 0.0
    %v1437 = vand.u32 %v283, 4294901760
    %v1438 = vsub.f32 %v283, %v1437
    %v1439 = vand.u32 %v1438, 4294901760
    %1440 = vmatmul.mubr.f32.gmra.mrb[0].mxu0 %v1439
    %v1441 = vpop.f32.mrb[0].mxu0
    %v1442 = vadd.f32 %v1141, %v1441
    %v1443 = vpop.f32.mrb[0].mxu0
    %1444 = vmatprep.mubr.f32.mxu0 0.0
    %v1445 = vand.u32 %v286, 4294901760
    %v1446 = vsub.f32 %v286, %v1445
    %v1447 = vand.u32 %v1446, 4294901760
    %1448 = vmatmul.mubr.f32.gmra.mrb[0].mxu0 %v1447
    %v1449 = vpop.f32.mrb[0].mxu0
    %v1450 = vadd.f32 %v1148, %v1449
    %v1451 = vpop.f32.mrb[0].mxu0
    %1452 = vmatprep.mubr.f32.mxu0 0.0
    %v1453 = vand.u32 %v289, 4294901760
    %v1454 = vsub.f32 %v289, %v1453
    %v1455 = vand.u32 %v1454, 4294901760
    %1456 = vmatmul.mubr.f32.gmra.mrb[0].mxu0 %v1455
    %v1457 = vpop.f32.mrb[0].mxu0
    %v1458 = vadd.f32 %v1155, %v1457
    %v1459 = vpop.f32.mrb[0].mxu0
    %1460 = vmatprep.mubr.f32.mxu0 0.0
    %v1461 = vand.u32 %v292, 4294901760
    %v1462 = vsub.f32 %v292, %v1461
    %v1463 = vand.u32 %v1462, 4294901760
    %1464 = vmatmul.mubr.f32.gmra.mrb[0].mxu0 %v1463
    %v1465 = vpop.f32.mrb[0].mxu0
    %v1466 = vadd.f32 %v1162, %v1465
    %v1467 = vpop.f32.mrb[0].mxu0
    %1468 = vmatprep.mubr.f32.mxu0 0.0
    %v1469 = vand.u32 %v295, 4294901760
    %v1470 = vsub.f32 %v295, %v1469
    %v1471 = vand.u32 %v1470, 4294901760
    %1472 = vmatmul.mubr.f32.gmra.mrb[0].mxu0 %v1471
    %v1473 = vpop.f32.mrb[0].mxu0
    %v1474 = vadd.f32 %v1169, %v1473
    %v1475 = vpop.f32.mrb[0].mxu0
    %1476 = vmatprep.mubr.f32.mxu0 0.0
    %v1477 = vand.u32 %v298, 4294901760
    %v1478 = vsub.f32 %v298, %v1477
    %v1479 = vand.u32 %v1478, 4294901760
    %1480 = vmatmul.mubr.f32.gmra.mrb[0].mxu0 %v1479
    %v1481 = vpop.f32.mrb[0].mxu0
    %v1482 = vadd.f32 %v1176, %v1481
    %v1483 = vpop.f32.mrb[0].mxu0
    %1484 = vmatprep.mubr.f32.mxu0 0.0
    %v1485 = vand.u32 %v301, 4294901760
    %v1486 = vsub.f32 %v301, %v1485
    %v1487 = vand.u32 %v1486, 4294901760
    %1488 = vmatmul.mubr.f32.gmra.mrb[0].mxu0 %v1487
    %v1489 = vpop.f32.mrb[0].mxu0
    %v1490 = vadd.f32 %v1183, %v1489
    %v1491 = vpop.f32.mrb[0].mxu0
    %1492 = vmatprep.mubr.f32.mxu0 0.0
    %v1493 = vand.u32 %v304, 4294901760
    %v1494 = vsub.f32 %v304, %v1493
    %v1495 = vand.u32 %v1494, 4294901760
    %1496 = vmatmul.mubr.f32.gmra.mrb[0].mxu0 %v1495
    %v1497 = vpop.f32.mrb[0].mxu0
    %v1498 = vadd.f32 %v1190, %v1497
    %v1499 = vpop.f32.mrb[0].mxu0
    %1500 = vmatprep.mubr.f32.mxu0 0.0
    %v1501 = vand.u32 %v307, 4294901760
    %v1502 = vsub.f32 %v307, %v1501
    %v1503 = vand.u32 %v1502, 4294901760
    %1504 = vmatmul.mubr.f32.gmra.mrb[0].mxu0 %v1503
    %v1505 = vpop.f32.mrb[0].mxu0
    %v1506 = vadd.f32 %v1197, %v1505
    %v1507 = vpop.f32.mrb[0].mxu0
    %1508 = vmatprep.mubr.f32.mxu0 0.0
    %v1509 = vand.u32 %v310, 4294901760
    %v1510 = vsub.f32 %v310, %v1509
    %v1511 = vand.u32 %v1510, 4294901760
    %1512 = vmatmul.mubr.f32.gmra.mrb[0].mxu0 %v1511
    %v1513 = vpop.f32.mrb[0].mxu0
    %v1514 = vadd.f32 %v1204, %v1513
    %v1515 = vpop.f32.mrb[0].mxu0
    %1516 = vmatprep.mubr.f32.mxu0 0.0
    %v1517 = vand.u32 %v313, 4294901760
    %v1518 = vsub.f32 %v313, %v1517
    %v1519 = vand.u32 %v1518, 4294901760
    %1520 = vmatmul.mubr.f32.gmra.mrb[0].mxu0 %v1519
    %v1521 = vpop.f32.mrb[0].mxu0
    %v1522 = vadd.f32 %v1211, %v1521
    %v1523 = vpop.f32.mrb[0].mxu0
    %1524 = vmatprep.mubr.f32.mxu0 0.0
    %v1525 = vand.u32 %v316, 4294901760
    %v1526 = vsub.f32 %v316, %v1525
    %v1527 = vand.u32 %v1526, 4294901760
    %1528 = vmatmul.mubr.f32.gmra.mrb[0].mxu0 %v1527
    %v1529 = vpop.f32.mrb[0].mxu0
    %v1530 = vadd.f32 %v1218, %v1529
    %v1531 = vpop.f32.mrb[0].mxu0
    %1532 = vmatprep.mubr.f32.mxu0 0.0
    %v1533 = vand.u32 %v319, 4294901760
    %v1534 = vsub.f32 %v319, %v1533
    %v1535 = vand.u32 %v1534, 4294901760
    %1536 = vmatmul.mubr.f32.gmra.mrb[0].mxu0 %v1535
    %v1537 = vpop.f32.mrb[0].mxu0
    %v1538 = vadd.f32 %v1225, %v1537
    %v1539 = vpop.f32.mrb[0].mxu0
    %1540 = vmatprep.mubr.f32.mxu0 0.0
    %v1541 = vand.u32 %v322, 4294901760
    %v1542 = vsub.f32 %v322, %v1541
    %v1543 = vand.u32 %v1542, 4294901760
    %1544 = vmatmul.mubr.f32.gmra.mrb[0].mxu0 %v1543
    %v1545 = vpop.f32.mrb[0].mxu0
    %v1546 = vadd.f32 %v1232, %v1545
    %v1547 = vpop.f32.mrb[0].mxu0
    %1548 = vmatprep.mubr.f32.mxu0 0.0
    %v1549 = vand.u32 %v325, 4294901760
    %v1550 = vsub.f32 %v325, %v1549
    %v1551 = vand.u32 %v1550, 4294901760
    %1552 = vmatmul.mubr.f32.gmra.mrb[0].mxu0 %v1551
    %v1553 = vpop.f32.mrb[0].mxu0
    %v1554 = vadd.f32 %v1239, %v1553
    %v1555 = vpop.f32.mrb[0].mxu0
    %1556 = vmatprep.mubr.f32.mxu0 0.0
    %v1557 = vand.u32 %v328, 4294901760
    %v1558 = vsub.f32 %v328, %v1557
    %v1559 = vand.u32 %v1558, 4294901760
    %1560 = vmatmul.mubr.f32.gmra.mrb[0].mxu0 %v1559
    %v1561 = vpop.f32.mrb[0].mxu0
    %v1562 = vadd.f32 %v1246, %v1561
    %v1563 = vpop.f32.mrb[0].mxu0
    %1564 = vmatprep.mubr.f32.mxu0 0.0
    %v1565 = vand.u32 %v331, 4294901760
    %v1566 = vsub.f32 %v331, %v1565
    %v1567 = vand.u32 %v1566, 4294901760
    %1568 = vmatmul.mubr.f32.gmra.mrb[0].mxu0 %v1567
    %v1569 = vpop.f32.mrb[0].mxu0
    %v1570 = vadd.f32 %v1253, %v1569
    %v1571 = vpop.f32.mrb[0].mxu0
    %1572 = vmatprep.mubr.f32.mxu0 0.0
    %v1573 = vand.u32 %v334, 4294901760
    %v1574 = vsub.f32 %v334, %v1573
    %v1575 = vand.u32 %v1574, 4294901760
    %1576 = vmatmul.mubr.f32.gmra.mrb[0].mxu0 %v1575
    %v1577 = vpop.f32.mrb[0].mxu0
    %v1578 = vadd.f32 %v1260, %v1577
    %v1579 = vpop.f32.mrb[0].mxu0
    %1580 = vmatprep.mubr.f32.mxu0 0.0
    %v1581 = vand.u32 %v337, 4294901760
    %v1582 = vsub.f32 %v337, %v1581
    %v1583 = vand.u32 %v1582, 4294901760
    %1584 = vmatmul.mubr.f32.gmra.mrb[0].mxu0 %v1583
    %v1585 = vpop.f32.mrb[0].mxu0
    %v1586 = vadd.f32 %v1267, %v1585
    %v1587 = vpop.f32.mrb[0].mxu0
    %1588 = vmatprep.mubr.f32.mxu0 0.0
    %v1589 = vand.u32 %v340, 4294901760
    %v1590 = vsub.f32 %v340, %v1589
    %v1591 = vand.u32 %v1590, 4294901760
    %1592 = vmatmul.mubr.f32.gmra.mrb[0].mxu0 %v1591
    %v1593 = vpop.f32.mrb[0].mxu0
    %v1594 = vadd.f32 %v1274, %v1593
    %v1595 = vpop.f32.mrb[0].mxu0
    %1596 = vmatprep.mubr.f32.mxu0 0.0
    %v1597 = vand.u32 %v343, 4294901760
    %v1598 = vsub.f32 %v343, %v1597
    %v1599 = vand.u32 %v1598, 4294901760
    %1600 = vmatmul.mubr.f32.gmra.mrb[0].mxu0 %v1599
    %v1601 = vpop.f32.mrb[0].mxu0
    %v1602 = vadd.f32 %v1281, %v1601
    %v1603 = vpop.f32.mrb[0].mxu0
    %1604 = vmatprep.mubr.f32.mxu0 0.0
    %v1605 = vand.u32 %v346, 4294901760
    %v1606 = vsub.f32 %v346, %v1605
    %v1607 = vand.u32 %v1606, 4294901760
    %1608 = vmatmul.mubr.f32.gmra.mrb[0].mxu0 %v1607
    %v1609 = vpop.f32.mrb[0].mxu0
    %v1610 = vadd.f32 %v1288, %v1609
    %v1611 = vpop.f32.mrb[0].mxu0
    %1612 = vmatprep.mubr.f32.mxu0 0.0
    %v1613 = vand.u32 %v349, 4294901760
    %v1614 = vsub.f32 %v349, %v1613
    %v1615 = vand.u32 %v1614, 4294901760
    %1616 = vmatmul.mubr.f32.gmra.mrb[0].mxu0 %v1615
    %v1617 = vpop.f32.mrb[0].mxu0
    %v1618 = vadd.f32 %v1295, %v1617
    %v1619 = vpop.f32.mrb[0].mxu0
    %1620 = vdwg.mxu0
    %1621 = vmatprep.subr.mxu0 0.0
    %v1622 = vand.u32 %v28, 4294901760
    %v1623 = vsub.f32 %v28, %v1622
    %v1624 = vand.u32 %v1623, 4294901760
    %1625 = vmatpush1.msra.mxu0 %v1624
    %1626 = vmatprep.subr.mxu0 0.0
    %v1627 = vand.u32 %v29, 4294901760
    %v1628 = vsub.f32 %v29, %v1627
    %v1629 = vand.u32 %v1628, 4294901760
    %1630 = vmatpush1.msra.mxu0 %v1629
    %1631 = vmatprep.subr.mxu0 0.0
    %1632 = vmatpush1.msra.mxu0 0.0
    %1633 = vmatprep.subr.mxu0 0.0
    %1634 = vmatpush1.msra.mxu0 0.0
    %1635 = vmatprep.subr.mxu0 0.0
    %1636 = vmatpush1.msra.mxu0 0.0
    %1637 = vmatprep.subr.mxu0 0.0
    %1638 = vmatpush1.msra.mxu0 0.0
    %1639 = vmatprep.subr.mxu0 0.0
    %1640 = vmatpush1.msra.mxu0 0.0
    %1641 = vmatprep.subr.mxu0 0.0
    %1642 = vmatpush1.msra.mxu0 0.0
    %1643 = vmatprep.subr.mxu0 0.0
    %1644 = vmatpush1.msra.mxu0 0.0
    %1645 = vmatprep.subr.mxu0 0.0
    %1646 = vmatpush1.msra.mxu0 0.0
    %1647 = vmatprep.subr.mxu0 0.0
    %1648 = vmatpush1.msra.mxu0 0.0
    %1649 = vmatprep.subr.mxu0 0.0
    %1650 = vmatpush1.msra.mxu0 0.0
    %1651 = vmatprep.subr.mxu0 0.0
    %1652 = vmatpush1.msra.mxu0 0.0
    %1653 = vmatprep.subr.mxu0 0.0
    %1654 = vmatpush1.msra.mxu0 0.0
    %1655 = vmatprep.subr.mxu0 0.0
    %1656 = vmatpush1.msra.mxu0 0.0
    %1657 = vmatprep.subr.mxu0 0.0
    %1658 = vmatpush1.msra.mxu0 0.0
    %1659 = vmatprep.subr.mxu0 0.0
    %1660 = vmatpush1.msra.mxu0 0.0
    %1661 = vmatprep.subr.mxu0 0.0
    %1662 = vmatpush1.msra.mxu0 0.0
    %1663 = vmatprep.subr.mxu0 0.0
    %1664 = vmatpush1.msra.mxu0 0.0
    %1665 = vmatprep.subr.mxu0 0.0
    %1666 = vmatpush1.msra.mxu0 0.0
    %1667 = vmatprep.subr.mxu0 0.0
    %1668 = vmatpush1.msra.mxu0 0.0
    %1669 = vmatprep.subr.mxu0 0.0
    %1670 = vmatpush1.msra.mxu0 0.0
    %1671 = vmatprep.subr.mxu0 0.0
    %1672 = vmatpush1.msra.mxu0 0.0
    %1673 = vmatprep.subr.mxu0 0.0
    %1674 = vmatpush1.msra.mxu0 0.0
    %1675 = vmatprep.subr.mxu0 0.0
    %1676 = vmatpush1.msra.mxu0 0.0
    %1677 = vmatprep.subr.mxu0 0.0
    %1678 = vmatpush1.msra.mxu0 0.0
    %1679 = vmatprep.subr.mxu0 0.0
    %1680 = vmatpush1.msra.mxu0 0.0
    %1681 = vmatprep.subr.mxu0 0.0
    %1682 = vmatpush1.msra.mxu0 0.0
    %1683 = vmatprep.subr.mxu0 0.0
    %1684 = vmatpush1.msra.mxu0 0.0
    %1685 = vmatprep.subr.mxu0 0.0
    %1686 = vmatpush1.msra.mxu0 0.0
    %1687 = vmatprep.subr.mxu0 0.0
    %1688 = vmatpush1.msra.mxu0 0.0
    %1689 = vmatprep.subr.mxu0 0.0
    %1690 = vmatpush1.msra.mxu0 0.0
    %1691 = vmatprep.mubr.f32.mxu0 0.0
    %v1692 = vand.u32 %v256, 4294901760
    %1693 = vmatmul.mubr.f32.gmra.mrb[0].mxu0 %v1692
    %v1694 = vpop.f32.mrb[0].mxu0
    %v1695 = vadd.f32 %v1370, %v1694
    %v1696 = vpop.f32.mrb[0].mxu0
    %1697 = vmatprep.mubr.f32.mxu0 0.0
    %v1698 = vand.u32 %v259, 4294901760
    %1699 = vmatmul.mubr.f32.gmra.mrb[0].mxu0 %v1698
    %v1700 = vpop.f32.mrb[0].mxu0
    %v1701 = vadd.f32 %v1378, %v1700
    %v1702 = vpop.f32.mrb[0].mxu0
    %1703 = vmatprep.mubr.f32.mxu0 0.0
    %v1704 = vand.u32 %v262, 4294901760
    %1705 = vmatmul.mubr.f32.gmra.mrb[0].mxu0 %v1704
    %v1706 = vpop.f32.mrb[0].mxu0
    %v1707 = vadd.f32 %v1386, %v1706
    %v1708 = vpop.f32.mrb[0].mxu0
    %1709 = vmatprep.mubr.f32.mxu0 0.0
    %v1710 = vand.u32 %v265, 4294901760
    %1711 = vmatmul.mubr.f32.gmra.mrb[0].mxu0 %v1710
    %v1712 = vpop.f32.mrb[0].mxu0
    %v1713 = vadd.f32 %v1394, %v1712
    %v1714 = vpop.f32.mrb[0].mxu0
    %1715 = vmatprep.mubr.f32.mxu0 0.0
    %v1716 = vand.u32 %v268, 4294901760
    %1717 = vmatmul.mubr.f32.gmra.mrb[0].mxu0 %v1716
    %v1718 = vpop.f32.mrb[0].mxu0
    %v1719 = vadd.f32 %v1402, %v1718
    %v1720 = vpop.f32.mrb[0].mxu0
    %1721 = vmatprep.mubr.f32.mxu0 0.0
    %v1722 = vand.u32 %v271, 4294901760
    %1723 = vmatmul.mubr.f32.gmra.mrb[0].mxu0 %v1722
    %v1724 = vpop.f32.mrb[0].mxu0
    %v1725 = vadd.f32 %v1410, %v1724
    %v1726 = vpop.f32.mrb[0].mxu0
    %1727 = vmatprep.mubr.f32.mxu0 0.0
    %v1728 = vand.u32 %v274, 4294901760
    %1729 = vmatmul.mubr.f32.gmra.mrb[0].mxu0 %v1728
    %v1730 = vpop.f32.mrb[0].mxu0
    %v1731 = vadd.f32 %v1418, %v1730
    %v1732 = vpop.f32.mrb[0].mxu0
    %1733 = vmatprep.mubr.f32.mxu0 0.0
    %v1734 = vand.u32 %v277, 4294901760
    %1735 = vmatmul.mubr.f32.gmra.mrb[0].mxu0 %v1734
    %v1736 = vpop.f32.mrb[0].mxu0
    %v1737 = vadd.f32 %v1426, %v1736
    %v1738 = vpop.f32.mrb[0].mxu0
    %1739 = vmatprep.mubr.f32.mxu0 0.0
    %v1740 = vand.u32 %v280, 4294901760
    %1741 = vmatmul.mubr.f32.gmra.mrb[0].mxu0 %v1740
    %v1742 = vpop.f32.mrb[0].mxu0
    %v1743 = vadd.f32 %v1434, %v1742
    %v1744 = vpop.f32.mrb[0].mxu0
    %1745 = vmatprep.mubr.f32.mxu0 0.0
    %v1746 = vand.u32 %v283, 4294901760
    %1747 = vmatmul.mubr.f32.gmra.mrb[0].mxu0 %v1746
    %v1748 = vpop.f32.mrb[0].mxu0
    %v1749 = vadd.f32 %v1442, %v1748
    %v1750 = vpop.f32.mrb[0].mxu0
    %1751 = vmatprep.mubr.f32.mxu0 0.0
    %v1752 = vand.u32 %v286, 4294901760
    %1753 = vmatmul.mubr.f32.gmra.mrb[0].mxu0 %v1752
    %v1754 = vpop.f32.mrb[0].mxu0
    %v1755 = vadd.f32 %v1450, %v1754
    %v1756 = vpop.f32.mrb[0].mxu0
    %1757 = vmatprep.mubr.f32.mxu0 0.0
    %v1758 = vand.u32 %v289, 4294901760
    %1759 = vmatmul.mubr.f32.gmra.mrb[0].mxu0 %v1758
    %v1760 = vpop.f32.mrb[0].mxu0
    %v1761 = vadd.f32 %v1458, %v1760
    %v1762 = vpop.f32.mrb[0].mxu0
    %1763 = vmatprep.mubr.f32.mxu0 0.0
    %v1764 = vand.u32 %v292, 4294901760
    %1765 = vmatmul.mubr.f32.gmra.mrb[0].mxu0 %v1764
    %v1766 = vpop.f32.mrb[0].mxu0
    %v1767 = vadd.f32 %v1466, %v1766
    %v1768 = vpop.f32.mrb[0].mxu0
    %1769 = vmatprep.mubr.f32.mxu0 0.0
    %v1770 = vand.u32 %v295, 4294901760
    %1771 = vmatmul.mubr.f32.gmra.mrb[0].mxu0 %v1770
    %v1772 = vpop.f32.mrb[0].mxu0
    %v1773 = vadd.f32 %v1474, %v1772
    %v1774 = vpop.f32.mrb[0].mxu0
    %1775 = vmatprep.mubr.f32.mxu0 0.0
    %v1776 = vand.u32 %v298, 4294901760
    %1777 = vmatmul.mubr.f32.gmra.mrb[0].mxu0 %v1776
    %v1778 = vpop.f32.mrb[0].mxu0
    %v1779 = vadd.f32 %v1482, %v1778
    %v1780 = vpop.f32.mrb[0].mxu0
    %1781 = vmatprep.mubr.f32.mxu0 0.0
    %v1782 = vand.u32 %v301, 4294901760
    %1783 = vmatmul.mubr.f32.gmra.mrb[0].mxu0 %v1782
    %v1784 = vpop.f32.mrb[0].mxu0
    %v1785 = vadd.f32 %v1490, %v1784
    %v1786 = vpop.f32.mrb[0].mxu0
    %1787 = vmatprep.mubr.f32.mxu0 0.0
    %v1788 = vand.u32 %v304, 4294901760
    %1789 = vmatmul.mubr.f32.gmra.mrb[0].mxu0 %v1788
    %v1790 = vpop.f32.mrb[0].mxu0
    %v1791 = vadd.f32 %v1498, %v1790
    %v1792 = vpop.f32.mrb[0].mxu0
    %1793 = vmatprep.mubr.f32.mxu0 0.0
    %v1794 = vand.u32 %v307, 4294901760
    %1795 = vmatmul.mubr.f32.gmra.mrb[0].mxu0 %v1794
    %v1796 = vpop.f32.mrb[0].mxu0
    %v1797 = vadd.f32 %v1506, %v1796
    %v1798 = vpop.f32.mrb[0].mxu0
    %1799 = vmatprep.mubr.f32.mxu0 0.0
    %v1800 = vand.u32 %v310, 4294901760
    %1801 = vmatmul.mubr.f32.gmra.mrb[0].mxu0 %v1800
    %v1802 = vpop.f32.mrb[0].mxu0
    %v1803 = vadd.f32 %v1514, %v1802
    %v1804 = vpop.f32.mrb[0].mxu0
    %1805 = vmatprep.mubr.f32.mxu0 0.0
    %v1806 = vand.u32 %v313, 4294901760
    %1807 = vmatmul.mubr.f32.gmra.mrb[0].mxu0 %v1806
    %v1808 = vpop.f32.mrb[0].mxu0
    %v1809 = vadd.f32 %v1522, %v1808
    %v1810 = vpop.f32.mrb[0].mxu0
    %1811 = vmatprep.mubr.f32.mxu0 0.0
    %v1812 = vand.u32 %v316, 4294901760
    %1813 = vmatmul.mubr.f32.gmra.mrb[0].mxu0 %v1812
    %v1814 = vpop.f32.mrb[0].mxu0
    %v1815 = vadd.f32 %v1530, %v1814
    %v1816 = vpop.f32.mrb[0].mxu0
    %1817 = vmatprep.mubr.f32.mxu0 0.0
    %v1818 = vand.u32 %v319, 4294901760
    %1819 = vmatmul.mubr.f32.gmra.mrb[0].mxu0 %v1818
    %v1820 = vpop.f32.mrb[0].mxu0
    %v1821 = vadd.f32 %v1538, %v1820
    %v1822 = vpop.f32.mrb[0].mxu0
    %1823 = vmatprep.mubr.f32.mxu0 0.0
    %v1824 = vand.u32 %v322, 4294901760
    %1825 = vmatmul.mubr.f32.gmra.mrb[0].mxu0 %v1824
    %v1826 = vpop.f32.mrb[0].mxu0
    %v1827 = vadd.f32 %v1546, %v1826
    %v1828 = vpop.f32.mrb[0].mxu0
    %1829 = vmatprep.mubr.f32.mxu0 0.0
    %v1830 = vand.u32 %v325, 4294901760
    %1831 = vmatmul.mubr.f32.gmra.mrb[0].mxu0 %v1830
    %v1832 = vpop.f32.mrb[0].mxu0
    %v1833 = vadd.f32 %v1554, %v1832
    %v1834 = vpop.f32.mrb[0].mxu0
    %1835 = vmatprep.mubr.f32.mxu0 0.0
    %v1836 = vand.u32 %v328, 4294901760
    %1837 = vmatmul.mubr.f32.gmra.mrb[0].mxu0 %v1836
    %v1838 = vpop.f32.mrb[0].mxu0
    %v1839 = vadd.f32 %v1562, %v1838
    %v1840 = vpop.f32.mrb[0].mxu0
    %1841 = vmatprep.mubr.f32.mxu0 0.0
    %v1842 = vand.u32 %v331, 4294901760
    %1843 = vmatmul.mubr.f32.gmra.mrb[0].mxu0 %v1842
    %v1844 = vpop.f32.mrb[0].mxu0
    %v1845 = vadd.f32 %v1570, %v1844
    %v1846 = vpop.f32.mrb[0].mxu0
    %1847 = vmatprep.mubr.f32.mxu0 0.0
    %v1848 = vand.u32 %v334, 4294901760
    %1849 = vmatmul.mubr.f32.gmra.mrb[0].mxu0 %v1848
    %v1850 = vpop.f32.mrb[0].mxu0
    %v1851 = vadd.f32 %v1578, %v1850
    %v1852 = vpop.f32.mrb[0].mxu0
    %1853 = vmatprep.mubr.f32.mxu0 0.0
    %v1854 = vand.u32 %v337, 4294901760
    %1855 = vmatmul.mubr.f32.gmra.mrb[0].mxu0 %v1854
    %v1856 = vpop.f32.mrb[0].mxu0
    %v1857 = vadd.f32 %v1586, %v1856
    %v1858 = vpop.f32.mrb[0].mxu0
    %1859 = vmatprep.mubr.f32.mxu0 0.0
    %v1860 = vand.u32 %v340, 4294901760
    %1861 = vmatmul.mubr.f32.gmra.mrb[0].mxu0 %v1860
    %v1862 = vpop.f32.mrb[0].mxu0
    %v1863 = vadd.f32 %v1594, %v1862
    %v1864 = vpop.f32.mrb[0].mxu0
    %1865 = vmatprep.mubr.f32.mxu0 0.0
    %v1866 = vand.u32 %v343, 4294901760
    %1867 = vmatmul.mubr.f32.gmra.mrb[0].mxu0 %v1866
    %v1868 = vpop.f32.mrb[0].mxu0
    %v1869 = vadd.f32 %v1602, %v1868
    %v1870 = vpop.f32.mrb[0].mxu0
    %1871 = vmatprep.mubr.f32.mxu0 0.0
    %v1872 = vand.u32 %v346, 4294901760
    %1873 = vmatmul.mubr.f32.gmra.mrb[0].mxu0 %v1872
    %v1874 = vpop.f32.mrb[0].mxu0
    %v1875 = vadd.f32 %v1610, %v1874
    %v1876 = vpop.f32.mrb[0].mxu0
    %1877 = vmatprep.mubr.f32.mxu0 0.0
    %v1878 = vand.u32 %v349, 4294901760
    %1879 = vmatmul.mubr.f32.gmra.mrb[0].mxu0 %v1878
    %v1880 = vpop.f32.mrb[0].mxu0
    %v1881 = vadd.f32 %v1618, %v1880
    %v1882 = vpop.f32.mrb[0].mxu0
    %1883 = vdwg.mxu0
    %1884 = vmatprep.subr.mxu0 0.0
    %v1885 = vand.u32 %v28, 4294901760
    %1886 = vmatpush1.msra.mxu0 %v1885
    %1887 = vmatprep.subr.mxu0 0.0
    %v1888 = vand.u32 %v29, 4294901760
    %1889 = vmatpush1.msra.mxu0 %v1888
    %1890 = vmatprep.subr.mxu0 0.0
    %1891 = vmatpush1.msra.mxu0 0.0
    %1892 = vmatprep.subr.mxu0 0.0
    %1893 = vmatpush1.msra.mxu0 0.0
    %1894 = vmatprep.subr.mxu0 0.0
    %1895 = vmatpush1.msra.mxu0 0.0
    %1896 = vmatprep.subr.mxu0 0.0
    %1897 = vmatpush1.msra.mxu0 0.0
    %1898 = vmatprep.subr.mxu0 0.0
    %1899 = vmatpush1.msra.mxu0 0.0
    %1900 = vmatprep.subr.mxu0 0.0
    %1901 = vmatpush1.msra.mxu0 0.0
    %1902 = vmatprep.subr.mxu0 0.0
    %1903 = vmatpush1.msra.mxu0 0.0
    %1904 = vmatprep.subr.mxu0 0.0
    %1905 = vmatpush1.msra.mxu0 0.0
    %1906 = vmatprep.subr.mxu0 0.0
    %1907 = vmatpush1.msra.mxu0 0.0
    %1908 = vmatprep.subr.mxu0 0.0
    %1909 = vmatpush1.msra.mxu0 0.0
    %1910 = vmatprep.subr.mxu0 0.0
    %1911 = vmatpush1.msra.mxu0 0.0
    %1912 = vmatprep.subr.mxu0 0.0
    %1913 = vmatpush1.msra.mxu0 0.0
    %1914 = vmatprep.subr.mxu0 0.0
    %1915 = vmatpush1.msra.mxu0 0.0
    %1916 = vmatprep.subr.mxu0 0.0
    %1917 = vmatpush1.msra.mxu0 0.0
    %1918 = vmatprep.subr.mxu0 0.0
    %1919 = vmatpush1.msra.mxu0 0.0
    %1920 = vmatprep.subr.mxu0 0.0
    %1921 = vmatpush1.msra.mxu0 0.0
    %1922 = vmatprep.subr.mxu0 0.0
    %1923 = vmatpush1.msra.mxu0 0.0
    %1924 = vmatprep.subr.mxu0 0.0
    %1925 = vmatpush1.msra.mxu0 0.0
    %1926 = vmatprep.subr.mxu0 0.0
    %1927 = vmatpush1.msra.mxu0 0.0
    %1928 = vmatprep.subr.mxu0 0.0
    %1929 = vmatpush1.msra.mxu0 0.0
    %1930 = vmatprep.subr.mxu0 0.0
    %1931 = vmatpush1.msra.mxu0 0.0
    %1932 = vmatprep.subr.mxu0 0.0
    %1933 = vmatpush1.msra.mxu0 0.0
    %1934 = vmatprep.subr.mxu0 0.0
    %1935 = vmatpush1.msra.mxu0 0.0
    %1936 = vmatprep.subr.mxu0 0.0
    %1937 = vmatpush1.msra.mxu0 0.0
    %1938 = vmatprep.subr.mxu0 0.0
    %1939 = vmatpush1.msra.mxu0 0.0
    %1940 = vmatprep.subr.mxu0 0.0
    %1941 = vmatpush1.msra.mxu0 0.0
    %1942 = vmatprep.subr.mxu0 0.0
    %1943 = vmatpush1.msra.mxu0 0.0
    %1944 = vmatprep.subr.mxu0 0.0
    %1945 = vmatpush1.msra.mxu0 0.0
    %1946 = vmatprep.subr.mxu0 0.0
    %1947 = vmatpush1.msra.mxu0 0.0
    %1948 = vmatprep.subr.mxu0 0.0
    %1949 = vmatpush1.msra.mxu0 0.0
    %1950 = vmatprep.mubr.f32.mxu0 0.0
    %v1951 = vand.u32 %v256, 4294901760
    %1952 = vmatmul.mubr.f32.gmra.mrb[0].mxu0 %v1951
    %v1953 = vpop.f32.mrb[0].mxu0
    %v1954 = vadd.f32 %v1695, %v1953
    %v1955 = vpop.f32.mrb[0].mxu0
    %1956 = vmatprep.mubr.f32.mxu0 0.0
    %v1957 = vand.u32 %v259, 4294901760
    %1958 = vmatmul.mubr.f32.gmra.mrb[0].mxu0 %v1957
    %v1959 = vpop.f32.mrb[0].mxu0
    %v1960 = vadd.f32 %v1701, %v1959
    %v1961 = vpop.f32.mrb[0].mxu0
    %1962 = vmatprep.mubr.f32.mxu0 0.0
    %v1963 = vand.u32 %v262, 4294901760
    %1964 = vmatmul.mubr.f32.gmra.mrb[0].mxu0 %v1963
    %v1965 = vpop.f32.mrb[0].mxu0
    %v1966 = vadd.f32 %v1707, %v1965
    %v1967 = vpop.f32.mrb[0].mxu0
    %1968 = vmatprep.mubr.f32.mxu0 0.0
    %v1969 = vand.u32 %v265, 4294901760
    %1970 = vmatmul.mubr.f32.gmra.mrb[0].mxu0 %v1969
    %v1971 = vpop.f32.mrb[0].mxu0
    %v1972 = vadd.f32 %v1713, %v1971
    %v1973 = vpop.f32.mrb[0].mxu0
    %1974 = vmatprep.mubr.f32.mxu0 0.0
    %v1975 = vand.u32 %v268, 4294901760
    %1976 = vmatmul.mubr.f32.gmra.mrb[0].mxu0 %v1975
    %v1977 = vpop.f32.mrb[0].mxu0
    %v1978 = vadd.f32 %v1719, %v1977
    %v1979 = vpop.f32.mrb[0].mxu0
    %1980 = vmatprep.mubr.f32.mxu0 0.0
    %v1981 = vand.u32 %v271, 4294901760
    %1982 = vmatmul.mubr.f32.gmra.mrb[0].mxu0 %v1981
    %v1983 = vpop.f32.mrb[0].mxu0
    %v1984 = vadd.f32 %v1725, %v1983
    %v1985 = vpop.f32.mrb[0].mxu0
    %1986 = vmatprep.mubr.f32.mxu0 0.0
    %v1987 = vand.u32 %v274, 4294901760
    %1988 = vmatmul.mubr.f32.gmra.mrb[0].mxu0 %v1987
    %v1989 = vpop.f32.mrb[0].mxu0
    %v1990 = vadd.f32 %v1731, %v1989
    %v1991 = vpop.f32.mrb[0].mxu0
    %1992 = vmatprep.mubr.f32.mxu0 0.0
    %v1993 = vand.u32 %v277, 4294901760
    %1994 = vmatmul.mubr.f32.gmra.mrb[0].mxu0 %v1993
    %v1995 = vpop.f32.mrb[0].mxu0
    %v1996 = vadd.f32 %v1737, %v1995
    %v1997 = vpop.f32.mrb[0].mxu0
    %1998 = vmatprep.mubr.f32.mxu0 0.0
    %v1999 = vand.u32 %v280, 4294901760
    %2000 = vmatmul.mubr.f32.gmra.mrb[0].mxu0 %v1999
    %v2001 = vpop.f32.mrb[0].mxu0
    %v2002 = vadd.f32 %v1743, %v2001
    %v2003 = vpop.f32.mrb[0].mxu0
    %2004 = vmatprep.mubr.f32.mxu0 0.0
    %v2005 = vand.u32 %v283, 4294901760
    %2006 = vmatmul.mubr.f32.gmra.mrb[0].mxu0 %v2005
    %v2007 = vpop.f32.mrb[0].mxu0
    %v2008 = vadd.f32 %v1749, %v2007
    %v2009 = vpop.f32.mrb[0].mxu0
    %2010 = vmatprep.mubr.f32.mxu0 0.0
    %v2011 = vand.u32 %v286, 4294901760
    %2012 = vmatmul.mubr.f32.gmra.mrb[0].mxu0 %v2011
    %v2013 = vpop.f32.mrb[0].mxu0
    %v2014 = vadd.f32 %v1755, %v2013
    %v2015 = vpop.f32.mrb[0].mxu0
    %2016 = vmatprep.mubr.f32.mxu0 0.0
    %v2017 = vand.u32 %v289, 4294901760
    %2018 = vmatmul.mubr.f32.gmra.mrb[0].mxu0 %v2017
    %v2019 = vpop.f32.mrb[0].mxu0
    %v2020 = vadd.f32 %v1761, %v2019
    %v2021 = vpop.f32.mrb[0].mxu0
    %2022 = vmatprep.mubr.f32.mxu0 0.0
    %v2023 = vand.u32 %v292, 4294901760
    %2024 = vmatmul.mubr.f32.gmra.mrb[0].mxu0 %v2023
    %v2025 = vpop.f32.mrb[0].mxu0
    %v2026 = vadd.f32 %v1767, %v2025
    %v2027 = vpop.f32.mrb[0].mxu0
    %2028 = vmatprep.mubr.f32.mxu0 0.0
    %v2029 = vand.u32 %v295, 4294901760
    %2030 = vmatmul.mubr.f32.gmra.mrb[0].mxu0 %v2029
    %v2031 = vpop.f32.mrb[0].mxu0
    %v2032 = vadd.f32 %v1773, %v2031
    %v2033 = vpop.f32.mrb[0].mxu0
    %2034 = vmatprep.mubr.f32.mxu0 0.0
    %v2035 = vand.u32 %v298, 4294901760
    %2036 = vmatmul.mubr.f32.gmra.mrb[0].mxu0 %v2035
    %v2037 = vpop.f32.mrb[0].mxu0
    %v2038 = vadd.f32 %v1779, %v2037
    %v2039 = vpop.f32.mrb[0].mxu0
    %2040 = vmatprep.mubr.f32.mxu0 0.0
    %v2041 = vand.u32 %v301, 4294901760
    %2042 = vmatmul.mubr.f32.gmra.mrb[0].mxu0 %v2041
    %v2043 = vpop.f32.mrb[0].mxu0
    %v2044 = vadd.f32 %v1785, %v2043
    %v2045 = vpop.f32.mrb[0].mxu0
    %2046 = vmatprep.mubr.f32.mxu0 0.0
    %v2047 = vand.u32 %v304, 4294901760
    %2048 = vmatmul.mubr.f32.gmra.mrb[0].mxu0 %v2047
    %v2049 = vpop.f32.mrb[0].mxu0
    %v2050 = vadd.f32 %v1791, %v2049
    %v2051 = vpop.f32.mrb[0].mxu0
    %2052 = vmatprep.mubr.f32.mxu0 0.0
    %v2053 = vand.u32 %v307, 4294901760
    %2054 = vmatmul.mubr.f32.gmra.mrb[0].mxu0 %v2053
    %v2055 = vpop.f32.mrb[0].mxu0
    %v2056 = vadd.f32 %v1797, %v2055
    %v2057 = vpop.f32.mrb[0].mxu0
    %2058 = vmatprep.mubr.f32.mxu0 0.0
    %v2059 = vand.u32 %v310, 4294901760
    %2060 = vmatmul.mubr.f32.gmra.mrb[0].mxu0 %v2059
    %v2061 = vpop.f32.mrb[0].mxu0
    %v2062 = vadd.f32 %v1803, %v2061
    %v2063 = vpop.f32.mrb[0].mxu0
    %2064 = vmatprep.mubr.f32.mxu0 0.0
    %v2065 = vand.u32 %v313, 4294901760
    %2066 = vmatmul.mubr.f32.gmra.mrb[0].mxu0 %v2065
    %v2067 = vpop.f32.mrb[0].mxu0
    %v2068 = vadd.f32 %v1809, %v2067
    %v2069 = vpop.f32.mrb[0].mxu0
    %2070 = vmatprep.mubr.f32.mxu0 0.0
    %v2071 = vand.u32 %v316, 4294901760
    %2072 = vmatmul.mubr.f32.gmra.mrb[0].mxu0 %v2071
    %v2073 = vpop.f32.mrb[0].mxu0
    %v2074 = vadd.f32 %v1815, %v2073
    %v2075 = vpop.f32.mrb[0].mxu0
    %2076 = vmatprep.mubr.f32.mxu0 0.0
    %v2077 = vand.u32 %v319, 4294901760
    %2078 = vmatmul.mubr.f32.gmra.mrb[0].mxu0 %v2077
    %v2079 = vpop.f32.mrb[0].mxu0
    %v2080 = vadd.f32 %v1821, %v2079
    %v2081 = vpop.f32.mrb[0].mxu0
    %2082 = vmatprep.mubr.f32.mxu0 0.0
    %v2083 = vand.u32 %v322, 4294901760
    %2084 = vmatmul.mubr.f32.gmra.mrb[0].mxu0 %v2083
    %v2085 = vpop.f32.mrb[0].mxu0
    %v2086 = vadd.f32 %v1827, %v2085
    %v2087 = vpop.f32.mrb[0].mxu0
    %2088 = vmatprep.mubr.f32.mxu0 0.0
    %v2089 = vand.u32 %v325, 4294901760
    %2090 = vmatmul.mubr.f32.gmra.mrb[0].mxu0 %v2089
    %v2091 = vpop.f32.mrb[0].mxu0
    %v2092 = vadd.f32 %v1833, %v2091
    %v2093 = vpop.f32.mrb[0].mxu0
    %2094 = vmatprep.mubr.f32.mxu0 0.0
    %v2095 = vand.u32 %v328, 4294901760
    %2096 = vmatmul.mubr.f32.gmra.mrb[0].mxu0 %v2095
    %v2097 = vpop.f32.mrb[0].mxu0
    %v2098 = vadd.f32 %v1839, %v2097
    %v2099 = vpop.f32.mrb[0].mxu0
    %2100 = vmatprep.mubr.f32.mxu0 0.0
    %v2101 = vand.u32 %v331, 4294901760
    %2102 = vmatmul.mubr.f32.gmra.mrb[0].mxu0 %v2101
    %v2103 = vpop.f32.mrb[0].mxu0
    %v2104 = vadd.f32 %v1845, %v2103
    %v2105 = vpop.f32.mrb[0].mxu0
    %2106 = vmatprep.mubr.f32.mxu0 0.0
    %v2107 = vand.u32 %v334, 4294901760
    %2108 = vmatmul.mubr.f32.gmra.mrb[0].mxu0 %v2107
    %v2109 = vpop.f32.mrb[0].mxu0
    %v2110 = vadd.f32 %v1851, %v2109
    %v2111 = vpop.f32.mrb[0].mxu0
    %2112 = vmatprep.mubr.f32.mxu0 0.0
    %v2113 = vand.u32 %v337, 4294901760
    %2114 = vmatmul.mubr.f32.gmra.mrb[0].mxu0 %v2113
    %v2115 = vpop.f32.mrb[0].mxu0
    %v2116 = vadd.f32 %v1857, %v2115
    %v2117 = vpop.f32.mrb[0].mxu0
    %2118 = vmatprep.mubr.f32.mxu0 0.0
    %v2119 = vand.u32 %v340, 4294901760
    %2120 = vmatmul.mubr.f32.gmra.mrb[0].mxu0 %v2119
    %v2121 = vpop.f32.mrb[0].mxu0
    %v2122 = vadd.f32 %v1863, %v2121
    %v2123 = vpop.f32.mrb[0].mxu0
    %2124 = vmatprep.mubr.f32.mxu0 0.0
    %v2125 = vand.u32 %v343, 4294901760
    %2126 = vmatmul.mubr.f32.gmra.mrb[0].mxu0 %v2125
    %v2127 = vpop.f32.mrb[0].mxu0
    %v2128 = vadd.f32 %v1869, %v2127
    %v2129 = vpop.f32.mrb[0].mxu0
    %2130 = vmatprep.mubr.f32.mxu0 0.0
    %v2131 = vand.u32 %v346, 4294901760
    %2132 = vmatmul.mubr.f32.gmra.mrb[0].mxu0 %v2131
    %v2133 = vpop.f32.mrb[0].mxu0
    %v2134 = vadd.f32 %v1875, %v2133
    %v2135 = vpop.f32.mrb[0].mxu0
    %2136 = vmatprep.mubr.f32.mxu0 0.0
    %v2137 = vand.u32 %v349, 4294901760
    %2138 = vmatmul.mubr.f32.gmra.mrb[0].mxu0 %v2137
    %v2139 = vpop.f32.mrb[0].mxu0
    %v2140 = vadd.f32 %v1881, %v2139
    %v2141 = vpop.f32.mrb[0].mxu0
    %2142 = vdwg.mxu0
    %v2143 = vmax.f32 %v1954, 0.0
    %v2144 = vmax.f32 %v1960, 0.0
    %v2145 = vmax.f32 %v1966, 0.0
    %v2146 = vmax.f32 %v1972, 0.0
    %v2147 = vmax.f32 %v1978, 0.0
    %v2148 = vmax.f32 %v1984, 0.0
    %v2149 = vmax.f32 %v1990, 0.0
    %v2150 = vmax.f32 %v1996, 0.0
    %v2151 = vmax.f32 %v2002, 0.0
    %v2152 = vmax.f32 %v2008, 0.0
    %v2153 = vmax.f32 %v2014, 0.0
    %v2154 = vmax.f32 %v2020, 0.0
    %v2155 = vmax.f32 %v2026, 0.0
    %v2156 = vmax.f32 %v2032, 0.0
    %v2157 = vmax.f32 %v2038, 0.0
    %v2158 = vmax.f32 %v2044, 0.0
    %v2159 = vmax.f32 %v2050, 0.0
    %v2160 = vmax.f32 %v2056, 0.0
    %v2161 = vmax.f32 %v2062, 0.0
    %v2162 = vmax.f32 %v2068, 0.0
    %v2163 = vmax.f32 %v2074, 0.0
    %v2164 = vmax.f32 %v2080, 0.0
    %v2165 = vmax.f32 %v2086, 0.0
    %v2166 = vmax.f32 %v2092, 0.0
    %v2167 = vmax.f32 %v2098, 0.0
    %v2168 = vmax.f32 %v2104, 0.0
    %v2169 = vmax.f32 %v2110, 0.0
    %v2170 = vmax.f32 %v2116, 0.0
    %v2171 = vmax.f32 %v2122, 0.0
    %v2172 = vmax.f32 %v2128, 0.0
    %v2173 = vmax.f32 %v2134, 0.0
    %v2174 = vmax.f32 %v2140, 0.0
    %v2175 = vld [vmem:[%s3] sm:$0xff]
    %v2176 = vld [vmem:[%s3 + $0x8] sm:$0xff]
    %v2177 = vld [vmem:[%s3 + $0x10] sm:$0xff]
    %v2178 = vld [vmem:[%s3 + $0x18] sm:$0xff]
    %v2179 = vld [vmem:[%s3 + $0x20] sm:$0xff]
    %v2180 = vld [vmem:[%s3 + $0x28] sm:$0xff]
    %v2181 = vld [vmem:[%s3 + $0x30] sm:$0xff]
    %v2182 = vld [vmem:[%s3 + $0x38] sm:$0xff]
    %v2183 = vld [vmem:[%s3 + $0x40] sm:$0xff]
    %v2184 = vld [vmem:[%s3 + $0x48] sm:$0xff]
    %v2185 = vld [vmem:[%s3 + $0x50] sm:$0xff]
    %v2186 = vld [vmem:[%s3 + $0x58] sm:$0xff]
    %v2187 = vld [vmem:[%s3 + $0x60] sm:$0xff]
    %v2188 = vld [vmem:[%s3 + $0x68] sm:$0xff]
    %v2189 = vld [vmem:[%s3 + $0x70] sm:$0xff]
    %v2190 = vld [vmem:[%s3 + $0x78] sm:$0xff]
    %v2191 = vld [vmem:[%s3 + $0x80] sm:$0xff]
    %v2192 = vld [vmem:[%s3 + $0x88] sm:$0xff]
    %v2193 = vld [vmem:[%s3 + $0x90] sm:$0xff]
    %v2194 = vld [vmem:[%s3 + $0x98] sm:$0xff]
    %v2195 = vld [vmem:[%s3 + $0xa0] sm:$0xff]
    %v2196 = vld [vmem:[%s3 + $0xa8] sm:$0xff]
    %v2197 = vld [vmem:[%s3 + $0xb0] sm:$0xff]
    %v2198 = vld [vmem:[%s3 + $0xb8] sm:$0xff]
    %v2199 = vld [vmem:[%s3 + $0xc0] sm:$0xff]
    %v2200 = vld [vmem:[%s3 + $0xc8] sm:$0xff]
    %v2201 = vld [vmem:[%s3 + $0xd0] sm:$0xff]
    %v2202 = vld [vmem:[%s3 + $0xd8] sm:$0xff]
    %v2203 = vld [vmem:[%s3 + $0xe0] sm:$0xff]
    %v2204 = vld [vmem:[%s3 + $0xe8] sm:$0xff]
    %v2205 = vld [vmem:[%s3 + $0xf0] sm:$0xff]
    %v2206 = vld [vmem:[%s3 + $0xf8] sm:$0xff]
    %v2207 = vld [vmem:[%s3 + $0x100] sm:$0xff]
    %v2208 = vld [vmem:[%s3 + $0x108] sm:$0xff]
    %v2209 = vld [vmem:[%s3 + $0x110] sm:$0xff]
    %v2210 = vld [vmem:[%s3 + $0x118] sm:$0xff]
    %v2211 = vld [vmem:[%s3 + $0x120] sm:$0xff]
    %v2212 = vld [vmem:[%s3 + $0x128] sm:$0xff]
    %v2213 = vld [vmem:[%s3 + $0x130] sm:$0xff]
    %v2214 = vld [vmem:[%s3 + $0x138] sm:$0xff]
    %v2215 = vld [vmem:[%s3 + $0x140] sm:$0xff]
    %v2216 = vld [vmem:[%s3 + $0x148] sm:$0xff]
    %v2217 = vld [vmem:[%s3 + $0x150] sm:$0xff]
    %v2218 = vld [vmem:[%s3 + $0x158] sm:$0xff]
    %v2219 = vld [vmem:[%s3 + $0x160] sm:$0xff]
    %v2220 = vld [vmem:[%s3 + $0x168] sm:$0xff]
    %v2221 = vld [vmem:[%s3 + $0x170] sm:$0xff]
    %v2222 = vld [vmem:[%s3 + $0x178] sm:$0xff]
    %v2223 = vld [vmem:[%s3 + $0x180] sm:$0xff]
    %v2224 = vld [vmem:[%s3 + $0x188] sm:$0xff]
    %v2225 = vld [vmem:[%s3 + $0x190] sm:$0xff]
    %v2226 = vld [vmem:[%s3 + $0x198] sm:$0xff]
    %v2227 = vld [vmem:[%s3 + $0x1a0] sm:$0xff]
    %v2228 = vld [vmem:[%s3 + $0x1a8] sm:$0xff]
    %v2229 = vld [vmem:[%s3 + $0x1b0] sm:$0xff]
    %v2230 = vld [vmem:[%s3 + $0x1b8] sm:$0xff]
    %v2231 = vld [vmem:[%s3 + $0x1c0] sm:$0xff]
    %v2232 = vld [vmem:[%s3 + $0x1c8] sm:$0xff]
    %v2233 = vld [vmem:[%s3 + $0x1d0] sm:$0xff]
    %v2234 = vld [vmem:[%s3 + $0x1d8] sm:$0xff]
    %v2235 = vld [vmem:[%s3 + $0x1e0] sm:$0xff]
    %v2236 = vld [vmem:[%s3 + $0x1e8] sm:$0xff]
    %v2237 = vld [vmem:[%s3 + $0x1f0] sm:$0xff]
    %v2238 = vld [vmem:[%s3 + $0x1f8] sm:$0xff]
    %v2239 = vld [vmem:[%s4] sm:$0xff]
    %v2240 = vld [vmem:[%s4 + $0x8] sm:$0xff]
    %v2241 = vld [vmem:[%s4 + $0x10] sm:$0xff]
    %v2242 = vld [vmem:[%s4 + $0x18] sm:$0xff]
    %v2243 = vld [vmem:[%s4 + $0x20] sm:$0xff]
    %v2244 = vld [vmem:[%s4 + $0x28] sm:$0xff]
    %v2245 = vld [vmem:[%s4 + $0x30] sm:$0xff]
    %v2246 = vld [vmem:[%s4 + $0x38] sm:$0xff]
    %v2247 = vld [vmem:[%s4 + $0x40] sm:$0xff]
    %v2248 = vld [vmem:[%s4 + $0x48] sm:$0xff]
    %v2249 = vld [vmem:[%s4 + $0x50] sm:$0xff]
    %v2250 = vld [vmem:[%s4 + $0x58] sm:$0xff]
    %v2251 = vld [vmem:[%s4 + $0x60] sm:$0xff]
    %v2252 = vld [vmem:[%s4 + $0x68] sm:$0xff]
    %v2253 = vld [vmem:[%s4 + $0x70] sm:$0xff]
    %v2254 = vld [vmem:[%s4 + $0x78] sm:$0xff]
    %v2255 = vld [vmem:[%s4 + $0x80] sm:$0xff]
    %v2256 = vld [vmem:[%s4 + $0x88] sm:$0xff]
    %v2257 = vld [vmem:[%s4 + $0x90] sm:$0xff]
    %v2258 = vld [vmem:[%s4 + $0x98] sm:$0xff]
    %v2259 = vld [vmem:[%s4 + $0xa0] sm:$0xff]
    %v2260 = vld [vmem:[%s4 + $0xa8] sm:$0xff]
    %v2261 = vld [vmem:[%s4 + $0xb0] sm:$0xff]
    %v2262 = vld [vmem:[%s4 + $0xb8] sm:$0xff]
    %v2263 = vld [vmem:[%s4 + $0xc0] sm:$0xff]
    %v2264 = vld [vmem:[%s4 + $0xc8] sm:$0xff]
    %v2265 = vld [vmem:[%s4 + $0xd0] sm:$0xff]
    %v2266 = vld [vmem:[%s4 + $0xd8] sm:$0xff]
    %v2267 = vld [vmem:[%s4 + $0xe0] sm:$0xff]
    %v2268 = vld [vmem:[%s4 + $0xe8] sm:$0xff]
    %v2269 = vld [vmem:[%s4 + $0xf0] sm:$0xff]
    %v2270 = vld [vmem:[%s4 + $0xf8] sm:$0xff]
    %2272 = vset.pattern.permute.xlu0 0
    %2273 = vperm.xlu0 %2272, %v2239
    %v2274 = vpop.permute.xlu0 %2273
    %2277 = vset.pattern.permute.xlu0 0
    %2278 = vperm.xlu0 %2277, %v2240
    %v2279 = vpop.permute.xlu0 %2278
    %2282 = vset.pattern.permute.xlu0 0
    %2283 = vperm.xlu0 %2282, %v2241
    %v2284 = vpop.permute.xlu0 %2283
    %2287 = vset.pattern.permute.xlu0 0
    %2288 = vperm.xlu0 %2287, %v2242
    %v2289 = vpop.permute.xlu0 %2288
    %2292 = vset.pattern.permute.xlu0 0
    %2293 = vperm.xlu0 %2292, %v2243
    %v2294 = vpop.permute.xlu0 %2293
    %2297 = vset.pattern.permute.xlu0 0
    %2298 = vperm.xlu0 %2297, %v2244
    %v2299 = vpop.permute.xlu0 %2298
    %2302 = vset.pattern.permute.xlu0 0
    %2303 = vperm.xlu0 %2302, %v2245
    %v2304 = vpop.permute.xlu0 %2303
    %2307 = vset.pattern.permute.xlu0 0
    %2308 = vperm.xlu0 %2307, %v2246
    %v2309 = vpop.permute.xlu0 %2308
    %2312 = vset.pattern.permute.xlu0 0
    %2313 = vperm.xlu0 %2312, %v2247
    %v2314 = vpop.permute.xlu0 %2313
    %2317 = vset.pattern.permute.xlu0 0
    %2318 = vperm.xlu0 %2317, %v2248
    %v2319 = vpop.permute.xlu0 %2318
    %2322 = vset.pattern.permute.xlu0 0
    %2323 = vperm.xlu0 %2322, %v2249
    %v2324 = vpop.permute.xlu0 %2323
    %2327 = vset.pattern.permute.xlu0 0
    %2328 = vperm.xlu0 %2327, %v2250
    %v2329 = vpop.permute.xlu0 %2328
    %2332 = vset.pattern.permute.xlu0 0
    %2333 = vperm.xlu0 %2332, %v2251
    %v2334 = vpop.permute.xlu0 %2333
    %2337 = vset.pattern.permute.xlu0 0
    %2338 = vperm.xlu0 %2337, %v2252
    %v2339 = vpop.permute.xlu0 %2338
    %2342 = vset.pattern.permute.xlu0 0
    %2343 = vperm.xlu0 %2342, %v2253
    %v2344 = vpop.permute.xlu0 %2343
    %2347 = vset.pattern.permute.xlu0 0
    %2348 = vperm.xlu0 %2347, %v2254
    %v2349 = vpop.permute.xlu0 %2348
    %2352 = vset.pattern.permute.xlu0 0
    %2353 = vperm.xlu0 %2352, %v2255
    %v2354 = vpop.permute.xlu0 %2353
    %2357 = vset.pattern.permute.xlu0 0
    %2358 = vperm.xlu0 %2357, %v2256
    %v2359 = vpop.permute.xlu0 %2358
    %2362 = vset.pattern.permute.xlu0 0
    %2363 = vperm.xlu0 %2362, %v2257
    %v2364 = vpop.permute.xlu0 %2363
    %2367 = vset.pattern.permute.xlu0 0
    %2368 = vperm.xlu0 %2367, %v2258
    %v2369 = vpop.permute.xlu0 %2368
    %2372 = vset.pattern.permute.xlu0 0
    %2373 = vperm.xlu0 %2372, %v2259
    %v2374 = vpop.permute.xlu0 %2373
    %2377 = vset.pattern.permute.xlu0 0
    %2378 = vperm.xlu0 %2377, %v2260
    %v2379 = vpop.permute.xlu0 %2378
    %2382 = vset.pattern.permute.xlu0 0
    %2383 = vperm.xlu0 %2382, %v2261
    %v2384 = vpop.permute.xlu0 %2383
    %2387 = vset.pattern.permute.xlu0 0
    %2388 = vperm.xlu0 %2387, %v2262
    %v2389 = vpop.permute.xlu0 %2388
    %2392 = vset.pattern.permute.xlu0 0
    %2393 = vperm.xlu0 %2392, %v2263
    %v2394 = vpop.permute.xlu0 %2393
    %2397 = vset.pattern.permute.xlu0 0
    %2398 = vperm.xlu0 %2397, %v2264
    %v2399 = vpop.permute.xlu0 %2398
    %2402 = vset.pattern.permute.xlu0 0
    %2403 = vperm.xlu0 %2402, %v2265
    %v2404 = vpop.permute.xlu0 %2403
    %2407 = vset.pattern.permute.xlu0 0
    %2408 = vperm.xlu0 %2407, %v2266
    %v2409 = vpop.permute.xlu0 %2408
    %2412 = vset.pattern.permute.xlu0 0
    %2413 = vperm.xlu0 %2412, %v2267
    %v2414 = vpop.permute.xlu0 %2413
    %2417 = vset.pattern.permute.xlu0 0
    %2418 = vperm.xlu0 %2417, %v2268
    %v2419 = vpop.permute.xlu0 %2418
    %2422 = vset.pattern.permute.xlu0 0
    %2423 = vperm.xlu0 %2422, %v2269
    %v2424 = vpop.permute.xlu0 %2423
    %2427 = vset.pattern.permute.xlu0 0
    %2428 = vperm.xlu0 %2427, %v2270
    %v2429 = vpop.permute.xlu0 %2428
    %2431 = vmatprep.subr.mxu0 0.0
    %v2432 = vand.u32 %v2143, 4294901760
    %2433 = vmatpush1.msra.mxu0 %v2432
    %2434 = vmatprep.subr.mxu0 0.0
    %v2435 = vand.u32 %v2144, 4294901760
    %2436 = vmatpush1.msra.mxu0 %v2435
    %2437 = vmatprep.subr.mxu0 0.0
    %v2438 = vand.u32 %v2145, 4294901760
    %2439 = vmatpush1.msra.mxu0 %v2438
    %2440 = vmatprep.subr.mxu0 0.0
    %v2441 = vand.u32 %v2146, 4294901760
    %2442 = vmatpush1.msra.mxu0 %v2441
    %2443 = vmatprep.subr.mxu0 0.0
    %v2444 = vand.u32 %v2147, 4294901760
    %2445 = vmatpush1.msra.mxu0 %v2444
    %2446 = vmatprep.subr.mxu0 0.0
    %v2447 = vand.u32 %v2148, 4294901760
    %2448 = vmatpush1.msra.mxu0 %v2447
    %2449 = vmatprep.subr.mxu0 0.0
    %v2450 = vand.u32 %v2149, 4294901760
    %2451 = vmatpush1.msra.mxu0 %v2450
    %2452 = vmatprep.subr.mxu0 0.0
    %v2453 = vand.u32 %v2150, 4294901760
    %2454 = vmatpush1.msra.mxu0 %v2453
    %2455 = vmatprep.subr.mxu0 0.0
    %v2456 = vand.u32 %v2151, 4294901760
    %2457 = vmatpush1.msra.mxu0 %v2456
    %2458 = vmatprep.subr.mxu0 0.0
    %v2459 = vand.u32 %v2152, 4294901760
    %2460 = vmatpush1.msra.mxu0 %v2459
    %2461 = vmatprep.subr.mxu0 0.0
    %v2462 = vand.u32 %v2153, 4294901760
    %2463 = vmatpush1.msra.mxu0 %v2462
    %2464 = vmatprep.subr.mxu0 0.0
    %v2465 = vand.u32 %v2154, 4294901760
    %2466 = vmatpush1.msra.mxu0 %v2465
    %2467 = vmatprep.subr.mxu0 0.0
    %v2468 = vand.u32 %v2155, 4294901760
    %2469 = vmatpush1.msra.mxu0 %v2468
    %2470 = vmatprep.subr.mxu0 0.0
    %v2471 = vand.u32 %v2156, 4294901760
    %2472 = vmatpush1.msra.mxu0 %v2471
    %2473 = vmatprep.subr.mxu0 0.0
    %v2474 = vand.u32 %v2157, 4294901760
    %2475 = vmatpush1.msra.mxu0 %v2474
    %2476 = vmatprep.subr.mxu0 0.0
    %v2477 = vand.u32 %v2158, 4294901760
    %2478 = vmatpush1.msra.mxu0 %v2477
    %2479 = vmatprep.subr.mxu0 0.0
    %v2480 = vand.u32 %v2159, 4294901760
    %2481 = vmatpush1.msra.mxu0 %v2480
    %2482 = vmatprep.subr.mxu0 0.0
    %v2483 = vand.u32 %v2160, 4294901760
    %2484 = vmatpush1.msra.mxu0 %v2483
    %2485 = vmatprep.subr.mxu0 0.0
    %v2486 = vand.u32 %v2161, 4294901760
    %2487 = vmatpush1.msra.mxu0 %v2486
    %2488 = vmatprep.subr.mxu0 0.0
    %v2489 = vand.u32 %v2162, 4294901760
    %2490 = vmatpush1.msra.mxu0 %v2489
    %2491 = vmatprep.subr.mxu0 0.0
    %v2492 = vand.u32 %v2163, 4294901760
    %2493 = vmatpush1.msra.mxu0 %v2492
    %2494 = vmatprep.subr.mxu0 0.0
    %v2495 = vand.u32 %v2164, 4294901760
    %2496 = vmatpush1.msra.mxu0 %v2495
    %2497 = vmatprep.subr.mxu0 0.0
    %v2498 = vand.u32 %v2165, 4294901760
    %2499 = vmatpush1.msra.mxu0 %v2498
    %2500 = vmatprep.subr.mxu0 0.0
    %v2501 = vand.u32 %v2166, 4294901760
    %2502 = vmatpush1.msra.mxu0 %v2501
    %2503 = vmatprep.subr.mxu0 0.0
    %v2504 = vand.u32 %v2167, 4294901760
    %2505 = vmatpush1.msra.mxu0 %v2504
    %2506 = vmatprep.subr.mxu0 0.0
    %v2507 = vand.u32 %v2168, 4294901760
    %2508 = vmatpush1.msra.mxu0 %v2507
    %2509 = vmatprep.subr.mxu0 0.0
    %v2510 = vand.u32 %v2169, 4294901760
    %2511 = vmatpush1.msra.mxu0 %v2510
    %2512 = vmatprep.subr.mxu0 0.0
    %v2513 = vand.u32 %v2170, 4294901760
    %2514 = vmatpush1.msra.mxu0 %v2513
    %2515 = vmatprep.subr.mxu0 0.0
    %v2516 = vand.u32 %v2171, 4294901760
    %2517 = vmatpush1.msra.mxu0 %v2516
    %2518 = vmatprep.subr.mxu0 0.0
    %v2519 = vand.u32 %v2172, 4294901760
    %2520 = vmatpush1.msra.mxu0 %v2519
    %2521 = vmatprep.subr.mxu0 0.0
    %v2522 = vand.u32 %v2173, 4294901760
    %2523 = vmatpush1.msra.mxu0 %v2522
    %2524 = vmatprep.subr.mxu0 0.0
    %v2525 = vand.u32 %v2174, 4294901760
    %2526 = vmatpush1.msra.mxu0 %v2525
    %v2527 = vand.u32 %v2176, 4294901760
    %v2528 = vsub.f32 %v2176, %v2527
    %v2529 = vand.u32 %v2528, 4294901760
    %v2530 = vsub.f32 %v2528, %v2529
    %v2531 = vand.u32 %v2530, 4294901760
    %2532 = vmatprep.mubr.f32.mxu0 %v2531
    %v2533 = vand.u32 %v2175, 4294901760
    %v2534 = vsub.f32 %v2175, %v2533
    %v2535 = vand.u32 %v2534, 4294901760
    %v2536 = vsub.f32 %v2534, %v2535
    %v2537 = vand.u32 %v2536, 4294901760
    %2538 = vmatmul.mubr.f32.gmra.mrb[0].mxu0 %v2537
    %v2539 = vpop.f32.mrb[0].mxu0
    %v2540 = vadd.f32 %v2274, %v2539
    %v2541 = vpop.f32.mrb[0].mxu0
    %v2542 = vand.u32 %v2178, 4294901760
    %v2543 = vsub.f32 %v2178, %v2542
    %v2544 = vand.u32 %v2543, 4294901760
    %v2545 = vsub.f32 %v2543, %v2544
    %v2546 = vand.u32 %v2545, 4294901760
    %2547 = vmatprep.mubr.f32.mxu0 %v2546
    %v2548 = vand.u32 %v2177, 4294901760
    %v2549 = vsub.f32 %v2177, %v2548
    %v2550 = vand.u32 %v2549, 4294901760
    %v2551 = vsub.f32 %v2549, %v2550
    %v2552 = vand.u32 %v2551, 4294901760
    %2553 = vmatmul.mubr.f32.gmra.mrb[0].mxu0 %v2552
    %v2554 = vpop.f32.mrb[0].mxu0
    %v2555 = vadd.f32 %v2279, %v2554
    %v2556 = vpop.f32.mrb[0].mxu0
    %v2557 = vand.u32 %v2180, 4294901760
    %v2558 = vsub.f32 %v2180, %v2557
    %v2559 = vand.u32 %v2558, 4294901760
    %v2560 = vsub.f32 %v2558, %v2559
    %v2561 = vand.u32 %v2560, 4294901760
    %2562 = vmatprep.mubr.f32.mxu0 %v2561
    %v2563 = vand.u32 %v2179, 4294901760
    %v2564 = vsub.f32 %v2179, %v2563
    %v2565 = vand.u32 %v2564, 4294901760
    %v2566 = vsub.f32 %v2564, %v2565
    %v2567 = vand.u32 %v2566, 4294901760
    %2568 = vmatmul.mubr.f32.gmra.mrb[0].mxu0 %v2567
    %v2569 = vpop.f32.mrb[0].mxu0
    %v2570 = vadd.f32 %v2284, %v2569
    %v2571 = vpop.f32.mrb[0].mxu0
    %v2572 = vand.u32 %v2182, 4294901760
    %v2573 = vsub.f32 %v2182, %v2572
    %v2574 = vand.u32 %v2573, 4294901760
    %v2575 = vsub.f32 %v2573, %v2574
    %v2576 = vand.u32 %v2575, 4294901760
    %2577 = vmatprep.mubr.f32.mxu0 %v2576
    %v2578 = vand.u32 %v2181, 4294901760
    %v2579 = vsub.f32 %v2181, %v2578
    %v2580 = vand.u32 %v2579, 4294901760
    %v2581 = vsub.f32 %v2579, %v2580
    %v2582 = vand.u32 %v2581, 4294901760
    %2583 = vmatmul.mubr.f32.gmra.mrb[0].mxu0 %v2582
    %v2584 = vpop.f32.mrb[0].mxu0
    %v2585 = vadd.f32 %v2289, %v2584
    %v2586 = vpop.f32.mrb[0].mxu0
    %v2587 = vand.u32 %v2184, 4294901760
    %v2588 = vsub.f32 %v2184, %v2587
    %v2589 = vand.u32 %v2588, 4294901760
    %v2590 = vsub.f32 %v2588, %v2589
    %v2591 = vand.u32 %v2590, 4294901760
    %2592 = vmatprep.mubr.f32.mxu0 %v2591
    %v2593 = vand.u32 %v2183, 4294901760
    %v2594 = vsub.f32 %v2183, %v2593
    %v2595 = vand.u32 %v2594, 4294901760
    %v2596 = vsub.f32 %v2594, %v2595
    %v2597 = vand.u32 %v2596, 4294901760
    %2598 = vmatmul.mubr.f32.gmra.mrb[0].mxu0 %v2597
    %v2599 = vpop.f32.mrb[0].mxu0
    %v2600 = vadd.f32 %v2294, %v2599
    %v2601 = vpop.f32.mrb[0].mxu0
    %v2602 = vand.u32 %v2186, 4294901760
    %v2603 = vsub.f32 %v2186, %v2602
    %v2604 = vand.u32 %v2603, 4294901760
    %v2605 = vsub.f32 %v2603, %v2604
    %v2606 = vand.u32 %v2605, 4294901760
    %2607 = vmatprep.mubr.f32.mxu0 %v2606
    %v2608 = vand.u32 %v2185, 4294901760
    %v2609 = vsub.f32 %v2185, %v2608
    %v2610 = vand.u32 %v2609, 4294901760
    %v2611 = vsub.f32 %v2609, %v2610
    %v2612 = vand.u32 %v2611, 4294901760
    %2613 = vmatmul.mubr.f32.gmra.mrb[0].mxu0 %v2612
    %v2614 = vpop.f32.mrb[0].mxu0
    %v2615 = vadd.f32 %v2299, %v2614
    %v2616 = vpop.f32.mrb[0].mxu0
    %v2617 = vand.u32 %v2188, 4294901760
    %v2618 = vsub.f32 %v2188, %v2617
    %v2619 = vand.u32 %v2618, 4294901760
    %v2620 = vsub.f32 %v2618, %v2619
    %v2621 = vand.u32 %v2620, 4294901760
    %2622 = vmatprep.mubr.f32.mxu0 %v2621
    %v2623 = vand.u32 %v2187, 4294901760
    %v2624 = vsub.f32 %v2187, %v2623
    %v2625 = vand.u32 %v2624, 4294901760
    %v2626 = vsub.f32 %v2624, %v2625
    %v2627 = vand.u32 %v2626, 4294901760
    %2628 = vmatmul.mubr.f32.gmra.mrb[0].mxu0 %v2627
    %v2629 = vpop.f32.mrb[0].mxu0
    %v2630 = vadd.f32 %v2304, %v2629
    %v2631 = vpop.f32.mrb[0].mxu0
    %v2632 = vand.u32 %v2190, 4294901760
    %v2633 = vsub.f32 %v2190, %v2632
    %v2634 = vand.u32 %v2633, 4294901760
    %v2635 = vsub.f32 %v2633, %v2634
    %v2636 = vand.u32 %v2635, 4294901760
    %2637 = vmatprep.mubr.f32.mxu0 %v2636
    %v2638 = vand.u32 %v2189, 4294901760
    %v2639 = vsub.f32 %v2189, %v2638
    %v2640 = vand.u32 %v2639, 4294901760
    %v2641 = vsub.f32 %v2639, %v2640
    %v2642 = vand.u32 %v2641, 4294901760
    %2643 = vmatmul.mubr.f32.gmra.mrb[0].mxu0 %v2642
    %v2644 = vpop.f32.mrb[0].mxu0
    %v2645 = vadd.f32 %v2309, %v2644
    %v2646 = vpop.f32.mrb[0].mxu0
    %v2647 = vand.u32 %v2192, 4294901760
    %v2648 = vsub.f32 %v2192, %v2647
    %v2649 = vand.u32 %v2648, 4294901760
    %v2650 = vsub.f32 %v2648, %v2649
    %v2651 = vand.u32 %v2650, 4294901760
    %2652 = vmatprep.mubr.f32.mxu0 %v2651
    %v2653 = vand.u32 %v2191, 4294901760
    %v2654 = vsub.f32 %v2191, %v2653
    %v2655 = vand.u32 %v2654, 4294901760
    %v2656 = vsub.f32 %v2654, %v2655
    %v2657 = vand.u32 %v2656, 4294901760
    %2658 = vmatmul.mubr.f32.gmra.mrb[0].mxu0 %v2657
    %v2659 = vpop.f32.mrb[0].mxu0
    %v2660 = vadd.f32 %v2314, %v2659
    %v2661 = vpop.f32.mrb[0].mxu0
    %v2662 = vand.u32 %v2194, 4294901760
    %v2663 = vsub.f32 %v2194, %v2662
    %v2664 = vand.u32 %v2663, 4294901760
    %v2665 = vsub.f32 %v2663, %v2664
    %v2666 = vand.u32 %v2665, 4294901760
    %2667 = vmatprep.mubr.f32.mxu0 %v2666
    %v2668 = vand.u32 %v2193, 4294901760
    %v2669 = vsub.f32 %v2193, %v2668
    %v2670 = vand.u32 %v2669, 4294901760
    %v2671 = vsub.f32 %v2669, %v2670
    %v2672 = vand.u32 %v2671, 4294901760
    %2673 = vmatmul.mubr.f32.gmra.mrb[0].mxu0 %v2672
    %v2674 = vpop.f32.mrb[0].mxu0
    %v2675 = vadd.f32 %v2319, %v2674
    %v2676 = vpop.f32.mrb[0].mxu0
    %v2677 = vand.u32 %v2196, 4294901760
    %v2678 = vsub.f32 %v2196, %v2677
    %v2679 = vand.u32 %v2678, 4294901760
    %v2680 = vsub.f32 %v2678, %v2679
    %v2681 = vand.u32 %v2680, 4294901760
    %2682 = vmatprep.mubr.f32.mxu0 %v2681
    %v2683 = vand.u32 %v2195, 4294901760
    %v2684 = vsub.f32 %v2195, %v2683
    %v2685 = vand.u32 %v2684, 4294901760
    %v2686 = vsub.f32 %v2684, %v2685
    %v2687 = vand.u32 %v2686, 4294901760
    %2688 = vmatmul.mubr.f32.gmra.mrb[0].mxu0 %v2687
    %v2689 = vpop.f32.mrb[0].mxu0
    %v2690 = vadd.f32 %v2324, %v2689
    %v2691 = vpop.f32.mrb[0].mxu0
    %v2692 = vand.u32 %v2198, 4294901760
    %v2693 = vsub.f32 %v2198, %v2692
    %v2694 = vand.u32 %v2693, 4294901760
    %v2695 = vsub.f32 %v2693, %v2694
    %v2696 = vand.u32 %v2695, 4294901760
    %2697 = vmatprep.mubr.f32.mxu0 %v2696
    %v2698 = vand.u32 %v2197, 4294901760
    %v2699 = vsub.f32 %v2197, %v2698
    %v2700 = vand.u32 %v2699, 4294901760
    %v2701 = vsub.f32 %v2699, %v2700
    %v2702 = vand.u32 %v2701, 4294901760
    %2703 = vmatmul.mubr.f32.gmra.mrb[0].mxu0 %v2702
    %v2704 = vpop.f32.mrb[0].mxu0
    %v2705 = vadd.f32 %v2329, %v2704
    %v2706 = vpop.f32.mrb[0].mxu0
    %v2707 = vand.u32 %v2200, 4294901760
    %v2708 = vsub.f32 %v2200, %v2707
    %v2709 = vand.u32 %v2708, 4294901760
    %v2710 = vsub.f32 %v2708, %v2709
    %v2711 = vand.u32 %v2710, 4294901760
    %2712 = vmatprep.mubr.f32.mxu0 %v2711
    %v2713 = vand.u32 %v2199, 4294901760
    %v2714 = vsub.f32 %v2199, %v2713
    %v2715 = vand.u32 %v2714, 4294901760
    %v2716 = vsub.f32 %v2714, %v2715
    %v2717 = vand.u32 %v2716, 4294901760
    %2718 = vmatmul.mubr.f32.gmra.mrb[0].mxu0 %v2717
    %v2719 = vpop.f32.mrb[0].mxu0
    %v2720 = vadd.f32 %v2334, %v2719
    %v2721 = vpop.f32.mrb[0].mxu0
    %v2722 = vand.u32 %v2202, 4294901760
    %v2723 = vsub.f32 %v2202, %v2722
    %v2724 = vand.u32 %v2723, 4294901760
    %v2725 = vsub.f32 %v2723, %v2724
    %v2726 = vand.u32 %v2725, 4294901760
    %2727 = vmatprep.mubr.f32.mxu0 %v2726
    %v2728 = vand.u32 %v2201, 4294901760
    %v2729 = vsub.f32 %v2201, %v2728
    %v2730 = vand.u32 %v2729, 4294901760
    %v2731 = vsub.f32 %v2729, %v2730
    %v2732 = vand.u32 %v2731, 4294901760
    %2733 = vmatmul.mubr.f32.gmra.mrb[0].mxu0 %v2732
    %v2734 = vpop.f32.mrb[0].mxu0
    %v2735 = vadd.f32 %v2339, %v2734
    %v2736 = vpop.f32.mrb[0].mxu0
    %v2737 = vand.u32 %v2204, 4294901760
    %v2738 = vsub.f32 %v2204, %v2737
    %v2739 = vand.u32 %v2738, 4294901760
    %v2740 = vsub.f32 %v2738, %v2739
    %v2741 = vand.u32 %v2740, 4294901760
    %2742 = vmatprep.mubr.f32.mxu0 %v2741
    %v2743 = vand.u32 %v2203, 4294901760
    %v2744 = vsub.f32 %v2203, %v2743
    %v2745 = vand.u32 %v2744, 4294901760
    %v2746 = vsub.f32 %v2744, %v2745
    %v2747 = vand.u32 %v2746, 4294901760
    %2748 = vmatmul.mubr.f32.gmra.mrb[0].mxu0 %v2747
    %v2749 = vpop.f32.mrb[0].mxu0
    %v2750 = vadd.f32 %v2344, %v2749
    %v2751 = vpop.f32.mrb[0].mxu0
    %v2752 = vand.u32 %v2206, 4294901760
    %v2753 = vsub.f32 %v2206, %v2752
    %v2754 = vand.u32 %v2753, 4294901760
    %v2755 = vsub.f32 %v2753, %v2754
    %v2756 = vand.u32 %v2755, 4294901760
    %2757 = vmatprep.mubr.f32.mxu0 %v2756
    %v2758 = vand.u32 %v2205, 4294901760
    %v2759 = vsub.f32 %v2205, %v2758
    %v2760 = vand.u32 %v2759, 4294901760
    %v2761 = vsub.f32 %v2759, %v2760
    %v2762 = vand.u32 %v2761, 4294901760
    %2763 = vmatmul.mubr.f32.gmra.mrb[0].mxu0 %v2762
    %v2764 = vpop.f32.mrb[0].mxu0
    %v2765 = vadd.f32 %v2349, %v2764
    %v2766 = vpop.f32.mrb[0].mxu0
    %v2767 = vand.u32 %v2208, 4294901760
    %v2768 = vsub.f32 %v2208, %v2767
    %v2769 = vand.u32 %v2768, 4294901760
    %v2770 = vsub.f32 %v2768, %v2769
    %v2771 = vand.u32 %v2770, 4294901760
    %2772 = vmatprep.mubr.f32.mxu0 %v2771
    %v2773 = vand.u32 %v2207, 4294901760
    %v2774 = vsub.f32 %v2207, %v2773
    %v2775 = vand.u32 %v2774, 4294901760
    %v2776 = vsub.f32 %v2774, %v2775
    %v2777 = vand.u32 %v2776, 4294901760
    %2778 = vmatmul.mubr.f32.gmra.mrb[0].mxu0 %v2777
    %v2779 = vpop.f32.mrb[0].mxu0
    %v2780 = vadd.f32 %v2354, %v2779
    %v2781 = vpop.f32.mrb[0].mxu0
    %v2782 = vand.u32 %v2210, 4294901760
    %v2783 = vsub.f32 %v2210, %v2782
    %v2784 = vand.u32 %v2783, 4294901760
    %v2785 = vsub.f32 %v2783, %v2784
    %v2786 = vand.u32 %v2785, 4294901760
    %2787 = vmatprep.mubr.f32.mxu0 %v2786
    %v2788 = vand.u32 %v2209, 4294901760
    %v2789 = vsub.f32 %v2209, %v2788
    %v2790 = vand.u32 %v2789, 4294901760
    %v2791 = vsub.f32 %v2789, %v2790
    %v2792 = vand.u32 %v2791, 4294901760
    %2793 = vmatmul.mubr.f32.gmra.mrb[0].mxu0 %v2792
    %v2794 = vpop.f32.mrb[0].mxu0
    %v2795 = vadd.f32 %v2359, %v2794
    %v2796 = vpop.f32.mrb[0].mxu0
    %v2797 = vand.u32 %v2212, 4294901760
    %v2798 = vsub.f32 %v2212, %v2797
    %v2799 = vand.u32 %v2798, 4294901760
    %v2800 = vsub.f32 %v2798, %v2799
    %v2801 = vand.u32 %v2800, 4294901760
    %2802 = vmatprep.mubr.f32.mxu0 %v2801
    %v2803 = vand.u32 %v2211, 4294901760
    %v2804 = vsub.f32 %v2211, %v2803
    %v2805 = vand.u32 %v2804, 4294901760
    %v2806 = vsub.f32 %v2804, %v2805
    %v2807 = vand.u32 %v2806, 4294901760
    %2808 = vmatmul.mubr.f32.gmra.mrb[0].mxu0 %v2807
    %v2809 = vpop.f32.mrb[0].mxu0
    %v2810 = vadd.f32 %v2364, %v2809
    %v2811 = vpop.f32.mrb[0].mxu0
    %v2812 = vand.u32 %v2214, 4294901760
    %v2813 = vsub.f32 %v2214, %v2812
    %v2814 = vand.u32 %v2813, 4294901760
    %v2815 = vsub.f32 %v2813, %v2814
    %v2816 = vand.u32 %v2815, 4294901760
    %2817 = vmatprep.mubr.f32.mxu0 %v2816
    %v2818 = vand.u32 %v2213, 4294901760
    %v2819 = vsub.f32 %v2213, %v2818
    %v2820 = vand.u32 %v2819, 4294901760
    %v2821 = vsub.f32 %v2819, %v2820
    %v2822 = vand.u32 %v2821, 4294901760
    %2823 = vmatmul.mubr.f32.gmra.mrb[0].mxu0 %v2822
    %v2824 = vpop.f32.mrb[0].mxu0
    %v2825 = vadd.f32 %v2369, %v2824
    %v2826 = vpop.f32.mrb[0].mxu0
    %v2827 = vand.u32 %v2216, 4294901760
    %v2828 = vsub.f32 %v2216, %v2827
    %v2829 = vand.u32 %v2828, 4294901760
    %v2830 = vsub.f32 %v2828, %v2829
    %v2831 = vand.u32 %v2830, 4294901760
    %2832 = vmatprep.mubr.f32.mxu0 %v2831
    %v2833 = vand.u32 %v2215, 4294901760
    %v2834 = vsub.f32 %v2215, %v2833
    %v2835 = vand.u32 %v2834, 4294901760
    %v2836 = vsub.f32 %v2834, %v2835
    %v2837 = vand.u32 %v2836, 4294901760
    %2838 = vmatmul.mubr.f32.gmra.mrb[0].mxu0 %v2837
    %v2839 = vpop.f32.mrb[0].mxu0
    %v2840 = vadd.f32 %v2374, %v2839
    %v2841 = vpop.f32.mrb[0].mxu0
    %v2842 = vand.u32 %v2218, 4294901760
    %v2843 = vsub.f32 %v2218, %v2842
    %v2844 = vand.u32 %v2843, 4294901760
    %v2845 = vsub.f32 %v2843, %v2844
    %v2846 = vand.u32 %v2845, 4294901760
    %2847 = vmatprep.mubr.f32.mxu0 %v2846
    %v2848 = vand.u32 %v2217, 4294901760
    %v2849 = vsub.f32 %v2217, %v2848
    %v2850 = vand.u32 %v2849, 4294901760
    %v2851 = vsub.f32 %v2849, %v2850
    %v2852 = vand.u32 %v2851, 4294901760
    %2853 = vmatmul.mubr.f32.gmra.mrb[0].mxu0 %v2852
    %v2854 = vpop.f32.mrb[0].mxu0
    %v2855 = vadd.f32 %v2379, %v2854
    %v2856 = vpop.f32.mrb[0].mxu0
    %v2857 = vand.u32 %v2220, 4294901760
    %v2858 = vsub.f32 %v2220, %v2857
    %v2859 = vand.u32 %v2858, 4294901760
    %v2860 = vsub.f32 %v2858, %v2859
    %v2861 = vand.u32 %v2860, 4294901760
    %2862 = vmatprep.mubr.f32.mxu0 %v2861
    %v2863 = vand.u32 %v2219, 4294901760
    %v2864 = vsub.f32 %v2219, %v2863
    %v2865 = vand.u32 %v2864, 4294901760
    %v2866 = vsub.f32 %v2864, %v2865
    %v2867 = vand.u32 %v2866, 4294901760
    %2868 = vmatmul.mubr.f32.gmra.mrb[0].mxu0 %v2867
    %v2869 = vpop.f32.mrb[0].mxu0
    %v2870 = vadd.f32 %v2384, %v2869
    %v2871 = vpop.f32.mrb[0].mxu0
    %v2872 = vand.u32 %v2222, 4294901760
    %v2873 = vsub.f32 %v2222, %v2872
    %v2874 = vand.u32 %v2873, 4294901760
    %v2875 = vsub.f32 %v2873, %v2874
    %v2876 = vand.u32 %v2875, 4294901760
    %2877 = vmatprep.mubr.f32.mxu0 %v2876
    %v2878 = vand.u32 %v2221, 4294901760
    %v2879 = vsub.f32 %v2221, %v2878
    %v2880 = vand.u32 %v2879, 4294901760
    %v2881 = vsub.f32 %v2879, %v2880
    %v2882 = vand.u32 %v2881, 4294901760
    %2883 = vmatmul.mubr.f32.gmra.mrb[0].mxu0 %v2882
    %v2884 = vpop.f32.mrb[0].mxu0
    %v2885 = vadd.f32 %v2389, %v2884
    %v2886 = vpop.f32.mrb[0].mxu0
    %v2887 = vand.u32 %v2224, 4294901760
    %v2888 = vsub.f32 %v2224, %v2887
    %v2889 = vand.u32 %v2888, 4294901760
    %v2890 = vsub.f32 %v2888, %v2889
    %v2891 = vand.u32 %v2890, 4294901760
    %2892 = vmatprep.mubr.f32.mxu0 %v2891
    %v2893 = vand.u32 %v2223, 4294901760
    %v2894 = vsub.f32 %v2223, %v2893
    %v2895 = vand.u32 %v2894, 4294901760
    %v2896 = vsub.f32 %v2894, %v2895
    %v2897 = vand.u32 %v2896, 4294901760
    %2898 = vmatmul.mubr.f32.gmra.mrb[0].mxu0 %v2897
    %v2899 = vpop.f32.mrb[0].mxu0
    %v2900 = vadd.f32 %v2394, %v2899
    %v2901 = vpop.f32.mrb[0].mxu0
    %v2902 = vand.u32 %v2226, 4294901760
    %v2903 = vsub.f32 %v2226, %v2902
    %v2904 = vand.u32 %v2903, 4294901760
    %v2905 = vsub.f32 %v2903, %v2904
    %v2906 = vand.u32 %v2905, 4294901760
    %2907 = vmatprep.mubr.f32.mxu0 %v2906
    %v2908 = vand.u32 %v2225, 4294901760
    %v2909 = vsub.f32 %v2225, %v2908
    %v2910 = vand.u32 %v2909, 4294901760
    %v2911 = vsub.f32 %v2909, %v2910
    %v2912 = vand.u32 %v2911, 4294901760
    %2913 = vmatmul.mubr.f32.gmra.mrb[0].mxu0 %v2912
    %v2914 = vpop.f32.mrb[0].mxu0
    %v2915 = vadd.f32 %v2399, %v2914
    %v2916 = vpop.f32.mrb[0].mxu0
    %v2917 = vand.u32 %v2228, 4294901760
    %v2918 = vsub.f32 %v2228, %v2917
    %v2919 = vand.u32 %v2918, 4294901760
    %v2920 = vsub.f32 %v2918, %v2919
    %v2921 = vand.u32 %v2920, 4294901760
    %2922 = vmatprep.mubr.f32.mxu0 %v2921
    %v2923 = vand.u32 %v2227, 4294901760
    %v2924 = vsub.f32 %v2227, %v2923
    %v2925 = vand.u32 %v2924, 4294901760
    %v2926 = vsub.f32 %v2924, %v2925
    %v2927 = vand.u32 %v2926, 4294901760
    %2928 = vmatmul.mubr.f32.gmra.mrb[0].mxu0 %v2927
    %v2929 = vpop.f32.mrb[0].mxu0
    %v2930 = vadd.f32 %v2404, %v2929
    %v2931 = vpop.f32.mrb[0].mxu0
    %v2932 = vand.u32 %v2230, 4294901760
    %v2933 = vsub.f32 %v2230, %v2932
    %v2934 = vand.u32 %v2933, 4294901760
    %v2935 = vsub.f32 %v2933, %v2934
    %v2936 = vand.u32 %v2935, 4294901760
    %2937 = vmatprep.mubr.f32.mxu0 %v2936
    %v2938 = vand.u32 %v2229, 4294901760
    %v2939 = vsub.f32 %v2229, %v2938
    %v2940 = vand.u32 %v2939, 4294901760
    %v2941 = vsub.f32 %v2939, %v2940
    %v2942 = vand.u32 %v2941, 4294901760
    %2943 = vmatmul.mubr.f32.gmra.mrb[0].mxu0 %v2942
    %v2944 = vpop.f32.mrb[0].mxu0
    %v2945 = vadd.f32 %v2409, %v2944
    %v2946 = vpop.f32.mrb[0].mxu0
    %v2947 = vand.u32 %v2232, 4294901760
    %v2948 = vsub.f32 %v2232, %v2947
    %v2949 = vand.u32 %v2948, 4294901760
    %v2950 = vsub.f32 %v2948, %v2949
    %v2951 = vand.u32 %v2950, 4294901760
    %2952 = vmatprep.mubr.f32.mxu0 %v2951
    %v2953 = vand.u32 %v2231, 4294901760
    %v2954 = vsub.f32 %v2231, %v2953
    %v2955 = vand.u32 %v2954, 4294901760
    %v2956 = vsub.f32 %v2954, %v2955
    %v2957 = vand.u32 %v2956, 4294901760
    %2958 = vmatmul.mubr.f32.gmra.mrb[0].mxu0 %v2957
    %v2959 = vpop.f32.mrb[0].mxu0
    %v2960 = vadd.f32 %v2414, %v2959
    %v2961 = vpop.f32.mrb[0].mxu0
    %v2962 = vand.u32 %v2234, 4294901760
    %v2963 = vsub.f32 %v2234, %v2962
    %v2964 = vand.u32 %v2963, 4294901760
    %v2965 = vsub.f32 %v2963, %v2964
    %v2966 = vand.u32 %v2965, 4294901760
    %2967 = vmatprep.mubr.f32.mxu0 %v2966
    %v2968 = vand.u32 %v2233, 4294901760
    %v2969 = vsub.f32 %v2233, %v2968
    %v2970 = vand.u32 %v2969, 4294901760
    %v2971 = vsub.f32 %v2969, %v2970
    %v2972 = vand.u32 %v2971, 4294901760
    %2973 = vmatmul.mubr.f32.gmra.mrb[0].mxu0 %v2972
    %v2974 = vpop.f32.mrb[0].mxu0
    %v2975 = vadd.f32 %v2419, %v2974
    %v2976 = vpop.f32.mrb[0].mxu0
    %v2977 = vand.u32 %v2236, 4294901760
    %v2978 = vsub.f32 %v2236, %v2977
    %v2979 = vand.u32 %v2978, 4294901760
    %v2980 = vsub.f32 %v2978, %v2979
    %v2981 = vand.u32 %v2980, 4294901760
    %2982 = vmatprep.mubr.f32.mxu0 %v2981
    %v2983 = vand.u32 %v2235, 4294901760
    %v2984 = vsub.f32 %v2235, %v2983
    %v2985 = vand.u32 %v2984, 4294901760
    %v2986 = vsub.f32 %v2984, %v2985
    %v2987 = vand.u32 %v2986, 4294901760
    %2988 = vmatmul.mubr.f32.gmra.mrb[0].mxu0 %v2987
    %v2989 = vpop.f32.mrb[0].mxu0
    %v2990 = vadd.f32 %v2424, %v2989
    %v2991 = vpop.f32.mrb[0].mxu0
    %v2992 = vand.u32 %v2238, 4294901760
    %v2993 = vsub.f32 %v2238, %v2992
    %v2994 = vand.u32 %v2993, 4294901760
    %v2995 = vsub.f32 %v2993, %v2994
    %v2996 = vand.u32 %v2995, 4294901760
    %2997 = vmatprep.mubr.f32.mxu0 %v2996
    %v2998 = vand.u32 %v2237, 4294901760
    %v2999 = vsub.f32 %v2237, %v2998
    %v3000 = vand.u32 %v2999, 4294901760
    %v3001 = vsub.f32 %v2999, %v3000
    %v3002 = vand.u32 %v3001, 4294901760
    %3003 = vmatmul.mubr.f32.gmra.mrb[0].mxu0 %v3002
    %v3004 = vpop.f32.mrb[0].mxu0
    %v3005 = vadd.f32 %v2429, %v3004
    %v3006 = vpop.f32.mrb[0].mxu0
    %3007 = vdwg.mxu0
    %3008 = vmatprep.subr.mxu0 0.0
    %v3009 = vand.u32 %v2143, 4294901760
    %v3010 = vsub.f32 %v2143, %v3009
    %v3011 = vand.u32 %v3010, 4294901760
    %v3012 = vsub.f32 %v3010, %v3011
    %v3013 = vand.u32 %v3012, 4294901760
    %3014 = vmatpush1.msra.mxu0 %v3013
    %3015 = vmatprep.subr.mxu0 0.0
    %v3016 = vand.u32 %v2144, 4294901760
    %v3017 = vsub.f32 %v2144, %v3016
    %v3018 = vand.u32 %v3017, 4294901760
    %v3019 = vsub.f32 %v3017, %v3018
    %v3020 = vand.u32 %v3019, 4294901760
    %3021 = vmatpush1.msra.mxu0 %v3020
    %3022 = vmatprep.subr.mxu0 0.0
    %v3023 = vand.u32 %v2145, 4294901760
    %v3024 = vsub.f32 %v2145, %v3023
    %v3025 = vand.u32 %v3024, 4294901760
    %v3026 = vsub.f32 %v3024, %v3025
    %v3027 = vand.u32 %v3026, 4294901760
    %3028 = vmatpush1.msra.mxu0 %v3027
    %3029 = vmatprep.subr.mxu0 0.0
    %v3030 = vand.u32 %v2146, 4294901760
    %v3031 = vsub.f32 %v2146, %v3030
    %v3032 = vand.u32 %v3031, 4294901760
    %v3033 = vsub.f32 %v3031, %v3032
    %v3034 = vand.u32 %v3033, 4294901760
    %3035 = vmatpush1.msra.mxu0 %v3034
    %3036 = vmatprep.subr.mxu0 0.0
    %v3037 = vand.u32 %v2147, 4294901760
    %v3038 = vsub.f32 %v2147, %v3037
    %v3039 = vand.u32 %v3038, 4294901760
    %v3040 = vsub.f32 %v3038, %v3039
    %v3041 = vand.u32 %v3040, 4294901760
    %3042 = vmatpush1.msra.mxu0 %v3041
    %3043 = vmatprep.subr.mxu0 0.0
    %v3044 = vand.u32 %v2148, 4294901760
    %v3045 = vsub.f32 %v2148, %v3044
    %v3046 = vand.u32 %v3045, 4294901760
    %v3047 = vsub.f32 %v3045, %v3046
    %v3048 = vand.u32 %v3047, 4294901760
    %3049 = vmatpush1.msra.mxu0 %v3048
    %3050 = vmatprep.subr.mxu0 0.0
    %v3051 = vand.u32 %v2149, 4294901760
    %v3052 = vsub.f32 %v2149, %v3051
    %v3053 = vand.u32 %v3052, 4294901760
    %v3054 = vsub.f32 %v3052, %v3053
    %v3055 = vand.u32 %v3054, 4294901760
    %3056 = vmatpush1.msra.mxu0 %v3055
    %3057 = vmatprep.subr.mxu0 0.0
    %v3058 = vand.u32 %v2150, 4294901760
    %v3059 = vsub.f32 %v2150, %v3058
    %v3060 = vand.u32 %v3059, 4294901760
    %v3061 = vsub.f32 %v3059, %v3060
    %v3062 = vand.u32 %v3061, 4294901760
    %3063 = vmatpush1.msra.mxu0 %v3062
    %3064 = vmatprep.subr.mxu0 0.0
    %v3065 = vand.u32 %v2151, 4294901760
    %v3066 = vsub.f32 %v2151, %v3065
    %v3067 = vand.u32 %v3066, 4294901760
    %v3068 = vsub.f32 %v3066, %v3067
    %v3069 = vand.u32 %v3068, 4294901760
    %3070 = vmatpush1.msra.mxu0 %v3069
    %3071 = vmatprep.subr.mxu0 0.0
    %v3072 = vand.u32 %v2152, 4294901760
    %v3073 = vsub.f32 %v2152, %v3072
    %v3074 = vand.u32 %v3073, 4294901760
    %v3075 = vsub.f32 %v3073, %v3074
    %v3076 = vand.u32 %v3075, 4294901760
    %3077 = vmatpush1.msra.mxu0 %v3076
    %3078 = vmatprep.subr.mxu0 0.0
    %v3079 = vand.u32 %v2153, 4294901760
    %v3080 = vsub.f32 %v2153, %v3079
    %v3081 = vand.u32 %v3080, 4294901760
    %v3082 = vsub.f32 %v3080, %v3081
    %v3083 = vand.u32 %v3082, 4294901760
    %3084 = vmatpush1.msra.mxu0 %v3083
    %3085 = vmatprep.subr.mxu0 0.0
    %v3086 = vand.u32 %v2154, 4294901760
    %v3087 = vsub.f32 %v2154, %v3086
    %v3088 = vand.u32 %v3087, 4294901760
    %v3089 = vsub.f32 %v3087, %v3088
    %v3090 = vand.u32 %v3089, 4294901760
    %3091 = vmatpush1.msra.mxu0 %v3090
    %3092 = vmatprep.subr.mxu0 0.0
    %v3093 = vand.u32 %v2155, 4294901760
    %v3094 = vsub.f32 %v2155, %v3093
    %v3095 = vand.u32 %v3094, 4294901760
    %v3096 = vsub.f32 %v3094, %v3095
    %v3097 = vand.u32 %v3096, 4294901760
    %3098 = vmatpush1.msra.mxu0 %v3097
    %3099 = vmatprep.subr.mxu0 0.0
    %v3100 = vand.u32 %v2156, 4294901760
    %v3101 = vsub.f32 %v2156, %v3100
    %v3102 = vand.u32 %v3101, 4294901760
    %v3103 = vsub.f32 %v3101, %v3102
    %v3104 = vand.u32 %v3103, 4294901760
    %3105 = vmatpush1.msra.mxu0 %v3104
    %3106 = vmatprep.subr.mxu0 0.0
    %v3107 = vand.u32 %v2157, 4294901760
    %v3108 = vsub.f32 %v2157, %v3107
    %v3109 = vand.u32 %v3108, 4294901760
    %v3110 = vsub.f32 %v3108, %v3109
    %v3111 = vand.u32 %v3110, 4294901760
    %3112 = vmatpush1.msra.mxu0 %v3111
    %3113 = vmatprep.subr.mxu0 0.0
    %v3114 = vand.u32 %v2158, 4294901760
    %v3115 = vsub.f32 %v2158, %v3114
    %v3116 = vand.u32 %v3115, 4294901760
    %v3117 = vsub.f32 %v3115, %v3116
    %v3118 = vand.u32 %v3117, 4294901760
    %3119 = vmatpush1.msra.mxu0 %v3118
    %3120 = vmatprep.subr.mxu0 0.0
    %v3121 = vand.u32 %v2159, 4294901760
    %v3122 = vsub.f32 %v2159, %v3121
    %v3123 = vand.u32 %v3122, 4294901760
    %v3124 = vsub.f32 %v3122, %v3123
    %v3125 = vand.u32 %v3124, 4294901760
    %3126 = vmatpush1.msra.mxu0 %v3125
    %3127 = vmatprep.subr.mxu0 0.0
    %v3128 = vand.u32 %v2160, 4294901760
    %v3129 = vsub.f32 %v2160, %v3128
    %v3130 = vand.u32 %v3129, 4294901760
    %v3131 = vsub.f32 %v3129, %v3130
    %v3132 = vand.u32 %v3131, 4294901760
    %3133 = vmatpush1.msra.mxu0 %v3132
    %3134 = vmatprep.subr.mxu0 0.0
    %v3135 = vand.u32 %v2161, 4294901760
    %v3136 = vsub.f32 %v2161, %v3135
    %v3137 = vand.u32 %v3136, 4294901760
    %v3138 = vsub.f32 %v3136, %v3137
    %v3139 = vand.u32 %v3138, 4294901760
    %3140 = vmatpush1.msra.mxu0 %v3139
    %3141 = vmatprep.subr.mxu0 0.0
    %v3142 = vand.u32 %v2162, 4294901760
    %v3143 = vsub.f32 %v2162, %v3142
    %v3144 = vand.u32 %v3143, 4294901760
    %v3145 = vsub.f32 %v3143, %v3144
    %v3146 = vand.u32 %v3145, 4294901760
    %3147 = vmatpush1.msra.mxu0 %v3146
    %3148 = vmatprep.subr.mxu0 0.0
    %v3149 = vand.u32 %v2163, 4294901760
    %v3150 = vsub.f32 %v2163, %v3149
    %v3151 = vand.u32 %v3150, 4294901760
    %v3152 = vsub.f32 %v3150, %v3151
    %v3153 = vand.u32 %v3152, 4294901760
    %3154 = vmatpush1.msra.mxu0 %v3153
    %3155 = vmatprep.subr.mxu0 0.0
    %v3156 = vand.u32 %v2164, 4294901760
    %v3157 = vsub.f32 %v2164, %v3156
    %v3158 = vand.u32 %v3157, 4294901760
    %v3159 = vsub.f32 %v3157, %v3158
    %v3160 = vand.u32 %v3159, 4294901760
    %3161 = vmatpush1.msra.mxu0 %v3160
    %3162 = vmatprep.subr.mxu0 0.0
    %v3163 = vand.u32 %v2165, 4294901760
    %v3164 = vsub.f32 %v2165, %v3163
    %v3165 = vand.u32 %v3164, 4294901760
    %v3166 = vsub.f32 %v3164, %v3165
    %v3167 = vand.u32 %v3166, 4294901760
    %3168 = vmatpush1.msra.mxu0 %v3167
    %3169 = vmatprep.subr.mxu0 0.0
    %v3170 = vand.u32 %v2166, 4294901760
    %v3171 = vsub.f32 %v2166, %v3170
    %v3172 = vand.u32 %v3171, 4294901760
    %v3173 = vsub.f32 %v3171, %v3172
    %v3174 = vand.u32 %v3173, 4294901760
    %3175 = vmatpush1.msra.mxu0 %v3174
    %3176 = vmatprep.subr.mxu0 0.0
    %v3177 = vand.u32 %v2167, 4294901760
    %v3178 = vsub.f32 %v2167, %v3177
    %v3179 = vand.u32 %v3178, 4294901760
    %v3180 = vsub.f32 %v3178, %v3179
    %v3181 = vand.u32 %v3180, 4294901760
    %3182 = vmatpush1.msra.mxu0 %v3181
    %3183 = vmatprep.subr.mxu0 0.0
    %v3184 = vand.u32 %v2168, 4294901760
    %v3185 = vsub.f32 %v2168, %v3184
    %v3186 = vand.u32 %v3185, 4294901760
    %v3187 = vsub.f32 %v3185, %v3186
    %v3188 = vand.u32 %v3187, 4294901760
    %3189 = vmatpush1.msra.mxu0 %v3188
    %3190 = vmatprep.subr.mxu0 0.0
    %v3191 = vand.u32 %v2169, 4294901760
    %v3192 = vsub.f32 %v2169, %v3191
    %v3193 = vand.u32 %v3192, 4294901760
    %v3194 = vsub.f32 %v3192, %v3193
    %v3195 = vand.u32 %v3194, 4294901760
    %3196 = vmatpush1.msra.mxu0 %v3195
    %3197 = vmatprep.subr.mxu0 0.0
    %v3198 = vand.u32 %v2170, 4294901760
    %v3199 = vsub.f32 %v2170, %v3198
    %v3200 = vand.u32 %v3199, 4294901760
    %v3201 = vsub.f32 %v3199, %v3200
    %v3202 = vand.u32 %v3201, 4294901760
    %3203 = vmatpush1.msra.mxu0 %v3202
    %3204 = vmatprep.subr.mxu0 0.0
    %v3205 = vand.u32 %v2171, 4294901760
    %v3206 = vsub.f32 %v2171, %v3205
    %v3207 = vand.u32 %v3206, 4294901760
    %v3208 = vsub.f32 %v3206, %v3207
    %v3209 = vand.u32 %v3208, 4294901760
    %3210 = vmatpush1.msra.mxu0 %v3209
    %3211 = vmatprep.subr.mxu0 0.0
    %v3212 = vand.u32 %v2172, 4294901760
    %v3213 = vsub.f32 %v2172, %v3212
    %v3214 = vand.u32 %v3213, 4294901760
    %v3215 = vsub.f32 %v3213, %v3214
    %v3216 = vand.u32 %v3215, 4294901760
    %3217 = vmatpush1.msra.mxu0 %v3216
    %3218 = vmatprep.subr.mxu0 0.0
    %v3219 = vand.u32 %v2173, 4294901760
    %v3220 = vsub.f32 %v2173, %v3219
    %v3221 = vand.u32 %v3220, 4294901760
    %v3222 = vsub.f32 %v3220, %v3221
    %v3223 = vand.u32 %v3222, 4294901760
    %3224 = vmatpush1.msra.mxu0 %v3223
    %3225 = vmatprep.subr.mxu0 0.0
    %v3226 = vand.u32 %v2174, 4294901760
    %v3227 = vsub.f32 %v2174, %v3226
    %v3228 = vand.u32 %v3227, 4294901760
    %v3229 = vsub.f32 %v3227, %v3228
    %v3230 = vand.u32 %v3229, 4294901760
    %3231 = vmatpush1.msra.mxu0 %v3230
    %v3232 = vand.u32 %v2176, 4294901760
    %3233 = vmatprep.mubr.f32.mxu0 %v3232
    %v3234 = vand.u32 %v2175, 4294901760
    %3235 = vmatmul.mubr.f32.gmra.mrb[0].mxu0 %v3234
    %v3236 = vpop.f32.mrb[0].mxu0
    %v3237 = vadd.f32 %v2540, %v3236
    %v3238 = vpop.f32.mrb[0].mxu0
    %v3239 = vand.u32 %v2178, 4294901760
    %3240 = vmatprep.mubr.f32.mxu0 %v3239
    %v3241 = vand.u32 %v2177, 4294901760
    %3242 = vmatmul.mubr.f32.gmra.mrb[0].mxu0 %v3241
    %v3243 = vpop.f32.mrb[0].mxu0
    %v3244 = vadd.f32 %v2555, %v3243
    %v3245 = vpop.f32.mrb[0].mxu0
    %v3246 = vand.u32 %v2180, 4294901760
    %3247 = vmatprep.mubr.f32.mxu0 %v3246
    %v3248 = vand.u32 %v2179, 4294901760
    %3249 = vmatmul.mubr.f32.gmra.mrb[0].mxu0 %v3248
    %v3250 = vpop.f32.mrb[0].mxu0
    %v3251 = vadd.f32 %v2570, %v3250
    %v3252 = vpop.f32.mrb[0].mxu0
    %v3253 = vand.u32 %v2182, 4294901760
    %3254 = vmatprep.mubr.f32.mxu0 %v3253
    %v3255 = vand.u32 %v2181, 4294901760
    %3256 = vmatmul.mubr.f32.gmra.mrb[0].mxu0 %v3255
    %v3257 = vpop.f32.mrb[0].mxu0
    %v3258 = vadd.f32 %v2585, %v3257
    %v3259 = vpop.f32.mrb[0].mxu0
    %v3260 = vand.u32 %v2184, 4294901760
    %3261 = vmatprep.mubr.f32.mxu0 %v3260
    %v3262 = vand.u32 %v2183, 4294901760
    %3263 = vmatmul.mubr.f32.gmra.mrb[0].mxu0 %v3262
    %v3264 = vpop.f32.mrb[0].mxu0
    %v3265 = vadd.f32 %v2600, %v3264
    %v3266 = vpop.f32.mrb[0].mxu0
    %v3267 = vand.u32 %v2186, 4294901760
    %3268 = vmatprep.mubr.f32.mxu0 %v3267
    %v3269 = vand.u32 %v2185, 4294901760
    %3270 = vmatmul.mubr.f32.gmra.mrb[0].mxu0 %v3269
    %v3271 = vpop.f32.mrb[0].mxu0
    %v3272 = vadd.f32 %v2615, %v3271
    %v3273 = vpop.f32.mrb[0].mxu0
    %v3274 = vand.u32 %v2188, 4294901760
    %3275 = vmatprep.mubr.f32.mxu0 %v3274
    %v3276 = vand.u32 %v2187, 4294901760
    %3277 = vmatmul.mubr.f32.gmra.mrb[0].mxu0 %v3276
    %v3278 = vpop.f32.mrb[0].mxu0
    %v3279 = vadd.f32 %v2630, %v3278
    %v3280 = vpop.f32.mrb[0].mxu0
    %v3281 = vand.u32 %v2190, 4294901760
    %3282 = vmatprep.mubr.f32.mxu0 %v3281
    %v3283 = vand.u32 %v2189, 4294901760
    %3284 = vmatmul.mubr.f32.gmra.mrb[0].mxu0 %v3283
    %v3285 = vpop.f32.mrb[0].mxu0
    %v3286 = vadd.f32 %v2645, %v3285
    %v3287 = vpop.f32.mrb[0].mxu0
    %v3288 = vand.u32 %v2192, 4294901760
    %3289 = vmatprep.mubr.f32.mxu0 %v3288
    %v3290 = vand.u32 %v2191, 4294901760
    %3291 = vmatmul.mubr.f32.gmra.mrb[0].mxu0 %v3290
    %v3292 = vpop.f32.mrb[0].mxu0
    %v3293 = vadd.f32 %v2660, %v3292
    %v3294 = vpop.f32.mrb[0].mxu0
    %v3295 = vand.u32 %v2194, 4294901760
    %3296 = vmatprep.mubr.f32.mxu0 %v3295
    %v3297 = vand.u32 %v2193, 4294901760
    %3298 = vmatmul.mubr.f32.gmra.mrb[0].mxu0 %v3297
    %v3299 = vpop.f32.mrb[0].mxu0
    %v3300 = vadd.f32 %v2675, %v3299
    %v3301 = vpop.f32.mrb[0].mxu0
    %v3302 = vand.u32 %v2196, 4294901760
    %3303 = vmatprep.mubr.f32.mxu0 %v3302
    %v3304 = vand.u32 %v2195, 4294901760
    %3305 = vmatmul.mubr.f32.gmra.mrb[0].mxu0 %v3304
    %v3306 = vpop.f32.mrb[0].mxu0
    %v3307 = vadd.f32 %v2690, %v3306
    %v3308 = vpop.f32.mrb[0].mxu0
    %v3309 = vand.u32 %v2198, 4294901760
    %3310 = vmatprep.mubr.f32.mxu0 %v3309
    %v3311 = vand.u32 %v2197, 4294901760
    %3312 = vmatmul.mubr.f32.gmra.mrb[0].mxu0 %v3311
    %v3313 = vpop.f32.mrb[0].mxu0
    %v3314 = vadd.f32 %v2705, %v3313
    %v3315 = vpop.f32.mrb[0].mxu0
    %v3316 = vand.u32 %v2200, 4294901760
    %3317 = vmatprep.mubr.f32.mxu0 %v3316
    %v3318 = vand.u32 %v2199, 4294901760
    %3319 = vmatmul.mubr.f32.gmra.mrb[0].mxu0 %v3318
    %v3320 = vpop.f32.mrb[0].mxu0
    %v3321 = vadd.f32 %v2720, %v3320
    %v3322 = vpop.f32.mrb[0].mxu0
    %v3323 = vand.u32 %v2202, 4294901760
    %3324 = vmatprep.mubr.f32.mxu0 %v3323
    %v3325 = vand.u32 %v2201, 4294901760
    %3326 = vmatmul.mubr.f32.gmra.mrb[0].mxu0 %v3325
    %v3327 = vpop.f32.mrb[0].mxu0
    %v3328 = vadd.f32 %v2735, %v3327
    %v3329 = vpop.f32.mrb[0].mxu0
    %v3330 = vand.u32 %v2204, 4294901760
    %3331 = vmatprep.mubr.f32.mxu0 %v3330
    %v3332 = vand.u32 %v2203, 4294901760
    %3333 = vmatmul.mubr.f32.gmra.mrb[0].mxu0 %v3332
    %v3334 = vpop.f32.mrb[0].mxu0
    %v3335 = vadd.f32 %v2750, %v3334
    %v3336 = vpop.f32.mrb[0].mxu0
    %v3337 = vand.u32 %v2206, 4294901760
    %3338 = vmatprep.mubr.f32.mxu0 %v3337
    %v3339 = vand.u32 %v2205, 4294901760
    %3340 = vmatmul.mubr.f32.gmra.mrb[0].mxu0 %v3339
    %v3341 = vpop.f32.mrb[0].mxu0
    %v3342 = vadd.f32 %v2765, %v3341
    %v3343 = vpop.f32.mrb[0].mxu0
    %v3344 = vand.u32 %v2208, 4294901760
    %3345 = vmatprep.mubr.f32.mxu0 %v3344
    %v3346 = vand.u32 %v2207, 4294901760
    %3347 = vmatmul.mubr.f32.gmra.mrb[0].mxu0 %v3346
    %v3348 = vpop.f32.mrb[0].mxu0
    %v3349 = vadd.f32 %v2780, %v3348
    %v3350 = vpop.f32.mrb[0].mxu0
    %v3351 = vand.u32 %v2210, 4294901760
    %3352 = vmatprep.mubr.f32.mxu0 %v3351
    %v3353 = vand.u32 %v2209, 4294901760
    %3354 = vmatmul.mubr.f32.gmra.mrb[0].mxu0 %v3353
    %v3355 = vpop.f32.mrb[0].mxu0
    %v3356 = vadd.f32 %v2795, %v3355
    %v3357 = vpop.f32.mrb[0].mxu0
    %v3358 = vand.u32 %v2212, 4294901760
    %3359 = vmatprep.mubr.f32.mxu0 %v3358
    %v3360 = vand.u32 %v2211, 4294901760
    %3361 = vmatmul.mubr.f32.gmra.mrb[0].mxu0 %v3360
    %v3362 = vpop.f32.mrb[0].mxu0
    %v3363 = vadd.f32 %v2810, %v3362
    %v3364 = vpop.f32.mrb[0].mxu0
    %v3365 = vand.u32 %v2214, 4294901760
    %3366 = vmatprep.mubr.f32.mxu0 %v3365
    %v3367 = vand.u32 %v2213, 4294901760
    %3368 = vmatmul.mubr.f32.gmra.mrb[0].mxu0 %v3367
    %v3369 = vpop.f32.mrb[0].mxu0
    %v3370 = vadd.f32 %v2825, %v3369
    %v3371 = vpop.f32.mrb[0].mxu0
    %v3372 = vand.u32 %v2216, 4294901760
    %3373 = vmatprep.mubr.f32.mxu0 %v3372
    %v3374 = vand.u32 %v2215, 4294901760
    %3375 = vmatmul.mubr.f32.gmra.mrb[0].mxu0 %v3374
    %v3376 = vpop.f32.mrb[0].mxu0
    %v3377 = vadd.f32 %v2840, %v3376
    %v3378 = vpop.f32.mrb[0].mxu0
    %v3379 = vand.u32 %v2218, 4294901760
    %3380 = vmatprep.mubr.f32.mxu0 %v3379
    %v3381 = vand.u32 %v2217, 4294901760
    %3382 = vmatmul.mubr.f32.gmra.mrb[0].mxu0 %v3381
    %v3383 = vpop.f32.mrb[0].mxu0
    %v3384 = vadd.f32 %v2855, %v3383
    %v3385 = vpop.f32.mrb[0].mxu0
    %v3386 = vand.u32 %v2220, 4294901760
    %3387 = vmatprep.mubr.f32.mxu0 %v3386
    %v3388 = vand.u32 %v2219, 4294901760
    %3389 = vmatmul.mubr.f32.gmra.mrb[0].mxu0 %v3388
    %v3390 = vpop.f32.mrb[0].mxu0
    %v3391 = vadd.f32 %v2870, %v3390
    %v3392 = vpop.f32.mrb[0].mxu0
    %v3393 = vand.u32 %v2222, 4294901760
    %3394 = vmatprep.mubr.f32.mxu0 %v3393
    %v3395 = vand.u32 %v2221, 4294901760
    %3396 = vmatmul.mubr.f32.gmra.mrb[0].mxu0 %v3395
    %v3397 = vpop.f32.mrb[0].mxu0
    %v3398 = vadd.f32 %v2885, %v3397
    %v3399 = vpop.f32.mrb[0].mxu0
    %v3400 = vand.u32 %v2224, 4294901760
    %3401 = vmatprep.mubr.f32.mxu0 %v3400
    %v3402 = vand.u32 %v2223, 4294901760
    %3403 = vmatmul.mubr.f32.gmra.mrb[0].mxu0 %v3402
    %v3404 = vpop.f32.mrb[0].mxu0
    %v3405 = vadd.f32 %v2900, %v3404
    %v3406 = vpop.f32.mrb[0].mxu0
    %v3407 = vand.u32 %v2226, 4294901760
    %3408 = vmatprep.mubr.f32.mxu0 %v3407
    %v3409 = vand.u32 %v2225, 4294901760
    %3410 = vmatmul.mubr.f32.gmra.mrb[0].mxu0 %v3409
    %v3411 = vpop.f32.mrb[0].mxu0
    %v3412 = vadd.f32 %v2915, %v3411
    %v3413 = vpop.f32.mrb[0].mxu0
    %v3414 = vand.u32 %v2228, 4294901760
    %3415 = vmatprep.mubr.f32.mxu0 %v3414
    %v3416 = vand.u32 %v2227, 4294901760
    %3417 = vmatmul.mubr.f32.gmra.mrb[0].mxu0 %v3416
    %v3418 = vpop.f32.mrb[0].mxu0
    %v3419 = vadd.f32 %v2930, %v3418
    %v3420 = vpop.f32.mrb[0].mxu0
    %v3421 = vand.u32 %v2230, 4294901760
    %3422 = vmatprep.mubr.f32.mxu0 %v3421
    %v3423 = vand.u32 %v2229, 4294901760
    %3424 = vmatmul.mubr.f32.gmra.mrb[0].mxu0 %v3423
    %v3425 = vpop.f32.mrb[0].mxu0
    %v3426 = vadd.f32 %v2945, %v3425
    %v3427 = vpop.f32.mrb[0].mxu0
    %v3428 = vand.u32 %v2232, 4294901760
    %3429 = vmatprep.mubr.f32.mxu0 %v3428
    %v3430 = vand.u32 %v2231, 4294901760
    %3431 = vmatmul.mubr.f32.gmra.mrb[0].mxu0 %v3430
    %v3432 = vpop.f32.mrb[0].mxu0
    %v3433 = vadd.f32 %v2960, %v3432
    %v3434 = vpop.f32.mrb[0].mxu0
    %v3435 = vand.u32 %v2234, 4294901760
    %3436 = vmatprep.mubr.f32.mxu0 %v3435
    %v3437 = vand.u32 %v2233, 4294901760
    %3438 = vmatmul.mubr.f32.gmra.mrb[0].mxu0 %v3437
    %v3439 = vpop.f32.mrb[0].mxu0
    %v3440 = vadd.f32 %v2975, %v3439
    %v3441 = vpop.f32.mrb[0].mxu0
    %v3442 = vand.u32 %v2236, 4294901760
    %3443 = vmatprep.mubr.f32.mxu0 %v3442
    %v3444 = vand.u32 %v2235, 4294901760
    %3445 = vmatmul.mubr.f32.gmra.mrb[0].mxu0 %v3444
    %v3446 = vpop.f32.mrb[0].mxu0
    %v3447 = vadd.f32 %v2990, %v3446
    %v3448 = vpop.f32.mrb[0].mxu0
    %v3449 = vand.u32 %v2238, 4294901760
    %3450 = vmatprep.mubr.f32.mxu0 %v3449
    %v3451 = vand.u32 %v2237, 4294901760
    %3452 = vmatmul.mubr.f32.gmra.mrb[0].mxu0 %v3451
    %v3453 = vpop.f32.mrb[0].mxu0
    %v3454 = vadd.f32 %v3005, %v3453
    %v3455 = vpop.f32.mrb[0].mxu0
    %3456 = vdwg.mxu0
    %3457 = vmatprep.subr.mxu0 0.0
    %v3458 = vand.u32 %v2143, 4294901760
    %v3459 = vsub.f32 %v2143, %v3458
    %3460 = vmatpush1.msra.mxu0 %v3459
    %3461 = vmatprep.subr.mxu0 0.0
    %v3462 = vand.u32 %v2144, 4294901760
    %v3463 = vsub.f32 %v2144, %v3462
    %3464 = vmatpush1.msra.mxu0 %v3463
    %3465 = vmatprep.subr.mxu0 0.0
    %v3466 = vand.u32 %v2145, 4294901760
    %v3467 = vsub.f32 %v2145, %v3466
    %3468 = vmatpush1.msra.mxu0 %v3467
    %3469 = vmatprep.subr.mxu0 0.0
    %v3470 = vand.u32 %v2146, 4294901760
    %v3471 = vsub.f32 %v2146, %v3470
    %3472 = vmatpush1.msra.mxu0 %v3471
    %3473 = vmatprep.subr.mxu0 0.0
    %v3474 = vand.u32 %v2147, 4294901760
    %v3475 = vsub.f32 %v2147, %v3474
    %3476 = vmatpush1.msra.mxu0 %v3475
    %3477 = vmatprep.subr.mxu0 0.0
    %v3478 = vand.u32 %v2148, 4294901760
    %v3479 = vsub.f32 %v2148, %v3478
    %3480 = vmatpush1.msra.mxu0 %v3479
    %3481 = vmatprep.subr.mxu0 0.0
    %v3482 = vand.u32 %v2149, 4294901760
    %v3483 = vsub.f32 %v2149, %v3482
    %3484 = vmatpush1.msra.mxu0 %v3483
    %3485 = vmatprep.subr.mxu0 0.0
    %v3486 = vand.u32 %v2150, 4294901760
    %v3487 = vsub.f32 %v2150, %v3486
    %3488 = vmatpush1.msra.mxu0 %v3487
    %3489 = vmatprep.subr.mxu0 0.0
    %v3490 = vand.u32 %v2151, 4294901760
    %v3491 = vsub.f32 %v2151, %v3490
    %3492 = vmatpush1.msra.mxu0 %v3491
    %3493 = vmatprep.subr.mxu0 0.0
    %v3494 = vand.u32 %v2152, 4294901760
    %v3495 = vsub.f32 %v2152, %v3494
    %3496 = vmatpush1.msra.mxu0 %v3495
    %3497 = vmatprep.subr.mxu0 0.0
    %v3498 = vand.u32 %v2153, 4294901760
    %v3499 = vsub.f32 %v2153, %v3498
    %3500 = vmatpush1.msra.mxu0 %v3499
    %3501 = vmatprep.subr.mxu0 0.0
    %v3502 = vand.u32 %v2154, 4294901760
    %v3503 = vsub.f32 %v2154, %v3502
    %3504 = vmatpush1.msra.mxu0 %v3503
    %3505 = vmatprep.subr.mxu0 0.0
    %v3506 = vand.u32 %v2155, 4294901760
    %v3507 = vsub.f32 %v2155, %v3506
    %3508 = vmatpush1.msra.mxu0 %v3507
    %3509 = vmatprep.subr.mxu0 0.0
    %v3510 = vand.u32 %v2156, 4294901760
    %v3511 = vsub.f32 %v2156, %v3510
    %3512 = vmatpush1.msra.mxu0 %v3511
    %3513 = vmatprep.subr.mxu0 0.0
    %v3514 = vand.u32 %v2157, 4294901760
    %v3515 = vsub.f32 %v2157, %v3514
    %3516 = vmatpush1.msra.mxu0 %v3515
    %3517 = vmatprep.subr.mxu0 0.0
    %v3518 = vand.u32 %v2158, 4294901760
    %v3519 = vsub.f32 %v2158, %v3518
    %3520 = vmatpush1.msra.mxu0 %v3519
    %3521 = vmatprep.subr.mxu0 0.0
    %v3522 = vand.u32 %v2159, 4294901760
    %v3523 = vsub.f32 %v2159, %v3522
    %3524 = vmatpush1.msra.mxu0 %v3523
    %3525 = vmatprep.subr.mxu0 0.0
    %v3526 = vand.u32 %v2160, 4294901760
    %v3527 = vsub.f32 %v2160, %v3526
    %3528 = vmatpush1.msra.mxu0 %v3527
    %3529 = vmatprep.subr.mxu0 0.0
    %v3530 = vand.u32 %v2161, 4294901760
    %v3531 = vsub.f32 %v2161, %v3530
    %3532 = vmatpush1.msra.mxu0 %v3531
    %3533 = vmatprep.subr.mxu0 0.0
    %v3534 = vand.u32 %v2162, 4294901760
    %v3535 = vsub.f32 %v2162, %v3534
    %3536 = vmatpush1.msra.mxu0 %v3535
    %3537 = vmatprep.subr.mxu0 0.0
    %v3538 = vand.u32 %v2163, 4294901760
    %v3539 = vsub.f32 %v2163, %v3538
    %3540 = vmatpush1.msra.mxu0 %v3539
    %3541 = vmatprep.subr.mxu0 0.0
    %v3542 = vand.u32 %v2164, 4294901760
    %v3543 = vsub.f32 %v2164, %v3542
    %3544 = vmatpush1.msra.mxu0 %v3543
    %3545 = vmatprep.subr.mxu0 0.0
    %v3546 = vand.u32 %v2165, 4294901760
    %v3547 = vsub.f32 %v2165, %v3546
    %3548 = vmatpush1.msra.mxu0 %v3547
    %3549 = vmatprep.subr.mxu0 0.0
    %v3550 = vand.u32 %v2166, 4294901760
    %v3551 = vsub.f32 %v2166, %v3550
    %3552 = vmatpush1.msra.mxu0 %v3551
    %3553 = vmatprep.subr.mxu0 0.0
    %v3554 = vand.u32 %v2167, 4294901760
    %v3555 = vsub.f32 %v2167, %v3554
    %3556 = vmatpush1.msra.mxu0 %v3555
    %3557 = vmatprep.subr.mxu0 0.0
    %v3558 = vand.u32 %v2168, 4294901760
    %v3559 = vsub.f32 %v2168, %v3558
    %3560 = vmatpush1.msra.mxu0 %v3559
    %3561 = vmatprep.subr.mxu0 0.0
    %v3562 = vand.u32 %v2169, 4294901760
    %v3563 = vsub.f32 %v2169, %v3562
    %3564 = vmatpush1.msra.mxu0 %v3563
    %3565 = vmatprep.subr.mxu0 0.0
    %v3566 = vand.u32 %v2170, 4294901760
    %v3567 = vsub.f32 %v2170, %v3566
    %3568 = vmatpush1.msra.mxu0 %v3567
    %3569 = vmatprep.subr.mxu0 0.0
    %v3570 = vand.u32 %v2171, 4294901760
    %v3571 = vsub.f32 %v2171, %v3570
    %3572 = vmatpush1.msra.mxu0 %v3571
    %3573 = vmatprep.subr.mxu0 0.0
    %v3574 = vand.u32 %v2172, 4294901760
    %v3575 = vsub.f32 %v2172, %v3574
    %3576 = vmatpush1.msra.mxu0 %v3575
    %3577 = vmatprep.subr.mxu0 0.0
    %v3578 = vand.u32 %v2173, 4294901760
    %v3579 = vsub.f32 %v2173, %v3578
    %3580 = vmatpush1.msra.mxu0 %v3579
    %3581 = vmatprep.subr.mxu0 0.0
    %v3582 = vand.u32 %v2174, 4294901760
    %v3583 = vsub.f32 %v2174, %v3582
    %3584 = vmatpush1.msra.mxu0 %v3583
    %v3585 = vand.u32 %v2176, 4294901760
    %v3586 = vsub.f32 %v2176, %v3585
    %3587 = vmatprep.mubr.f32.mxu0 %v3586
    %v3588 = vand.u32 %v2175, 4294901760
    %v3589 = vsub.f32 %v2175, %v3588
    %3590 = vmatmul.mubr.f32.gmra.mrb[0].mxu0 %v3589
    %v3591 = vpop.f32.mrb[0].mxu0
    %v3592 = vadd.f32 %v3237, %v3591
    %v3593 = vpop.f32.mrb[0].mxu0
    %v3594 = vand.u32 %v2178, 4294901760
    %v3595 = vsub.f32 %v2178, %v3594
    %3596 = vmatprep.mubr.f32.mxu0 %v3595
    %v3597 = vand.u32 %v2177, 4294901760
    %v3598 = vsub.f32 %v2177, %v3597
    %3599 = vmatmul.mubr.f32.gmra.mrb[0].mxu0 %v3598
    %v3600 = vpop.f32.mrb[0].mxu0
    %v3601 = vadd.f32 %v3244, %v3600
    %v3602 = vpop.f32.mrb[0].mxu0
    %v3603 = vand.u32 %v2180, 4294901760
    %v3604 = vsub.f32 %v2180, %v3603
    %3605 = vmatprep.mubr.f32.mxu0 %v3604
    %v3606 = vand.u32 %v2179, 4294901760
    %v3607 = vsub.f32 %v2179, %v3606
    %3608 = vmatmul.mubr.f32.gmra.mrb[0].mxu0 %v3607
    %v3609 = vpop.f32.mrb[0].mxu0
    %v3610 = vadd.f32 %v3251, %v3609
    %v3611 = vpop.f32.mrb[0].mxu0
    %v3612 = vand.u32 %v2182, 4294901760
    %v3613 = vsub.f32 %v2182, %v3612
    %3614 = vmatprep.mubr.f32.mxu0 %v3613
    %v3615 = vand.u32 %v2181, 4294901760
    %v3616 = vsub.f32 %v2181, %v3615
    %3617 = vmatmul.mubr.f32.gmra.mrb[0].mxu0 %v3616
    %v3618 = vpop.f32.mrb[0].mxu0
    %v3619 = vadd.f32 %v3258, %v3618
    %v3620 = vpop.f32.mrb[0].mxu0
    %v3621 = vand.u32 %v2184, 4294901760
    %v3622 = vsub.f32 %v2184, %v3621
    %3623 = vmatprep.mubr.f32.mxu0 %v3622
    %v3624 = vand.u32 %v2183, 4294901760
    %v3625 = vsub.f32 %v2183, %v3624
    %3626 = vmatmul.mubr.f32.gmra.mrb[0].mxu0 %v3625
    %v3627 = vpop.f32.mrb[0].mxu0
    %v3628 = vadd.f32 %v3265, %v3627
    %v3629 = vpop.f32.mrb[0].mxu0
    %v3630 = vand.u32 %v2186, 4294901760
    %v3631 = vsub.f32 %v2186, %v3630
    %3632 = vmatprep.mubr.f32.mxu0 %v3631
    %v3633 = vand.u32 %v2185, 4294901760
    %v3634 = vsub.f32 %v2185, %v3633
    %3635 = vmatmul.mubr.f32.gmra.mrb[0].mxu0 %v3634
    %v3636 = vpop.f32.mrb[0].mxu0
    %v3637 = vadd.f32 %v3272, %v3636
    %v3638 = vpop.f32.mrb[0].mxu0
    %v3639 = vand.u32 %v2188, 4294901760
    %v3640 = vsub.f32 %v2188, %v3639
    %3641 = vmatprep.mubr.f32.mxu0 %v3640
    %v3642 = vand.u32 %v2187, 4294901760
    %v3643 = vsub.f32 %v2187, %v3642
    %3644 = vmatmul.mubr.f32.gmra.mrb[0].mxu0 %v3643
    %v3645 = vpop.f32.mrb[0].mxu0
    %v3646 = vadd.f32 %v3279, %v3645
    %v3647 = vpop.f32.mrb[0].mxu0
    %v3648 = vand.u32 %v2190, 4294901760
    %v3649 = vsub.f32 %v2190, %v3648
    %3650 = vmatprep.mubr.f32.mxu0 %v3649
    %v3651 = vand.u32 %v2189, 4294901760
    %v3652 = vsub.f32 %v2189, %v3651
    %3653 = vmatmul.mubr.f32.gmra.mrb[0].mxu0 %v3652
    %v3654 = vpop.f32.mrb[0].mxu0
    %v3655 = vadd.f32 %v3286, %v3654
    %v3656 = vpop.f32.mrb[0].mxu0
    %v3657 = vand.u32 %v2192, 4294901760
    %v3658 = vsub.f32 %v2192, %v3657
    %3659 = vmatprep.mubr.f32.mxu0 %v3658
    %v3660 = vand.u32 %v2191, 4294901760
    %v3661 = vsub.f32 %v2191, %v3660
    %3662 = vmatmul.mubr.f32.gmra.mrb[0].mxu0 %v3661
    %v3663 = vpop.f32.mrb[0].mxu0
    %v3664 = vadd.f32 %v3293, %v3663
    %v3665 = vpop.f32.mrb[0].mxu0
    %v3666 = vand.u32 %v2194, 4294901760
    %v3667 = vsub.f32 %v2194, %v3666
    %3668 = vmatprep.mubr.f32.mxu0 %v3667
    %v3669 = vand.u32 %v2193, 4294901760
    %v3670 = vsub.f32 %v2193, %v3669
    %3671 = vmatmul.mubr.f32.gmra.mrb[0].mxu0 %v3670
    %v3672 = vpop.f32.mrb[0].mxu0
    %v3673 = vadd.f32 %v3300, %v3672
    %v3674 = vpop.f32.mrb[0].mxu0
    %v3675 = vand.u32 %v2196, 4294901760
    %v3676 = vsub.f32 %v2196, %v3675
    %3677 = vmatprep.mubr.f32.mxu0 %v3676
    %v3678 = vand.u32 %v2195, 4294901760
    %v3679 = vsub.f32 %v2195, %v3678
    %3680 = vmatmul.mubr.f32.gmra.mrb[0].mxu0 %v3679
    %v3681 = vpop.f32.mrb[0].mxu0
    %v3682 = vadd.f32 %v3307, %v3681
    %v3683 = vpop.f32.mrb[0].mxu0
    %v3684 = vand.u32 %v2198, 4294901760
    %v3685 = vsub.f32 %v2198, %v3684
    %3686 = vmatprep.mubr.f32.mxu0 %v3685
    %v3687 = vand.u32 %v2197, 4294901760
    %v3688 = vsub.f32 %v2197, %v3687
    %3689 = vmatmul.mubr.f32.gmra.mrb[0].mxu0 %v3688
    %v3690 = vpop.f32.mrb[0].mxu0
    %v3691 = vadd.f32 %v3314, %v3690
    %v3692 = vpop.f32.mrb[0].mxu0
    %v3693 = vand.u32 %v2200, 4294901760
    %v3694 = vsub.f32 %v2200, %v3693
    %3695 = vmatprep.mubr.f32.mxu0 %v3694
    %v3696 = vand.u32 %v2199, 4294901760
    %v3697 = vsub.f32 %v2199, %v3696
    %3698 = vmatmul.mubr.f32.gmra.mrb[0].mxu0 %v3697
    %v3699 = vpop.f32.mrb[0].mxu0
    %v3700 = vadd.f32 %v3321, %v3699
    %v3701 = vpop.f32.mrb[0].mxu0
    %v3702 = vand.u32 %v2202, 4294901760
    %v3703 = vsub.f32 %v2202, %v3702
    %3704 = vmatprep.mubr.f32.mxu0 %v3703
    %v3705 = vand.u32 %v2201, 4294901760
    %v3706 = vsub.f32 %v2201, %v3705
    %3707 = vmatmul.mubr.f32.gmra.mrb[0].mxu0 %v3706
    %v3708 = vpop.f32.mrb[0].mxu0
    %v3709 = vadd.f32 %v3328, %v3708
    %v3710 = vpop.f32.mrb[0].mxu0
    %v3711 = vand.u32 %v2204, 4294901760
    %v3712 = vsub.f32 %v2204, %v3711
    %3713 = vmatprep.mubr.f32.mxu0 %v3712
    %v3714 = vand.u32 %v2203, 4294901760
    %v3715 = vsub.f32 %v2203, %v3714
    %3716 = vmatmul.mubr.f32.gmra.mrb[0].mxu0 %v3715
    %v3717 = vpop.f32.mrb[0].mxu0
    %v3718 = vadd.f32 %v3335, %v3717
    %v3719 = vpop.f32.mrb[0].mxu0
    %v3720 = vand.u32 %v2206, 4294901760
    %v3721 = vsub.f32 %v2206, %v3720
    %3722 = vmatprep.mubr.f32.mxu0 %v3721
    %v3723 = vand.u32 %v2205, 4294901760
    %v3724 = vsub.f32 %v2205, %v3723
    %3725 = vmatmul.mubr.f32.gmra.mrb[0].mxu0 %v3724
    %v3726 = vpop.f32.mrb[0].mxu0
    %v3727 = vadd.f32 %v3342, %v3726
    %v3728 = vpop.f32.mrb[0].mxu0
    %v3729 = vand.u32 %v2208, 4294901760
    %v3730 = vsub.f32 %v2208, %v3729
    %3731 = vmatprep.mubr.f32.mxu0 %v3730
    %v3732 = vand.u32 %v2207, 4294901760
    %v3733 = vsub.f32 %v2207, %v3732
    %3734 = vmatmul.mubr.f32.gmra.mrb[0].mxu0 %v3733
    %v3735 = vpop.f32.mrb[0].mxu0
    %v3736 = vadd.f32 %v3349, %v3735
    %v3737 = vpop.f32.mrb[0].mxu0
    %v3738 = vand.u32 %v2210, 4294901760
    %v3739 = vsub.f32 %v2210, %v3738
    %3740 = vmatprep.mubr.f32.mxu0 %v3739
    %v3741 = vand.u32 %v2209, 4294901760
    %v3742 = vsub.f32 %v2209, %v3741
    %3743 = vmatmul.mubr.f32.gmra.mrb[0].mxu0 %v3742
    %v3744 = vpop.f32.mrb[0].mxu0
    %v3745 = vadd.f32 %v3356, %v3744
    %v3746 = vpop.f32.mrb[0].mxu0
    %v3747 = vand.u32 %v2212, 4294901760
    %v3748 = vsub.f32 %v2212, %v3747
    %3749 = vmatprep.mubr.f32.mxu0 %v3748
    %v3750 = vand.u32 %v2211, 4294901760
    %v3751 = vsub.f32 %v2211, %v3750
    %3752 = vmatmul.mubr.f32.gmra.mrb[0].mxu0 %v3751
    %v3753 = vpop.f32.mrb[0].mxu0
    %v3754 = vadd.f32 %v3363, %v3753
    %v3755 = vpop.f32.mrb[0].mxu0
    %v3756 = vand.u32 %v2214, 4294901760
    %v3757 = vsub.f32 %v2214, %v3756
    %3758 = vmatprep.mubr.f32.mxu0 %v3757
    %v3759 = vand.u32 %v2213, 4294901760
    %v3760 = vsub.f32 %v2213, %v3759
    %3761 = vmatmul.mubr.f32.gmra.mrb[0].mxu0 %v3760
    %v3762 = vpop.f32.mrb[0].mxu0
    %v3763 = vadd.f32 %v3370, %v3762
    %v3764 = vpop.f32.mrb[0].mxu0
    %v3765 = vand.u32 %v2216, 4294901760
    %v3766 = vsub.f32 %v2216, %v3765
    %3767 = vmatprep.mubr.f32.mxu0 %v3766
    %v3768 = vand.u32 %v2215, 4294901760
    %v3769 = vsub.f32 %v2215, %v3768
    %3770 = vmatmul.mubr.f32.gmra.mrb[0].mxu0 %v3769
    %v3771 = vpop.f32.mrb[0].mxu0
    %v3772 = vadd.f32 %v3377, %v3771
    %v3773 = vpop.f32.mrb[0].mxu0
    %v3774 = vand.u32 %v2218, 4294901760
    %v3775 = vsub.f32 %v2218, %v3774
    %3776 = vmatprep.mubr.f32.mxu0 %v3775
    %v3777 = vand.u32 %v2217, 4294901760
    %v3778 = vsub.f32 %v2217, %v3777
    %3779 = vmatmul.mubr.f32.gmra.mrb[0].mxu0 %v3778
    %v3780 = vpop.f32.mrb[0].mxu0
    %v3781 = vadd.f32 %v3384, %v3780
    %v3782 = vpop.f32.mrb[0].mxu0
    %v3783 = vand.u32 %v2220, 4294901760
    %v3784 = vsub.f32 %v2220, %v3783
    %3785 = vmatprep.mubr.f32.mxu0 %v3784
    %v3786 = vand.u32 %v2219, 4294901760
    %v3787 = vsub.f32 %v2219, %v3786
    %3788 = vmatmul.mubr.f32.gmra.mrb[0].mxu0 %v3787
    %v3789 = vpop.f32.mrb[0].mxu0
    %v3790 = vadd.f32 %v3391, %v3789
    %v3791 = vpop.f32.mrb[0].mxu0
    %v3792 = vand.u32 %v2222, 4294901760
    %v3793 = vsub.f32 %v2222, %v3792
    %3794 = vmatprep.mubr.f32.mxu0 %v3793
    %v3795 = vand.u32 %v2221, 4294901760
    %v3796 = vsub.f32 %v2221, %v3795
    %3797 = vmatmul.mubr.f32.gmra.mrb[0].mxu0 %v3796
    %v3798 = vpop.f32.mrb[0].mxu0
    %v3799 = vadd.f32 %v3398, %v3798
    %v3800 = vpop.f32.mrb[0].mxu0
    %v3801 = vand.u32 %v2224, 4294901760
    %v3802 = vsub.f32 %v2224, %v3801
    %3803 = vmatprep.mubr.f32.mxu0 %v3802
    %v3804 = vand.u32 %v2223, 4294901760
    %v3805 = vsub.f32 %v2223, %v3804
    %3806 = vmatmul.mubr.f32.gmra.mrb[0].mxu0 %v3805
    %v3807 = vpop.f32.mrb[0].mxu0
    %v3808 = vadd.f32 %v3405, %v3807
    %v3809 = vpop.f32.mrb[0].mxu0
    %v3810 = vand.u32 %v2226, 4294901760
    %v3811 = vsub.f32 %v2226, %v3810
    %3812 = vmatprep.mubr.f32.mxu0 %v3811
    %v3813 = vand.u32 %v2225, 4294901760
    %v3814 = vsub.f32 %v2225, %v3813
    %3815 = vmatmul.mubr.f32.gmra.mrb[0].mxu0 %v3814
    %v3816 = vpop.f32.mrb[0].mxu0
    %v3817 = vadd.f32 %v3412, %v3816
    %v3818 = vpop.f32.mrb[0].mxu0
    %v3819 = vand.u32 %v2228, 4294901760
    %v3820 = vsub.f32 %v2228, %v3819
    %3821 = vmatprep.mubr.f32.mxu0 %v3820
    %v3822 = vand.u32 %v2227, 4294901760
    %v3823 = vsub.f32 %v2227, %v3822
    %3824 = vmatmul.mubr.f32.gmra.mrb[0].mxu0 %v3823
    %v3825 = vpop.f32.mrb[0].mxu0
    %v3826 = vadd.f32 %v3419, %v3825
    %v3827 = vpop.f32.mrb[0].mxu0
    %v3828 = vand.u32 %v2230, 4294901760
    %v3829 = vsub.f32 %v2230, %v3828
    %3830 = vmatprep.mubr.f32.mxu0 %v3829
    %v3831 = vand.u32 %v2229, 4294901760
    %v3832 = vsub.f32 %v2229, %v3831
    %3833 = vmatmul.mubr.f32.gmra.mrb[0].mxu0 %v3832
    %v3834 = vpop.f32.mrb[0].mxu0
    %v3835 = vadd.f32 %v3426, %v3834
    %v3836 = vpop.f32.mrb[0].mxu0
    %v3837 = vand.u32 %v2232, 4294901760
    %v3838 = vsub.f32 %v2232, %v3837
    %3839 = vmatprep.mubr.f32.mxu0 %v3838
    %v3840 = vand.u32 %v2231, 4294901760
    %v3841 = vsub.f32 %v2231, %v3840
    %3842 = vmatmul.mubr.f32.gmra.mrb[0].mxu0 %v3841
    %v3843 = vpop.f32.mrb[0].mxu0
    %v3844 = vadd.f32 %v3433, %v3843
    %v3845 = vpop.f32.mrb[0].mxu0
    %v3846 = vand.u32 %v2234, 4294901760
    %v3847 = vsub.f32 %v2234, %v3846
    %3848 = vmatprep.mubr.f32.mxu0 %v3847
    %v3849 = vand.u32 %v2233, 4294901760
    %v3850 = vsub.f32 %v2233, %v3849
    %3851 = vmatmul.mubr.f32.gmra.mrb[0].mxu0 %v3850
    %v3852 = vpop.f32.mrb[0].mxu0
    %v3853 = vadd.f32 %v3440, %v3852
    %v3854 = vpop.f32.mrb[0].mxu0
    %v3855 = vand.u32 %v2236, 4294901760
    %v3856 = vsub.f32 %v2236, %v3855
    %3857 = vmatprep.mubr.f32.mxu0 %v3856
    %v3858 = vand.u32 %v2235, 4294901760
    %v3859 = vsub.f32 %v2235, %v3858
    %3860 = vmatmul.mubr.f32.gmra.mrb[0].mxu0 %v3859
    %v3861 = vpop.f32.mrb[0].mxu0
    %v3862 = vadd.f32 %v3447, %v3861
    %v3863 = vpop.f32.mrb[0].mxu0
    %v3864 = vand.u32 %v2238, 4294901760
    %v3865 = vsub.f32 %v2238, %v3864
    %3866 = vmatprep.mubr.f32.mxu0 %v3865
    %v3867 = vand.u32 %v2237, 4294901760
    %v3868 = vsub.f32 %v2237, %v3867
    %3869 = vmatmul.mubr.f32.gmra.mrb[0].mxu0 %v3868
    %v3870 = vpop.f32.mrb[0].mxu0
    %v3871 = vadd.f32 %v3454, %v3870
    %v3872 = vpop.f32.mrb[0].mxu0
    %3873 = vdwg.mxu0
    %3874 = vmatprep.subr.mxu0 0.0
    %v3875 = vand.u32 %v2143, 4294901760
    %3876 = vmatpush1.msra.mxu0 %v3875
    %3877 = vmatprep.subr.mxu0 0.0
    %v3878 = vand.u32 %v2144, 4294901760
    %3879 = vmatpush1.msra.mxu0 %v3878
    %3880 = vmatprep.subr.mxu0 0.0
    %v3881 = vand.u32 %v2145, 4294901760
    %3882 = vmatpush1.msra.mxu0 %v3881
    %3883 = vmatprep.subr.mxu0 0.0
    %v3884 = vand.u32 %v2146, 4294901760
    %3885 = vmatpush1.msra.mxu0 %v3884
    %3886 = vmatprep.subr.mxu0 0.0
    %v3887 = vand.u32 %v2147, 4294901760
    %3888 = vmatpush1.msra.mxu0 %v3887
    %3889 = vmatprep.subr.mxu0 0.0
    %v3890 = vand.u32 %v2148, 4294901760
    %3891 = vmatpush1.msra.mxu0 %v3890
    %3892 = vmatprep.subr.mxu0 0.0
    %v3893 = vand.u32 %v2149, 4294901760
    %3894 = vmatpush1.msra.mxu0 %v3893
    %3895 = vmatprep.subr.mxu0 0.0
    %v3896 = vand.u32 %v2150, 4294901760
    %3897 = vmatpush1.msra.mxu0 %v3896
    %3898 = vmatprep.subr.mxu0 0.0
    %v3899 = vand.u32 %v2151, 4294901760
    %3900 = vmatpush1.msra.mxu0 %v3899
    %3901 = vmatprep.subr.mxu0 0.0
    %v3902 = vand.u32 %v2152, 4294901760
    %3903 = vmatpush1.msra.mxu0 %v3902
    %3904 = vmatprep.subr.mxu0 0.0
    %v3905 = vand.u32 %v2153, 4294901760
    %3906 = vmatpush1.msra.mxu0 %v3905
    %3907 = vmatprep.subr.mxu0 0.0
    %v3908 = vand.u32 %v2154, 4294901760
    %3909 = vmatpush1.msra.mxu0 %v3908
    %3910 = vmatprep.subr.mxu0 0.0
    %v3911 = vand.u32 %v2155, 4294901760
    %3912 = vmatpush1.msra.mxu0 %v3911
    %3913 = vmatprep.subr.mxu0 0.0
    %v3914 = vand.u32 %v2156, 4294901760
    %3915 = vmatpush1.msra.mxu0 %v3914
    %3916 = vmatprep.subr.mxu0 0.0
    %v3917 = vand.u32 %v2157, 4294901760
    %3918 = vmatpush1.msra.mxu0 %v3917
    %3919 = vmatprep.subr.mxu0 0.0
    %v3920 = vand.u32 %v2158, 4294901760
    %3921 = vmatpush1.msra.mxu0 %v3920
    %3922 = vmatprep.subr.mxu0 0.0
    %v3923 = vand.u32 %v2159, 4294901760
    %3924 = vmatpush1.msra.mxu0 %v3923
    %3925 = vmatprep.subr.mxu0 0.0
    %v3926 = vand.u32 %v2160, 4294901760
    %3927 = vmatpush1.msra.mxu0 %v3926
    %3928 = vmatprep.subr.mxu0 0.0
    %v3929 = vand.u32 %v2161, 4294901760
    %3930 = vmatpush1.msra.mxu0 %v3929
    %3931 = vmatprep.subr.mxu0 0.0
    %v3932 = vand.u32 %v2162, 4294901760
    %3933 = vmatpush1.msra.mxu0 %v3932
    %3934 = vmatprep.subr.mxu0 0.0
    %v3935 = vand.u32 %v2163, 4294901760
    %3936 = vmatpush1.msra.mxu0 %v3935
    %3937 = vmatprep.subr.mxu0 0.0
    %v3938 = vand.u32 %v2164, 4294901760
    %3939 = vmatpush1.msra.mxu0 %v3938
    %3940 = vmatprep.subr.mxu0 0.0
    %v3941 = vand.u32 %v2165, 4294901760
    %3942 = vmatpush1.msra.mxu0 %v3941
    %3943 = vmatprep.subr.mxu0 0.0
    %v3944 = vand.u32 %v2166, 4294901760
    %3945 = vmatpush1.msra.mxu0 %v3944
    %3946 = vmatprep.subr.mxu0 0.0
    %v3947 = vand.u32 %v2167, 4294901760
    %3948 = vmatpush1.msra.mxu0 %v3947
    %3949 = vmatprep.subr.mxu0 0.0
    %v3950 = vand.u32 %v2168, 4294901760
    %3951 = vmatpush1.msra.mxu0 %v3950
    %3952 = vmatprep.subr.mxu0 0.0
    %v3953 = vand.u32 %v2169, 4294901760
    %3954 = vmatpush1.msra.mxu0 %v3953
    %3955 = vmatprep.subr.mxu0 0.0
    %v3956 = vand.u32 %v2170, 4294901760
    %3957 = vmatpush1.msra.mxu0 %v3956
    %3958 = vmatprep.subr.mxu0 0.0
    %v3959 = vand.u32 %v2171, 4294901760
    %3960 = vmatpush1.msra.mxu0 %v3959
    %3961 = vmatprep.subr.mxu0 0.0
    %v3962 = vand.u32 %v2172, 4294901760
    %3963 = vmatpush1.msra.mxu0 %v3962
    %3964 = vmatprep.subr.mxu0 0.0
    %v3965 = vand.u32 %v2173, 4294901760
    %3966 = vmatpush1.msra.mxu0 %v3965
    %3967 = vmatprep.subr.mxu0 0.0
    %v3968 = vand.u32 %v2174, 4294901760
    %3969 = vmatpush1.msra.mxu0 %v3968
    %v3970 = vand.u32 %v2176, 4294901760
    %v3971 = vsub.f32 %v2176, %v3970
    %v3972 = vand.u32 %v3971, 4294901760
    %3973 = vmatprep.mubr.f32.mxu0 %v3972
    %v3974 = vand.u32 %v2175, 4294901760
    %v3975 = vsub.f32 %v2175, %v3974
    %v3976 = vand.u32 %v3975, 4294901760
    %3977 = vmatmul.mubr.f32.gmra.mrb[0].mxu0 %v3976
    %v3978 = vpop.f32.mrb[0].mxu0
    %v3979 = vadd.f32 %v3592, %v3978
    %v3980 = vpop.f32.mrb[0].mxu0
    %v3981 = vand.u32 %v2178, 4294901760
    %v3982 = vsub.f32 %v2178, %v3981
    %v3983 = vand.u32 %v3982, 4294901760
    %3984 = vmatprep.mubr.f32.mxu0 %v3983
    %v3985 = vand.u32 %v2177, 4294901760
    %v3986 = vsub.f32 %v2177, %v3985
    %v3987 = vand.u32 %v3986, 4294901760
    %3988 = vmatmul.mubr.f32.gmra.mrb[0].mxu0 %v3987
    %v3989 = vpop.f32.mrb[0].mxu0
    %v3990 = vadd.f32 %v3601, %v3989
    %v3991 = vpop.f32.mrb[0].mxu0
    %v3992 = vand.u32 %v2180, 4294901760
    %v3993 = vsub.f32 %v2180, %v3992
    %v3994 = vand.u32 %v3993, 4294901760
    %3995 = vmatprep.mubr.f32.mxu0 %v3994
    %v3996 = vand.u32 %v2179, 4294901760
    %v3997 = vsub.f32 %v2179, %v3996
    %v3998 = vand.u32 %v3997, 4294901760
    %3999 = vmatmul.mubr.f32.gmra.mrb[0].mxu0 %v3998
    %v4000 = vpop.f32.mrb[0].mxu0
    %v4001 = vadd.f32 %v3610, %v4000
    %v4002 = vpop.f32.mrb[0].mxu0
    %v4003 = vand.u32 %v2182, 4294901760
    %v4004 = vsub.f32 %v2182, %v4003
    %v4005 = vand.u32 %v4004, 4294901760
    %4006 = vmatprep.mubr.f32.mxu0 %v4005
    %v4007 = vand.u32 %v2181, 4294901760
    %v4008 = vsub.f32 %v2181, %v4007
    %v4009 = vand.u32 %v4008, 4294901760
    %4010 = vmatmul.mubr.f32.gmra.mrb[0].mxu0 %v4009
    %v4011 = vpop.f32.mrb[0].mxu0
    %v4012 = vadd.f32 %v3619, %v4011
    %v4013 = vpop.f32.mrb[0].mxu0
    %v4014 = vand.u32 %v2184, 4294901760
    %v4015 = vsub.f32 %v2184, %v4014
    %v4016 = vand.u32 %v4015, 4294901760
    %4017 = vmatprep.mubr.f32.mxu0 %v4016
    %v4018 = vand.u32 %v2183, 4294901760
    %v4019 = vsub.f32 %v2183, %v4018
    %v4020 = vand.u32 %v4019, 4294901760
    %4021 = vmatmul.mubr.f32.gmra.mrb[0].mxu0 %v4020
    %v4022 = vpop.f32.mrb[0].mxu0
    %v4023 = vadd.f32 %v3628, %v4022
    %v4024 = vpop.f32.mrb[0].mxu0
    %v4025 = vand.u32 %v2186, 4294901760
    %v4026 = vsub.f32 %v2186, %v4025
    %v4027 = vand.u32 %v4026, 4294901760
    %4028 = vmatprep.mubr.f32.mxu0 %v4027
    %v4029 = vand.u32 %v2185, 4294901760
    %v4030 = vsub.f32 %v2185, %v4029
    %v4031 = vand.u32 %v4030, 4294901760
    %4032 = vmatmul.mubr.f32.gmra.mrb[0].mxu0 %v4031
    %v4033 = vpop.f32.mrb[0].mxu0
    %v4034 = vadd.f32 %v3637, %v4033
    %v4035 = vpop.f32.mrb[0].mxu0
    %v4036 = vand.u32 %v2188, 4294901760
    %v4037 = vsub.f32 %v2188, %v4036
    %v4038 = vand.u32 %v4037, 4294901760
    %4039 = vmatprep.mubr.f32.mxu0 %v4038
    %v4040 = vand.u32 %v2187, 4294901760
    %v4041 = vsub.f32 %v2187, %v4040
    %v4042 = vand.u32 %v4041, 4294901760
    %4043 = vmatmul.mubr.f32.gmra.mrb[0].mxu0 %v4042
    %v4044 = vpop.f32.mrb[0].mxu0
    %v4045 = vadd.f32 %v3646, %v4044
    %v4046 = vpop.f32.mrb[0].mxu0
    %v4047 = vand.u32 %v2190, 4294901760
    %v4048 = vsub.f32 %v2190, %v4047
    %v4049 = vand.u32 %v4048, 4294901760
    %4050 = vmatprep.mubr.f32.mxu0 %v4049
    %v4051 = vand.u32 %v2189, 4294901760
    %v4052 = vsub.f32 %v2189, %v4051
    %v4053 = vand.u32 %v4052, 4294901760
    %4054 = vmatmul.mubr.f32.gmra.mrb[0].mxu0 %v4053
    %v4055 = vpop.f32.mrb[0].mxu0
    %v4056 = vadd.f32 %v3655, %v4055
    %v4057 = vpop.f32.mrb[0].mxu0
    %v4058 = vand.u32 %v2192, 4294901760
    %v4059 = vsub.f32 %v2192, %v4058
    %v4060 = vand.u32 %v4059, 4294901760
    %4061 = vmatprep.mubr.f32.mxu0 %v4060
    %v4062 = vand.u32 %v2191, 4294901760
    %v4063 = vsub.f32 %v2191, %v4062
    %v4064 = vand.u32 %v4063, 4294901760
    %4065 = vmatmul.mubr.f32.gmra.mrb[0].mxu0 %v4064
    %v4066 = vpop.f32.mrb[0].mxu0
    %v4067 = vadd.f32 %v3664, %v4066
    %v4068 = vpop.f32.mrb[0].mxu0
    %v4069 = vand.u32 %v2194, 4294901760
    %v4070 = vsub.f32 %v2194, %v4069
    %v4071 = vand.u32 %v4070, 4294901760
    %4072 = vmatprep.mubr.f32.mxu0 %v4071
    %v4073 = vand.u32 %v2193, 4294901760
    %v4074 = vsub.f32 %v2193, %v4073
    %v4075 = vand.u32 %v4074, 4294901760
    %4076 = vmatmul.mubr.f32.gmra.mrb[0].mxu0 %v4075
    %v4077 = vpop.f32.mrb[0].mxu0
    %v4078 = vadd.f32 %v3673, %v4077
    %v4079 = vpop.f32.mrb[0].mxu0
    %v4080 = vand.u32 %v2196, 4294901760
    %v4081 = vsub.f32 %v2196, %v4080
    %v4082 = vand.u32 %v4081, 4294901760
    %4083 = vmatprep.mubr.f32.mxu0 %v4082
    %v4084 = vand.u32 %v2195, 4294901760
    %v4085 = vsub.f32 %v2195, %v4084
    %v4086 = vand.u32 %v4085, 4294901760
    %4087 = vmatmul.mubr.f32.gmra.mrb[0].mxu0 %v4086
    %v4088 = vpop.f32.mrb[0].mxu0
    %v4089 = vadd.f32 %v3682, %v4088
    %v4090 = vpop.f32.mrb[0].mxu0
    %v4091 = vand.u32 %v2198, 4294901760
    %v4092 = vsub.f32 %v2198, %v4091
    %v4093 = vand.u32 %v4092, 4294901760
    %4094 = vmatprep.mubr.f32.mxu0 %v4093
    %v4095 = vand.u32 %v2197, 4294901760
    %v4096 = vsub.f32 %v2197, %v4095
    %v4097 = vand.u32 %v4096, 4294901760
    %4098 = vmatmul.mubr.f32.gmra.mrb[0].mxu0 %v4097
    %v4099 = vpop.f32.mrb[0].mxu0
    %v4100 = vadd.f32 %v3691, %v4099
    %v4101 = vpop.f32.mrb[0].mxu0
    %v4102 = vand.u32 %v2200, 4294901760
    %v4103 = vsub.f32 %v2200, %v4102
    %v4104 = vand.u32 %v4103, 4294901760
    %4105 = vmatprep.mubr.f32.mxu0 %v4104
    %v4106 = vand.u32 %v2199, 4294901760
    %v4107 = vsub.f32 %v2199, %v4106
    %v4108 = vand.u32 %v4107, 4294901760
    %4109 = vmatmul.mubr.f32.gmra.mrb[0].mxu0 %v4108
    %v4110 = vpop.f32.mrb[0].mxu0
    %v4111 = vadd.f32 %v3700, %v4110
    %v4112 = vpop.f32.mrb[0].mxu0
    %v4113 = vand.u32 %v2202, 4294901760
    %v4114 = vsub.f32 %v2202, %v4113
    %v4115 = vand.u32 %v4114, 4294901760
    %4116 = vmatprep.mubr.f32.mxu0 %v4115
    %v4117 = vand.u32 %v2201, 4294901760
    %v4118 = vsub.f32 %v2201, %v4117
    %v4119 = vand.u32 %v4118, 4294901760
    %4120 = vmatmul.mubr.f32.gmra.mrb[0].mxu0 %v4119
    %v4121 = vpop.f32.mrb[0].mxu0
    %v4122 = vadd.f32 %v3709, %v4121
    %v4123 = vpop.f32.mrb[0].mxu0
    %v4124 = vand.u32 %v2204, 4294901760
    %v4125 = vsub.f32 %v2204, %v4124
    %v4126 = vand.u32 %v4125, 4294901760
    %4127 = vmatprep.mubr.f32.mxu0 %v4126
    %v4128 = vand.u32 %v2203, 4294901760
    %v4129 = vsub.f32 %v2203, %v4128
    %v4130 = vand.u32 %v4129, 4294901760
    %4131 = vmatmul.mubr.f32.gmra.mrb[0].mxu0 %v4130
    %v4132 = vpop.f32.mrb[0].mxu0
    %v4133 = vadd.f32 %v3718, %v4132
    %v4134 = vpop.f32.mrb[0].mxu0
    %v4135 = vand.u32 %v2206, 4294901760
    %v4136 = vsub.f32 %v2206, %v4135
    %v4137 = vand.u32 %v4136, 4294901760
    %4138 = vmatprep.mubr.f32.mxu0 %v4137
    %v4139 = vand.u32 %v2205, 4294901760
    %v4140 = vsub.f32 %v2205, %v4139
    %v4141 = vand.u32 %v4140, 4294901760
    %4142 = vmatmul.mubr.f32.gmra.mrb[0].mxu0 %v4141
    %v4143 = vpop.f32.mrb[0].mxu0
    %v4144 = vadd.f32 %v3727, %v4143
    %v4145 = vpop.f32.mrb[0].mxu0
    %v4146 = vand.u32 %v2208, 4294901760
    %v4147 = vsub.f32 %v2208, %v4146
    %v4148 = vand.u32 %v4147, 4294901760
    %4149 = vmatprep.mubr.f32.mxu0 %v4148
    %v4150 = vand.u32 %v2207, 4294901760
    %v4151 = vsub.f32 %v2207, %v4150
    %v4152 = vand.u32 %v4151, 4294901760
    %4153 = vmatmul.mubr.f32.gmra.mrb[0].mxu0 %v4152
    %v4154 = vpop.f32.mrb[0].mxu0
    %v4155 = vadd.f32 %v3736, %v4154
    %v4156 = vpop.f32.mrb[0].mxu0
    %v4157 = vand.u32 %v2210, 4294901760
    %v4158 = vsub.f32 %v2210, %v4157
    %v4159 = vand.u32 %v4158, 4294901760
    %4160 = vmatprep.mubr.f32.mxu0 %v4159
    %v4161 = vand.u32 %v2209, 4294901760
    %v4162 = vsub.f32 %v2209, %v4161
    %v4163 = vand.u32 %v4162, 4294901760
    %4164 = vmatmul.mubr.f32.gmra.mrb[0].mxu0 %v4163
    %v4165 = vpop.f32.mrb[0].mxu0
    %v4166 = vadd.f32 %v3745, %v4165
    %v4167 = vpop.f32.mrb[0].mxu0
    %v4168 = vand.u32 %v2212, 4294901760
    %v4169 = vsub.f32 %v2212, %v4168
    %v4170 = vand.u32 %v4169, 4294901760
    %4171 = vmatprep.mubr.f32.mxu0 %v4170
    %v4172 = vand.u32 %v2211, 4294901760
    %v4173 = vsub.f32 %v2211, %v4172
    %v4174 = vand.u32 %v4173, 4294901760
    %4175 = vmatmul.mubr.f32.gmra.mrb[0].mxu0 %v4174
    %v4176 = vpop.f32.mrb[0].mxu0
    %v4177 = vadd.f32 %v3754, %v4176
    %v4178 = vpop.f32.mrb[0].mxu0
    %v4179 = vand.u32 %v2214, 4294901760
    %v4180 = vsub.f32 %v2214, %v4179
    %v4181 = vand.u32 %v4180, 4294901760
    %4182 = vmatprep.mubr.f32.mxu0 %v4181
    %v4183 = vand.u32 %v2213, 4294901760
    %v4184 = vsub.f32 %v2213, %v4183
    %v4185 = vand.u32 %v4184, 4294901760
    %4186 = vmatmul.mubr.f32.gmra.mrb[0].mxu0 %v4185
    %v4187 = vpop.f32.mrb[0].mxu0
    %v4188 = vadd.f32 %v3763, %v4187
    %v4189 = vpop.f32.mrb[0].mxu0
    %v4190 = vand.u32 %v2216, 4294901760
    %v4191 = vsub.f32 %v2216, %v4190
    %v4192 = vand.u32 %v4191, 4294901760
    %4193 = vmatprep.mubr.f32.mxu0 %v4192
    %v4194 = vand.u32 %v2215, 4294901760
    %v4195 = vsub.f32 %v2215, %v4194
    %v4196 = vand.u32 %v4195, 4294901760
    %4197 = vmatmul.mubr.f32.gmra.mrb[0].mxu0 %v4196
    %v4198 = vpop.f32.mrb[0].mxu0
    %v4199 = vadd.f32 %v3772, %v4198
    %v4200 = vpop.f32.mrb[0].mxu0
    %v4201 = vand.u32 %v2218, 4294901760
    %v4202 = vsub.f32 %v2218, %v4201
    %v4203 = vand.u32 %v4202, 4294901760
    %4204 = vmatprep.mubr.f32.mxu0 %v4203
    %v4205 = vand.u32 %v2217, 4294901760
    %v4206 = vsub.f32 %v2217, %v4205
    %v4207 = vand.u32 %v4206, 4294901760
    %4208 = vmatmul.mubr.f32.gmra.mrb[0].mxu0 %v4207
    %v4209 = vpop.f32.mrb[0].mxu0
    %v4210 = vadd.f32 %v3781, %v4209
    %v4211 = vpop.f32.mrb[0].mxu0
    %v4212 = vand.u32 %v2220, 4294901760
    %v4213 = vsub.f32 %v2220, %v4212
    %v4214 = vand.u32 %v4213, 4294901760
    %4215 = vmatprep.mubr.f32.mxu0 %v4214
    %v4216 = vand.u32 %v2219, 4294901760
    %v4217 = vsub.f32 %v2219, %v4216
    %v4218 = vand.u32 %v4217, 4294901760
    %4219 = vmatmul.mubr.f32.gmra.mrb[0].mxu0 %v4218
    %v4220 = vpop.f32.mrb[0].mxu0
    %v4221 = vadd.f32 %v3790, %v4220
    %v4222 = vpop.f32.mrb[0].mxu0
    %v4223 = vand.u32 %v2222, 4294901760
    %v4224 = vsub.f32 %v2222, %v4223
    %v4225 = vand.u32 %v4224, 4294901760
    %4226 = vmatprep.mubr.f32.mxu0 %v4225
    %v4227 = vand.u32 %v2221, 4294901760
    %v4228 = vsub.f32 %v2221, %v4227
    %v4229 = vand.u32 %v4228, 4294901760
    %4230 = vmatmul.mubr.f32.gmra.mrb[0].mxu0 %v4229
    %v4231 = vpop.f32.mrb[0].mxu0
    %v4232 = vadd.f32 %v3799, %v4231
    %v4233 = vpop.f32.mrb[0].mxu0
    %v4234 = vand.u32 %v2224, 4294901760
    %v4235 = vsub.f32 %v2224, %v4234
    %v4236 = vand.u32 %v4235, 4294901760
    %4237 = vmatprep.mubr.f32.mxu0 %v4236
    %v4238 = vand.u32 %v2223, 4294901760
    %v4239 = vsub.f32 %v2223, %v4238
    %v4240 = vand.u32 %v4239, 4294901760
    %4241 = vmatmul.mubr.f32.gmra.mrb[0].mxu0 %v4240
    %v4242 = vpop.f32.mrb[0].mxu0
    %v4243 = vadd.f32 %v3808, %v4242
    %v4244 = vpop.f32.mrb[0].mxu0
    %v4245 = vand.u32 %v2226, 4294901760
    %v4246 = vsub.f32 %v2226, %v4245
    %v4247 = vand.u32 %v4246, 4294901760
    %4248 = vmatprep.mubr.f32.mxu0 %v4247
    %v4249 = vand.u32 %v2225, 4294901760
    %v4250 = vsub.f32 %v2225, %v4249
    %v4251 = vand.u32 %v4250, 4294901760
    %4252 = vmatmul.mubr.f32.gmra.mrb[0].mxu0 %v4251
    %v4253 = vpop.f32.mrb[0].mxu0
    %v4254 = vadd.f32 %v3817, %v4253
    %v4255 = vpop.f32.mrb[0].mxu0
    %v4256 = vand.u32 %v2228, 4294901760
    %v4257 = vsub.f32 %v2228, %v4256
    %v4258 = vand.u32 %v4257, 4294901760
    %4259 = vmatprep.mubr.f32.mxu0 %v4258
    %v4260 = vand.u32 %v2227, 4294901760
    %v4261 = vsub.f32 %v2227, %v4260
    %v4262 = vand.u32 %v4261, 4294901760
    %4263 = vmatmul.mubr.f32.gmra.mrb[0].mxu0 %v4262
    %v4264 = vpop.f32.mrb[0].mxu0
    %v4265 = vadd.f32 %v3826, %v4264
    %v4266 = vpop.f32.mrb[0].mxu0
    %v4267 = vand.u32 %v2230, 4294901760
    %v4268 = vsub.f32 %v2230, %v4267
    %v4269 = vand.u32 %v4268, 4294901760
    %4270 = vmatprep.mubr.f32.mxu0 %v4269
    %v4271 = vand.u32 %v2229, 4294901760
    %v4272 = vsub.f32 %v2229, %v4271
    %v4273 = vand.u32 %v4272, 4294901760
    %4274 = vmatmul.mubr.f32.gmra.mrb[0].mxu0 %v4273
    %v4275 = vpop.f32.mrb[0].mxu0
    %v4276 = vadd.f32 %v3835, %v4275
    %v4277 = vpop.f32.mrb[0].mxu0
    %v4278 = vand.u32 %v2232, 4294901760
    %v4279 = vsub.f32 %v2232, %v4278
    %v4280 = vand.u32 %v4279, 4294901760
    %4281 = vmatprep.mubr.f32.mxu0 %v4280
    %v4282 = vand.u32 %v2231, 4294901760
    %v4283 = vsub.f32 %v2231, %v4282
    %v4284 = vand.u32 %v4283, 4294901760
    %4285 = vmatmul.mubr.f32.gmra.mrb[0].mxu0 %v4284
    %v4286 = vpop.f32.mrb[0].mxu0
    %v4287 = vadd.f32 %v3844, %v4286
    %v4288 = vpop.f32.mrb[0].mxu0
    %v4289 = vand.u32 %v2234, 4294901760
    %v4290 = vsub.f32 %v2234, %v4289
    %v4291 = vand.u32 %v4290, 4294901760
    %4292 = vmatprep.mubr.f32.mxu0 %v4291
    %v4293 = vand.u32 %v2233, 4294901760
    %v4294 = vsub.f32 %v2233, %v4293
    %v4295 = vand.u32 %v4294, 4294901760
    %4296 = vmatmul.mubr.f32.gmra.mrb[0].mxu0 %v4295
    %v4297 = vpop.f32.mrb[0].mxu0
    %v4298 = vadd.f32 %v3853, %v4297
    %v4299 = vpop.f32.mrb[0].mxu0
    %v4300 = vand.u32 %v2236, 4294901760
    %v4301 = vsub.f32 %v2236, %v4300
    %v4302 = vand.u32 %v4301, 4294901760
    %4303 = vmatprep.mubr.f32.mxu0 %v4302
    %v4304 = vand.u32 %v2235, 4294901760
    %v4305 = vsub.f32 %v2235, %v4304
    %v4306 = vand.u32 %v4305, 4294901760
    %4307 = vmatmul.mubr.f32.gmra.mrb[0].mxu0 %v4306
    %v4308 = vpop.f32.mrb[0].mxu0
    %v4309 = vadd.f32 %v3862, %v4308
    %v4310 = vpop.f32.mrb[0].mxu0
    %v4311 = vand.u32 %v2238, 4294901760
    %v4312 = vsub.f32 %v2238, %v4311
    %v4313 = vand.u32 %v4312, 4294901760
    %4314 = vmatprep.mubr.f32.mxu0 %v4313
    %v4315 = vand.u32 %v2237, 4294901760
    %v4316 = vsub.f32 %v2237, %v4315
    %v4317 = vand.u32 %v4316, 4294901760
    %4318 = vmatmul.mubr.f32.gmra.mrb[0].mxu0 %v4317
    %v4319 = vpop.f32.mrb[0].mxu0
    %v4320 = vadd.f32 %v3871, %v4319
    %v4321 = vpop.f32.mrb[0].mxu0
    %4322 = vdwg.mxu0
    %4323 = vmatprep.subr.mxu0 0.0
    %v4324 = vand.u32 %v2143, 4294901760
    %v4325 = vsub.f32 %v2143, %v4324
    %v4326 = vand.u32 %v4325, 4294901760
    %4327 = vmatpush1.msra.mxu0 %v4326
    %4328 = vmatprep.subr.mxu0 0.0
    %v4329 = vand.u32 %v2144, 4294901760
    %v4330 = vsub.f32 %v2144, %v4329
    %v4331 = vand.u32 %v4330, 4294901760
    %4332 = vmatpush1.msra.mxu0 %v4331
    %4333 = vmatprep.subr.mxu0 0.0
    %v4334 = vand.u32 %v2145, 4294901760
    %v4335 = vsub.f32 %v2145, %v4334
    %v4336 = vand.u32 %v4335, 4294901760
    %4337 = vmatpush1.msra.mxu0 %v4336
    %4338 = vmatprep.subr.mxu0 0.0
    %v4339 = vand.u32 %v2146, 4294901760
    %v4340 = vsub.f32 %v2146, %v4339
    %v4341 = vand.u32 %v4340, 4294901760
    %4342 = vmatpush1.msra.mxu0 %v4341
    %4343 = vmatprep.subr.mxu0 0.0
    %v4344 = vand.u32 %v2147, 4294901760
    %v4345 = vsub.f32 %v2147, %v4344
    %v4346 = vand.u32 %v4345, 4294901760
    %4347 = vmatpush1.msra.mxu0 %v4346
    %4348 = vmatprep.subr.mxu0 0.0
    %v4349 = vand.u32 %v2148, 4294901760
    %v4350 = vsub.f32 %v2148, %v4349
    %v4351 = vand.u32 %v4350, 4294901760
    %4352 = vmatpush1.msra.mxu0 %v4351
    %4353 = vmatprep.subr.mxu0 0.0
    %v4354 = vand.u32 %v2149, 4294901760
    %v4355 = vsub.f32 %v2149, %v4354
    %v4356 = vand.u32 %v4355, 4294901760
    %4357 = vmatpush1.msra.mxu0 %v4356
    %4358 = vmatprep.subr.mxu0 0.0
    %v4359 = vand.u32 %v2150, 4294901760
    %v4360 = vsub.f32 %v2150, %v4359
    %v4361 = vand.u32 %v4360, 4294901760
    %4362 = vmatpush1.msra.mxu0 %v4361
    %4363 = vmatprep.subr.mxu0 0.0
    %v4364 = vand.u32 %v2151, 4294901760
    %v4365 = vsub.f32 %v2151, %v4364
    %v4366 = vand.u32 %v4365, 4294901760
    %4367 = vmatpush1.msra.mxu0 %v4366
    %4368 = vmatprep.subr.mxu0 0.0
    %v4369 = vand.u32 %v2152, 4294901760
    %v4370 = vsub.f32 %v2152, %v4369
    %v4371 = vand.u32 %v4370, 4294901760
    %4372 = vmatpush1.msra.mxu0 %v4371
    %4373 = vmatprep.subr.mxu0 0.0
    %v4374 = vand.u32 %v2153, 4294901760
    %v4375 = vsub.f32 %v2153, %v4374
    %v4376 = vand.u32 %v4375, 4294901760
    %4377 = vmatpush1.msra.mxu0 %v4376
    %4378 = vmatprep.subr.mxu0 0.0
    %v4379 = vand.u32 %v2154, 4294901760
    %v4380 = vsub.f32 %v2154, %v4379
    %v4381 = vand.u32 %v4380, 4294901760
    %4382 = vmatpush1.msra.mxu0 %v4381
    %4383 = vmatprep.subr.mxu0 0.0
    %v4384 = vand.u32 %v2155, 4294901760
    %v4385 = vsub.f32 %v2155, %v4384
    %v4386 = vand.u32 %v4385, 4294901760
    %4387 = vmatpush1.msra.mxu0 %v4386
    %4388 = vmatprep.subr.mxu0 0.0
    %v4389 = vand.u32 %v2156, 4294901760
    %v4390 = vsub.f32 %v2156, %v4389
    %v4391 = vand.u32 %v4390, 4294901760
    %4392 = vmatpush1.msra.mxu0 %v4391
    %4393 = vmatprep.subr.mxu0 0.0
    %v4394 = vand.u32 %v2157, 4294901760
    %v4395 = vsub.f32 %v2157, %v4394
    %v4396 = vand.u32 %v4395, 4294901760
    %4397 = vmatpush1.msra.mxu0 %v4396
    %4398 = vmatprep.subr.mxu0 0.0
    %v4399 = vand.u32 %v2158, 4294901760
    %v4400 = vsub.f32 %v2158, %v4399
    %v4401 = vand.u32 %v4400, 4294901760
    %4402 = vmatpush1.msra.mxu0 %v4401
    %4403 = vmatprep.subr.mxu0 0.0
    %v4404 = vand.u32 %v2159, 4294901760
    %v4405 = vsub.f32 %v2159, %v4404
    %v4406 = vand.u32 %v4405, 4294901760
    %4407 = vmatpush1.msra.mxu0 %v4406
    %4408 = vmatprep.subr.mxu0 0.0
    %v4409 = vand.u32 %v2160, 4294901760
    %v4410 = vsub.f32 %v2160, %v4409
    %v4411 = vand.u32 %v4410, 4294901760
    %4412 = vmatpush1.msra.mxu0 %v4411
    %4413 = vmatprep.subr.mxu0 0.0
    %v4414 = vand.u32 %v2161, 4294901760
    %v4415 = vsub.f32 %v2161, %v4414
    %v4416 = vand.u32 %v4415, 4294901760
    %4417 = vmatpush1.msra.mxu0 %v4416
    %4418 = vmatprep.subr.mxu0 0.0
    %v4419 = vand.u32 %v2162, 4294901760
    %v4420 = vsub.f32 %v2162, %v4419
    %v4421 = vand.u32 %v4420, 4294901760
    %4422 = vmatpush1.msra.mxu0 %v4421
    %4423 = vmatprep.subr.mxu0 0.0
    %v4424 = vand.u32 %v2163, 4294901760
    %v4425 = vsub.f32 %v2163, %v4424
    %v4426 = vand.u32 %v4425, 4294901760
    %4427 = vmatpush1.msra.mxu0 %v4426
    %4428 = vmatprep.subr.mxu0 0.0
    %v4429 = vand.u32 %v2164, 4294901760
    %v4430 = vsub.f32 %v2164, %v4429
    %v4431 = vand.u32 %v4430, 4294901760
    %4432 = vmatpush1.msra.mxu0 %v4431
    %4433 = vmatprep.subr.mxu0 0.0
    %v4434 = vand.u32 %v2165, 4294901760
    %v4435 = vsub.f32 %v2165, %v4434
    %v4436 = vand.u32 %v4435, 4294901760
    %4437 = vmatpush1.msra.mxu0 %v4436
    %4438 = vmatprep.subr.mxu0 0.0
    %v4439 = vand.u32 %v2166, 4294901760
    %v4440 = vsub.f32 %v2166, %v4439
    %v4441 = vand.u32 %v4440, 4294901760
    %4442 = vmatpush1.msra.mxu0 %v4441
    %4443 = vmatprep.subr.mxu0 0.0
    %v4444 = vand.u32 %v2167, 4294901760
    %v4445 = vsub.f32 %v2167, %v4444
    %v4446 = vand.u32 %v4445, 4294901760
    %4447 = vmatpush1.msra.mxu0 %v4446
    %4448 = vmatprep.subr.mxu0 0.0
    %v4449 = vand.u32 %v2168, 4294901760
    %v4450 = vsub.f32 %v2168, %v4449
    %v4451 = vand.u32 %v4450, 4294901760
    %4452 = vmatpush1.msra.mxu0 %v4451
    %4453 = vmatprep.subr.mxu0 0.0
    %v4454 = vand.u32 %v2169, 4294901760
    %v4455 = vsub.f32 %v2169, %v4454
    %v4456 = vand.u32 %v4455, 4294901760
    %4457 = vmatpush1.msra.mxu0 %v4456
    %4458 = vmatprep.subr.mxu0 0.0
    %v4459 = vand.u32 %v2170, 4294901760
    %v4460 = vsub.f32 %v2170, %v4459
    %v4461 = vand.u32 %v4460, 4294901760
    %4462 = vmatpush1.msra.mxu0 %v4461
    %4463 = vmatprep.subr.mxu0 0.0
    %v4464 = vand.u32 %v2171, 4294901760
    %v4465 = vsub.f32 %v2171, %v4464
    %v4466 = vand.u32 %v4465, 4294901760
    %4467 = vmatpush1.msra.mxu0 %v4466
    %4468 = vmatprep.subr.mxu0 0.0
    %v4469 = vand.u32 %v2172, 4294901760
    %v4470 = vsub.f32 %v2172, %v4469
    %v4471 = vand.u32 %v4470, 4294901760
    %4472 = vmatpush1.msra.mxu0 %v4471
    %4473 = vmatprep.subr.mxu0 0.0
    %v4474 = vand.u32 %v2173, 4294901760
    %v4475 = vsub.f32 %v2173, %v4474
    %v4476 = vand.u32 %v4475, 4294901760
    %4477 = vmatpush1.msra.mxu0 %v4476
    %4478 = vmatprep.subr.mxu0 0.0
    %v4479 = vand.u32 %v2174, 4294901760
    %v4480 = vsub.f32 %v2174, %v4479
    %v4481 = vand.u32 %v4480, 4294901760
    %4482 = vmatpush1.msra.mxu0 %v4481
    %v4483 = vand.u32 %v2176, 4294901760
    %4484 = vmatprep.mubr.f32.mxu0 %v4483
    %v4485 = vand.u32 %v2175, 4294901760
    %4486 = vmatmul.mubr.f32.gmra.mrb[0].mxu0 %v4485
    %v4487 = vpop.f32.mrb[0].mxu0
    %v4488 = vadd.f32 %v3979, %v4487
    %v4489 = vpop.f32.mrb[0].mxu0
    %v4490 = vand.u32 %v2178, 4294901760
    %4491 = vmatprep.mubr.f32.mxu0 %v4490
    %v4492 = vand.u32 %v2177, 4294901760
    %4493 = vmatmul.mubr.f32.gmra.mrb[0].mxu0 %v4492
    %v4494 = vpop.f32.mrb[0].mxu0
    %v4495 = vadd.f32 %v3990, %v4494
    %v4496 = vpop.f32.mrb[0].mxu0
    %v4497 = vand.u32 %v2180, 4294901760
    %4498 = vmatprep.mubr.f32.mxu0 %v4497
    %v4499 = vand.u32 %v2179, 4294901760
    %4500 = vmatmul.mubr.f32.gmra.mrb[0].mxu0 %v4499
    %v4501 = vpop.f32.mrb[0].mxu0
    %v4502 = vadd.f32 %v4001, %v4501
    %v4503 = vpop.f32.mrb[0].mxu0
    %v4504 = vand.u32 %v2182, 4294901760
    %4505 = vmatprep.mubr.f32.mxu0 %v4504
    %v4506 = vand.u32 %v2181, 4294901760
    %4507 = vmatmul.mubr.f32.gmra.mrb[0].mxu0 %v4506
    %v4508 = vpop.f32.mrb[0].mxu0
    %v4509 = vadd.f32 %v4012, %v4508
    %v4510 = vpop.f32.mrb[0].mxu0
    %v4511 = vand.u32 %v2184, 4294901760
    %4512 = vmatprep.mubr.f32.mxu0 %v4511
    %v4513 = vand.u32 %v2183, 4294901760
    %4514 = vmatmul.mubr.f32.gmra.mrb[0].mxu0 %v4513
    %v4515 = vpop.f32.mrb[0].mxu0
    %v4516 = vadd.f32 %v4023, %v4515
    %v4517 = vpop.f32.mrb[0].mxu0
    %v4518 = vand.u32 %v2186, 4294901760
    %4519 = vmatprep.mubr.f32.mxu0 %v4518
    %v4520 = vand.u32 %v2185, 4294901760
    %4521 = vmatmul.mubr.f32.gmra.mrb[0].mxu0 %v4520
    %v4522 = vpop.f32.mrb[0].mxu0
    %v4523 = vadd.f32 %v4034, %v4522
    %v4524 = vpop.f32.mrb[0].mxu0
    %v4525 = vand.u32 %v2188, 4294901760
    %4526 = vmatprep.mubr.f32.mxu0 %v4525
    %v4527 = vand.u32 %v2187, 4294901760
    %4528 = vmatmul.mubr.f32.gmra.mrb[0].mxu0 %v4527
    %v4529 = vpop.f32.mrb[0].mxu0
    %v4530 = vadd.f32 %v4045, %v4529
    %v4531 = vpop.f32.mrb[0].mxu0
    %v4532 = vand.u32 %v2190, 4294901760
    %4533 = vmatprep.mubr.f32.mxu0 %v4532
    %v4534 = vand.u32 %v2189, 4294901760
    %4535 = vmatmul.mubr.f32.gmra.mrb[0].mxu0 %v4534
    %v4536 = vpop.f32.mrb[0].mxu0
    %v4537 = vadd.f32 %v4056, %v4536
    %v4538 = vpop.f32.mrb[0].mxu0
    %v4539 = vand.u32 %v2192, 4294901760
    %4540 = vmatprep.mubr.f32.mxu0 %v4539
    %v4541 = vand.u32 %v2191, 4294901760
    %4542 = vmatmul.mubr.f32.gmra.mrb[0].mxu0 %v4541
    %v4543 = vpop.f32.mrb[0].mxu0
    %v4544 = vadd.f32 %v4067, %v4543
    %v4545 = vpop.f32.mrb[0].mxu0
    %v4546 = vand.u32 %v2194, 4294901760
    %4547 = vmatprep.mubr.f32.mxu0 %v4546
    %v4548 = vand.u32 %v2193, 4294901760
    %4549 = vmatmul.mubr.f32.gmra.mrb[0].mxu0 %v4548
    %v4550 = vpop.f32.mrb[0].mxu0
    %v4551 = vadd.f32 %v4078, %v4550
    %v4552 = vpop.f32.mrb[0].mxu0
    %v4553 = vand.u32 %v2196, 4294901760
    %4554 = vmatprep.mubr.f32.mxu0 %v4553
    %v4555 = vand.u32 %v2195, 4294901760
    %4556 = vmatmul.mubr.f32.gmra.mrb[0].mxu0 %v4555
    %v4557 = vpop.f32.mrb[0].mxu0
    %v4558 = vadd.f32 %v4089, %v4557
    %v4559 = vpop.f32.mrb[0].mxu0
    %v4560 = vand.u32 %v2198, 4294901760
    %4561 = vmatprep.mubr.f32.mxu0 %v4560
    %v4562 = vand.u32 %v2197, 4294901760
    %4563 = vmatmul.mubr.f32.gmra.mrb[0].mxu0 %v4562
    %v4564 = vpop.f32.mrb[0].mxu0
    %v4565 = vadd.f32 %v4100, %v4564
    %v4566 = vpop.f32.mrb[0].mxu0
    %v4567 = vand.u32 %v2200, 4294901760
    %4568 = vmatprep.mubr.f32.mxu0 %v4567
    %v4569 = vand.u32 %v2199, 4294901760
    %4570 = vmatmul.mubr.f32.gmra.mrb[0].mxu0 %v4569
    %v4571 = vpop.f32.mrb[0].mxu0
    %v4572 = vadd.f32 %v4111, %v4571
    %v4573 = vpop.f32.mrb[0].mxu0
    %v4574 = vand.u32 %v2202, 4294901760
    %4575 = vmatprep.mubr.f32.mxu0 %v4574
    %v4576 = vand.u32 %v2201, 4294901760
    %4577 = vmatmul.mubr.f32.gmra.mrb[0].mxu0 %v4576
    %v4578 = vpop.f32.mrb[0].mxu0
    %v4579 = vadd.f32 %v4122, %v4578
    %v4580 = vpop.f32.mrb[0].mxu0
    %v4581 = vand.u32 %v2204, 4294901760
    %4582 = vmatprep.mubr.f32.mxu0 %v4581
    %v4583 = vand.u32 %v2203, 4294901760
    %4584 = vmatmul.mubr.f32.gmra.mrb[0].mxu0 %v4583
    %v4585 = vpop.f32.mrb[0].mxu0
    %v4586 = vadd.f32 %v4133, %v4585
    %v4587 = vpop.f32.mrb[0].mxu0
    %v4588 = vand.u32 %v2206, 4294901760
    %4589 = vmatprep.mubr.f32.mxu0 %v4588
    %v4590 = vand.u32 %v2205, 4294901760
    %4591 = vmatmul.mubr.f32.gmra.mrb[0].mxu0 %v4590
    %v4592 = vpop.f32.mrb[0].mxu0
    %v4593 = vadd.f32 %v4144, %v4592
    %v4594 = vpop.f32.mrb[0].mxu0
    %v4595 = vand.u32 %v2208, 4294901760
    %4596 = vmatprep.mubr.f32.mxu0 %v4595
    %v4597 = vand.u32 %v2207, 4294901760
    %4598 = vmatmul.mubr.f32.gmra.mrb[0].mxu0 %v4597
    %v4599 = vpop.f32.mrb[0].mxu0
    %v4600 = vadd.f32 %v4155, %v4599
    %v4601 = vpop.f32.mrb[0].mxu0
    %v4602 = vand.u32 %v2210, 4294901760
    %4603 = vmatprep.mubr.f32.mxu0 %v4602
    %v4604 = vand.u32 %v2209, 4294901760
    %4605 = vmatmul.mubr.f32.gmra.mrb[0].mxu0 %v4604
    %v4606 = vpop.f32.mrb[0].mxu0
    %v4607 = vadd.f32 %v4166, %v4606
    %v4608 = vpop.f32.mrb[0].mxu0
    %v4609 = vand.u32 %v2212, 4294901760
    %4610 = vmatprep.mubr.f32.mxu0 %v4609
    %v4611 = vand.u32 %v2211, 4294901760
    %4612 = vmatmul.mubr.f32.gmra.mrb[0].mxu0 %v4611
    %v4613 = vpop.f32.mrb[0].mxu0
    %v4614 = vadd.f32 %v4177, %v4613
    %v4615 = vpop.f32.mrb[0].mxu0
    %v4616 = vand.u32 %v2214, 4294901760
    %4617 = vmatprep.mubr.f32.mxu0 %v4616
    %v4618 = vand.u32 %v2213, 4294901760
    %4619 = vmatmul.mubr.f32.gmra.mrb[0].mxu0 %v4618
    %v4620 = vpop.f32.mrb[0].mxu0
    %v4621 = vadd.f32 %v4188, %v4620
    %v4622 = vpop.f32.mrb[0].mxu0
    %v4623 = vand.u32 %v2216, 4294901760
    %4624 = vmatprep.mubr.f32.mxu0 %v4623
    %v4625 = vand.u32 %v2215, 4294901760
    %4626 = vmatmul.mubr.f32.gmra.mrb[0].mxu0 %v4625
    %v4627 = vpop.f32.mrb[0].mxu0
    %v4628 = vadd.f32 %v4199, %v4627
    %v4629 = vpop.f32.mrb[0].mxu0
    %v4630 = vand.u32 %v2218, 4294901760
    %4631 = vmatprep.mubr.f32.mxu0 %v4630
    %v4632 = vand.u32 %v2217, 4294901760
    %4633 = vmatmul.mubr.f32.gmra.mrb[0].mxu0 %v4632
    %v4634 = vpop.f32.mrb[0].mxu0
    %v4635 = vadd.f32 %v4210, %v4634
    %v4636 = vpop.f32.mrb[0].mxu0
    %v4637 = vand.u32 %v2220, 4294901760
    %4638 = vmatprep.mubr.f32.mxu0 %v4637
    %v4639 = vand.u32 %v2219, 4294901760
    %4640 = vmatmul.mubr.f32.gmra.mrb[0].mxu0 %v4639
    %v4641 = vpop.f32.mrb[0].mxu0
    %v4642 = vadd.f32 %v4221, %v4641
    %v4643 = vpop.f32.mrb[0].mxu0
    %v4644 = vand.u32 %v2222, 4294901760
    %4645 = vmatprep.mubr.f32.mxu0 %v4644
    %v4646 = vand.u32 %v2221, 4294901760
    %4647 = vmatmul.mubr.f32.gmra.mrb[0].mxu0 %v4646
    %v4648 = vpop.f32.mrb[0].mxu0
    %v4649 = vadd.f32 %v4232, %v4648
    %v4650 = vpop.f32.mrb[0].mxu0
    %v4651 = vand.u32 %v2224, 4294901760
    %4652 = vmatprep.mubr.f32.mxu0 %v4651
    %v4653 = vand.u32 %v2223, 4294901760
    %4654 = vmatmul.mubr.f32.gmra.mrb[0].mxu0 %v4653
    %v4655 = vpop.f32.mrb[0].mxu0
    %v4656 = vadd.f32 %v4243, %v4655
    %v4657 = vpop.f32.mrb[0].mxu0
    %v4658 = vand.u32 %v2226, 4294901760
    %4659 = vmatprep.mubr.f32.mxu0 %v4658
    %v4660 = vand.u32 %v2225, 4294901760
    %4661 = vmatmul.mubr.f32.gmra.mrb[0].mxu0 %v4660
    %v4662 = vpop.f32.mrb[0].mxu0
    %v4663 = vadd.f32 %v4254, %v4662
    %v4664 = vpop.f32.mrb[0].mxu0
    %v4665 = vand.u32 %v2228, 4294901760
    %4666 = vmatprep.mubr.f32.mxu0 %v4665
    %v4667 = vand.u32 %v2227, 4294901760
    %4668 = vmatmul.mubr.f32.gmra.mrb[0].mxu0 %v4667
    %v4669 = vpop.f32.mrb[0].mxu0
    %v4670 = vadd.f32 %v4265, %v4669
    %v4671 = vpop.f32.mrb[0].mxu0
    %v4672 = vand.u32 %v2230, 4294901760
    %4673 = vmatprep.mubr.f32.mxu0 %v4672
    %v4674 = vand.u32 %v2229, 4294901760
    %4675 = vmatmul.mubr.f32.gmra.mrb[0].mxu0 %v4674
    %v4676 = vpop.f32.mrb[0].mxu0
    %v4677 = vadd.f32 %v4276, %v4676
    %v4678 = vpop.f32.mrb[0].mxu0
    %v4679 = vand.u32 %v2232, 4294901760
    %4680 = vmatprep.mubr.f32.mxu0 %v4679
    %v4681 = vand.u32 %v2231, 4294901760
    %4682 = vmatmul.mubr.f32.gmra.mrb[0].mxu0 %v4681
    %v4683 = vpop.f32.mrb[0].mxu0
    %v4684 = vadd.f32 %v4287, %v4683
    %v4685 = vpop.f32.mrb[0].mxu0
    %v4686 = vand.u32 %v2234, 4294901760
    %4687 = vmatprep.mubr.f32.mxu0 %v4686
    %v4688 = vand.u32 %v2233, 4294901760
    %4689 = vmatmul.mubr.f32.gmra.mrb[0].mxu0 %v4688
    %v4690 = vpop.f32.mrb[0].mxu0
    %v4691 = vadd.f32 %v4298, %v4690
    %v4692 = vpop.f32.mrb[0].mxu0
    %v4693 = vand.u32 %v2236, 4294901760
    %4694 = vmatprep.mubr.f32.mxu0 %v4693
    %v4695 = vand.u32 %v2235, 4294901760
    %4696 = vmatmul.mubr.f32.gmra.mrb[0].mxu0 %v4695
    %v4697 = vpop.f32.mrb[0].mxu0
    %v4698 = vadd.f32 %v4309, %v4697
    %v4699 = vpop.f32.mrb[0].mxu0
    %v4700 = vand.u32 %v2238, 4294901760
    %4701 = vmatprep.mubr.f32.mxu0 %v4700
    %v4702 = vand.u32 %v2237, 4294901760
    %4703 = vmatmul.mubr.f32.gmra.mrb[0].mxu0 %v4702
    %v4704 = vpop.f32.mrb[0].mxu0
    %v4705 = vadd.f32 %v4320, %v4704
    %v4706 = vpop.f32.mrb[0].mxu0
    %4707 = vdwg.mxu0
    %4708 = vmatprep.subr.mxu0 0.0
    %v4709 = vand.u32 %v2143, 4294901760
    %4710 = vmatpush1.msra.mxu0 %v4709
    %4711 = vmatprep.subr.mxu0 0.0
    %v4712 = vand.u32 %v2144, 4294901760
    %4713 = vmatpush1.msra.mxu0 %v4712
    %4714 = vmatprep.subr.mxu0 0.0
    %v4715 = vand.u32 %v2145, 4294901760
    %4716 = vmatpush1.msra.mxu0 %v4715
    %4717 = vmatprep.subr.mxu0 0.0
    %v4718 = vand.u32 %v2146, 4294901760
    %4719 = vmatpush1.msra.mxu0 %v4718
    %4720 = vmatprep.subr.mxu0 0.0
    %v4721 = vand.u32 %v2147, 4294901760
    %4722 = vmatpush1.msra.mxu0 %v4721
    %4723 = vmatprep.subr.mxu0 0.0
    %v4724 = vand.u32 %v2148, 4294901760
    %4725 = vmatpush1.msra.mxu0 %v4724
    %4726 = vmatprep.subr.mxu0 0.0
    %v4727 = vand.u32 %v2149, 4294901760
    %4728 = vmatpush1.msra.mxu0 %v4727
    %4729 = vmatprep.subr.mxu0 0.0
    %v4730 = vand.u32 %v2150, 4294901760
    %4731 = vmatpush1.msra.mxu0 %v4730
    %4732 = vmatprep.subr.mxu0 0.0
    %v4733 = vand.u32 %v2151, 4294901760
    %4734 = vmatpush1.msra.mxu0 %v4733
    %4735 = vmatprep.subr.mxu0 0.0
    %v4736 = vand.u32 %v2152, 4294901760
    %4737 = vmatpush1.msra.mxu0 %v4736
    %4738 = vmatprep.subr.mxu0 0.0
    %v4739 = vand.u32 %v2153, 4294901760
    %4740 = vmatpush1.msra.mxu0 %v4739
    %4741 = vmatprep.subr.mxu0 0.0
    %v4742 = vand.u32 %v2154, 4294901760
    %4743 = vmatpush1.msra.mxu0 %v4742
    %4744 = vmatprep.subr.mxu0 0.0
    %v4745 = vand.u32 %v2155, 4294901760
    %4746 = vmatpush1.msra.mxu0 %v4745
    %4747 = vmatprep.subr.mxu0 0.0
    %v4748 = vand.u32 %v2156, 4294901760
    %4749 = vmatpush1.msra.mxu0 %v4748
    %4750 = vmatprep.subr.mxu0 0.0
    %v4751 = vand.u32 %v2157, 4294901760
    %4752 = vmatpush1.msra.mxu0 %v4751
    %4753 = vmatprep.subr.mxu0 0.0
    %v4754 = vand.u32 %v2158, 4294901760
    %4755 = vmatpush1.msra.mxu0 %v4754
    %4756 = vmatprep.subr.mxu0 0.0
    %v4757 = vand.u32 %v2159, 4294901760
    %4758 = vmatpush1.msra.mxu0 %v4757
    %4759 = vmatprep.subr.mxu0 0.0
    %v4760 = vand.u32 %v2160, 4294901760
    %4761 = vmatpush1.msra.mxu0 %v4760
    %4762 = vmatprep.subr.mxu0 0.0
    %v4763 = vand.u32 %v2161, 4294901760
    %4764 = vmatpush1.msra.mxu0 %v4763
    %4765 = vmatprep.subr.mxu0 0.0
    %v4766 = vand.u32 %v2162, 4294901760
    %4767 = vmatpush1.msra.mxu0 %v4766
    %4768 = vmatprep.subr.mxu0 0.0
    %v4769 = vand.u32 %v2163, 4294901760
    %4770 = vmatpush1.msra.mxu0 %v4769
    %4771 = vmatprep.subr.mxu0 0.0
    %v4772 = vand.u32 %v2164, 4294901760
    %4773 = vmatpush1.msra.mxu0 %v4772
    %4774 = vmatprep.subr.mxu0 0.0
    %v4775 = vand.u32 %v2165, 4294901760
    %4776 = vmatpush1.msra.mxu0 %v4775
    %4777 = vmatprep.subr.mxu0 0.0
    %v4778 = vand.u32 %v2166, 4294901760
    %4779 = vmatpush1.msra.mxu0 %v4778
    %4780 = vmatprep.subr.mxu0 0.0
    %v4781 = vand.u32 %v2167, 4294901760
    %4782 = vmatpush1.msra.mxu0 %v4781
    %4783 = vmatprep.subr.mxu0 0.0
    %v4784 = vand.u32 %v2168, 4294901760
    %4785 = vmatpush1.msra.mxu0 %v4784
    %4786 = vmatprep.subr.mxu0 0.0
    %v4787 = vand.u32 %v2169, 4294901760
    %4788 = vmatpush1.msra.mxu0 %v4787
    %4789 = vmatprep.subr.mxu0 0.0
    %v4790 = vand.u32 %v2170, 4294901760
    %4791 = vmatpush1.msra.mxu0 %v4790
    %4792 = vmatprep.subr.mxu0 0.0
    %v4793 = vand.u32 %v2171, 4294901760
    %4794 = vmatpush1.msra.mxu0 %v4793
    %4795 = vmatprep.subr.mxu0 0.0
    %v4796 = vand.u32 %v2172, 4294901760
    %4797 = vmatpush1.msra.mxu0 %v4796
    %4798 = vmatprep.subr.mxu0 0.0
    %v4799 = vand.u32 %v2173, 4294901760
    %4800 = vmatpush1.msra.mxu0 %v4799
    %4801 = vmatprep.subr.mxu0 0.0
    %v4802 = vand.u32 %v2174, 4294901760
    %4803 = vmatpush1.msra.mxu0 %v4802
    %v4804 = vand.u32 %v2176, 4294901760
    %4805 = vmatprep.mubr.f32.mxu0 %v4804
    %v4806 = vand.u32 %v2175, 4294901760
    %4807 = vmatmul.mubr.f32.gmra.mrb[0].mxu0 %v4806
    %v4808 = vpop.f32.mrb[0].mxu0
    %v4809 = vadd.f32 %v4488, %v4808
    %v4810 = vpop.f32.mrb[0].mxu0
    %v4811 = vand.u32 %v2178, 4294901760
    %4812 = vmatprep.mubr.f32.mxu0 %v4811
    %v4813 = vand.u32 %v2177, 4294901760
    %4814 = vmatmul.mubr.f32.gmra.mrb[0].mxu0 %v4813
    %v4815 = vpop.f32.mrb[0].mxu0
    %v4816 = vadd.f32 %v4495, %v4815
    %v4817 = vpop.f32.mrb[0].mxu0
    %v4818 = vand.u32 %v2180, 4294901760
    %4819 = vmatprep.mubr.f32.mxu0 %v4818
    %v4820 = vand.u32 %v2179, 4294901760
    %4821 = vmatmul.mubr.f32.gmra.mrb[0].mxu0 %v4820
    %v4822 = vpop.f32.mrb[0].mxu0
    %v4823 = vadd.f32 %v4502, %v4822
    %v4824 = vpop.f32.mrb[0].mxu0
    %v4825 = vand.u32 %v2182, 4294901760
    %4826 = vmatprep.mubr.f32.mxu0 %v4825
    %v4827 = vand.u32 %v2181, 4294901760
    %4828 = vmatmul.mubr.f32.gmra.mrb[0].mxu0 %v4827
    %v4829 = vpop.f32.mrb[0].mxu0
    %v4830 = vadd.f32 %v4509, %v4829
    %v4831 = vpop.f32.mrb[0].mxu0
    %v4832 = vand.u32 %v2184, 4294901760
    %4833 = vmatprep.mubr.f32.mxu0 %v4832
    %v4834 = vand.u32 %v2183, 4294901760
    %4835 = vmatmul.mubr.f32.gmra.mrb[0].mxu0 %v4834
    %v4836 = vpop.f32.mrb[0].mxu0
    %v4837 = vadd.f32 %v4516, %v4836
    %v4838 = vpop.f32.mrb[0].mxu0
    %v4839 = vand.u32 %v2186, 4294901760
    %4840 = vmatprep.mubr.f32.mxu0 %v4839
    %v4841 = vand.u32 %v2185, 4294901760
    %4842 = vmatmul.mubr.f32.gmra.mrb[0].mxu0 %v4841
    %v4843 = vpop.f32.mrb[0].mxu0
    %v4844 = vadd.f32 %v4523, %v4843
    %v4845 = vpop.f32.mrb[0].mxu0
    %v4846 = vand.u32 %v2188, 4294901760
    %4847 = vmatprep.mubr.f32.mxu0 %v4846
    %v4848 = vand.u32 %v2187, 4294901760
    %4849 = vmatmul.mubr.f32.gmra.mrb[0].mxu0 %v4848
    %v4850 = vpop.f32.mrb[0].mxu0
    %v4851 = vadd.f32 %v4530, %v4850
    %v4852 = vpop.f32.mrb[0].mxu0
    %v4853 = vand.u32 %v2190, 4294901760
    %4854 = vmatprep.mubr.f32.mxu0 %v4853
    %v4855 = vand.u32 %v2189, 4294901760
    %4856 = vmatmul.mubr.f32.gmra.mrb[0].mxu0 %v4855
    %v4857 = vpop.f32.mrb[0].mxu0
    %v4858 = vadd.f32 %v4537, %v4857
    %v4859 = vpop.f32.mrb[0].mxu0
    %v4860 = vand.u32 %v2192, 4294901760
    %4861 = vmatprep.mubr.f32.mxu0 %v4860
    %v4862 = vand.u32 %v2191, 4294901760
    %4863 = vmatmul.mubr.f32.gmra.mrb[0].mxu0 %v4862
    %v4864 = vpop.f32.mrb[0].mxu0
    %v4865 = vadd.f32 %v4544, %v4864
    %v4866 = vpop.f32.mrb[0].mxu0
    %v4867 = vand.u32 %v2194, 4294901760
    %4868 = vmatprep.mubr.f32.mxu0 %v4867
    %v4869 = vand.u32 %v2193, 4294901760
    %4870 = vmatmul.mubr.f32.gmra.mrb[0].mxu0 %v4869
    %v4871 = vpop.f32.mrb[0].mxu0
    %v4872 = vadd.f32 %v4551, %v4871
    %v4873 = vpop.f32.mrb[0].mxu0
    %v4874 = vand.u32 %v2196, 4294901760
    %4875 = vmatprep.mubr.f32.mxu0 %v4874
    %v4876 = vand.u32 %v2195, 4294901760
    %4877 = vmatmul.mubr.f32.gmra.mrb[0].mxu0 %v4876
    %v4878 = vpop.f32.mrb[0].mxu0
    %v4879 = vadd.f32 %v4558, %v4878
    %v4880 = vpop.f32.mrb[0].mxu0
    %v4881 = vand.u32 %v2198, 4294901760
    %4882 = vmatprep.mubr.f32.mxu0 %v4881
    %v4883 = vand.u32 %v2197, 4294901760
    %4884 = vmatmul.mubr.f32.gmra.mrb[0].mxu0 %v4883
    %v4885 = vpop.f32.mrb[0].mxu0
    %v4886 = vadd.f32 %v4565, %v4885
    %v4887 = vpop.f32.mrb[0].mxu0
    %v4888 = vand.u32 %v2200, 4294901760
    %4889 = vmatprep.mubr.f32.mxu0 %v4888
    %v4890 = vand.u32 %v2199, 4294901760
    %4891 = vmatmul.mubr.f32.gmra.mrb[0].mxu0 %v4890
    %v4892 = vpop.f32.mrb[0].mxu0
    %v4893 = vadd.f32 %v4572, %v4892
    %v4894 = vpop.f32.mrb[0].mxu0
    %v4895 = vand.u32 %v2202, 4294901760
    %4896 = vmatprep.mubr.f32.mxu0 %v4895
    %v4897 = vand.u32 %v2201, 4294901760
    %4898 = vmatmul.mubr.f32.gmra.mrb[0].mxu0 %v4897
    %v4899 = vpop.f32.mrb[0].mxu0
    %v4900 = vadd.f32 %v4579, %v4899
    %v4901 = vpop.f32.mrb[0].mxu0
    %v4902 = vand.u32 %v2204, 4294901760
    %4903 = vmatprep.mubr.f32.mxu0 %v4902
    %v4904 = vand.u32 %v2203, 4294901760
    %4905 = vmatmul.mubr.f32.gmra.mrb[0].mxu0 %v4904
    %v4906 = vpop.f32.mrb[0].mxu0
    %v4907 = vadd.f32 %v4586, %v4906
    %v4908 = vpop.f32.mrb[0].mxu0
    %v4909 = vand.u32 %v2206, 4294901760
    %4910 = vmatprep.mubr.f32.mxu0 %v4909
    %v4911 = vand.u32 %v2205, 4294901760
    %4912 = vmatmul.mubr.f32.gmra.mrb[0].mxu0 %v4911
    %v4913 = vpop.f32.mrb[0].mxu0
    %v4914 = vadd.f32 %v4593, %v4913
    %v4915 = vpop.f32.mrb[0].mxu0
    %v4916 = vand.u32 %v2208, 4294901760
    %4917 = vmatprep.mubr.f32.mxu0 %v4916
    %v4918 = vand.u32 %v2207, 4294901760
    %4919 = vmatmul.mubr.f32.gmra.mrb[0].mxu0 %v4918
    %v4920 = vpop.f32.mrb[0].mxu0
    %v4921 = vadd.f32 %v4600, %v4920
    %v4922 = vpop.f32.mrb[0].mxu0
    %v4923 = vand.u32 %v2210, 4294901760
    %4924 = vmatprep.mubr.f32.mxu0 %v4923
    %v4925 = vand.u32 %v2209, 4294901760
    %4926 = vmatmul.mubr.f32.gmra.mrb[0].mxu0 %v4925
    %v4927 = vpop.f32.mrb[0].mxu0
    %v4928 = vadd.f32 %v4607, %v4927
    %v4929 = vpop.f32.mrb[0].mxu0
    %v4930 = vand.u32 %v2212, 4294901760
    %4931 = vmatprep.mubr.f32.mxu0 %v4930
    %v4932 = vand.u32 %v2211, 4294901760
    %4933 = vmatmul.mubr.f32.gmra.mrb[0].mxu0 %v4932
    %v4934 = vpop.f32.mrb[0].mxu0
    %v4935 = vadd.f32 %v4614, %v4934
    %v4936 = vpop.f32.mrb[0].mxu0
    %v4937 = vand.u32 %v2214, 4294901760
    %4938 = vmatprep.mubr.f32.mxu0 %v4937
    %v4939 = vand.u32 %v2213, 4294901760
    %4940 = vmatmul.mubr.f32.gmra.mrb[0].mxu0 %v4939
    %v4941 = vpop.f32.mrb[0].mxu0
    %v4942 = vadd.f32 %v4621, %v4941
    %v4943 = vpop.f32.mrb[0].mxu0
    %v4944 = vand.u32 %v2216, 4294901760
    %4945 = vmatprep.mubr.f32.mxu0 %v4944
    %v4946 = vand.u32 %v2215, 4294901760
    %4947 = vmatmul.mubr.f32.gmra.mrb[0].mxu0 %v4946
    %v4948 = vpop.f32.mrb[0].mxu0
    %v4949 = vadd.f32 %v4628, %v4948
    %v4950 = vpop.f32.mrb[0].mxu0
    %v4951 = vand.u32 %v2218, 4294901760
    %4952 = vmatprep.mubr.f32.mxu0 %v4951
    %v4953 = vand.u32 %v2217, 4294901760
    %4954 = vmatmul.mubr.f32.gmra.mrb[0].mxu0 %v4953
    %v4955 = vpop.f32.mrb[0].mxu0
    %v4956 = vadd.f32 %v4635, %v4955
    %v4957 = vpop.f32.mrb[0].mxu0
    %v4958 = vand.u32 %v2220, 4294901760
    %4959 = vmatprep.mubr.f32.mxu0 %v4958
    %v4960 = vand.u32 %v2219, 4294901760
    %4961 = vmatmul.mubr.f32.gmra.mrb[0].mxu0 %v4960
    %v4962 = vpop.f32.mrb[0].mxu0
    %v4963 = vadd.f32 %v4642, %v4962
    %v4964 = vpop.f32.mrb[0].mxu0
    %v4965 = vand.u32 %v2222, 4294901760
    %4966 = vmatprep.mubr.f32.mxu0 %v4965
    %v4967 = vand.u32 %v2221, 4294901760
    %4968 = vmatmul.mubr.f32.gmra.mrb[0].mxu0 %v4967
    %v4969 = vpop.f32.mrb[0].mxu0
    %v4970 = vadd.f32 %v4649, %v4969
    %v4971 = vpop.f32.mrb[0].mxu0
    %v4972 = vand.u32 %v2224, 4294901760
    %4973 = vmatprep.mubr.f32.mxu0 %v4972
    %v4974 = vand.u32 %v2223, 4294901760
    %4975 = vmatmul.mubr.f32.gmra.mrb[0].mxu0 %v4974
    %v4976 = vpop.f32.mrb[0].mxu0
    %v4977 = vadd.f32 %v4656, %v4976
    %v4978 = vpop.f32.mrb[0].mxu0
    %v4979 = vand.u32 %v2226, 4294901760
    %4980 = vmatprep.mubr.f32.mxu0 %v4979
    %v4981 = vand.u32 %v2225, 4294901760
    %4982 = vmatmul.mubr.f32.gmra.mrb[0].mxu0 %v4981
    %v4983 = vpop.f32.mrb[0].mxu0
    %v4984 = vadd.f32 %v4663, %v4983
    %v4985 = vpop.f32.mrb[0].mxu0
    %v4986 = vand.u32 %v2228, 4294901760
    %4987 = vmatprep.mubr.f32.mxu0 %v4986
    %v4988 = vand.u32 %v2227, 4294901760
    %4989 = vmatmul.mubr.f32.gmra.mrb[0].mxu0 %v4988
    %v4990 = vpop.f32.mrb[0].mxu0
    %v4991 = vadd.f32 %v4670, %v4990
    %v4992 = vpop.f32.mrb[0].mxu0
    %v4993 = vand.u32 %v2230, 4294901760
    %4994 = vmatprep.mubr.f32.mxu0 %v4993
    %v4995 = vand.u32 %v2229, 4294901760
    %4996 = vmatmul.mubr.f32.gmra.mrb[0].mxu0 %v4995
    %v4997 = vpop.f32.mrb[0].mxu0
    %v4998 = vadd.f32 %v4677, %v4997
    %v4999 = vpop.f32.mrb[0].mxu0
    %v5000 = vand.u32 %v2232, 4294901760
    %5001 = vmatprep.mubr.f32.mxu0 %v5000
    %v5002 = vand.u32 %v2231, 4294901760
    %5003 = vmatmul.mubr.f32.gmra.mrb[0].mxu0 %v5002
    %v5004 = vpop.f32.mrb[0].mxu0
    %v5005 = vadd.f32 %v4684, %v5004
    %v5006 = vpop.f32.mrb[0].mxu0
    %v5007 = vand.u32 %v2234, 4294901760
    %5008 = vmatprep.mubr.f32.mxu0 %v5007
    %v5009 = vand.u32 %v2233, 4294901760
    %5010 = vmatmul.mubr.f32.gmra.mrb[0].mxu0 %v5009
    %v5011 = vpop.f32.mrb[0].mxu0
    %v5012 = vadd.f32 %v4691, %v5011
    %v5013 = vpop.f32.mrb[0].mxu0
    %v5014 = vand.u32 %v2236, 4294901760
    %5015 = vmatprep.mubr.f32.mxu0 %v5014
    %v5016 = vand.u32 %v2235, 4294901760
    %5017 = vmatmul.mubr.f32.gmra.mrb[0].mxu0 %v5016
    %v5018 = vpop.f32.mrb[0].mxu0
    %v5019 = vadd.f32 %v4698, %v5018
    %v5020 = vpop.f32.mrb[0].mxu0
    %v5021 = vand.u32 %v2238, 4294901760
    %5022 = vmatprep.mubr.f32.mxu0 %v5021
    %v5023 = vand.u32 %v2237, 4294901760
    %5024 = vmatmul.mubr.f32.gmra.mrb[0].mxu0 %v5023
    %v5025 = vpop.f32.mrb[0].mxu0
    %v5026 = vadd.f32 %v4705, %v5025
    %v5027 = vpop.f32.mrb[0].mxu0
    %5028 = vdwg.mxu0
    %v5029 = vmax.f32 %v4809, 0.0
    %v5030 = vmax.f32 %v4816, 0.0
    %v5031 = vmax.f32 %v4823, 0.0
    %v5032 = vmax.f32 %v4830, 0.0
    %v5033 = vmax.f32 %v4837, 0.0
    %v5034 = vmax.f32 %v4844, 0.0
    %v5035 = vmax.f32 %v4851, 0.0
    %v5036 = vmax.f32 %v4858, 0.0
    %v5037 = vmax.f32 %v4865, 0.0
    %v5038 = vmax.f32 %v4872, 0.0
    %v5039 = vmax.f32 %v4879, 0.0
    %v5040 = vmax.f32 %v4886, 0.0
    %v5041 = vmax.f32 %v4893, 0.0
    %v5042 = vmax.f32 %v4900, 0.0
    %v5043 = vmax.f32 %v4907, 0.0
    %v5044 = vmax.f32 %v4914, 0.0
    %v5045 = vmax.f32 %v4921, 0.0
    %v5046 = vmax.f32 %v4928, 0.0
    %v5047 = vmax.f32 %v4935, 0.0
    %v5048 = vmax.f32 %v4942, 0.0
    %v5049 = vmax.f32 %v4949, 0.0
    %v5050 = vmax.f32 %v4956, 0.0
    %v5051 = vmax.f32 %v4963, 0.0
    %v5052 = vmax.f32 %v4970, 0.0
    %v5053 = vmax.f32 %v4977, 0.0
    %v5054 = vmax.f32 %v4984, 0.0
    %v5055 = vmax.f32 %v4991, 0.0
    %v5056 = vmax.f32 %v4998, 0.0
    %v5057 = vmax.f32 %v5005, 0.0
    %v5058 = vmax.f32 %v5012, 0.0
    %v5059 = vmax.f32 %v5019, 0.0
    %v5060 = vmax.f32 %v5026, 0.0
    %v5061 = vld [vmem:[%s5] sm:$0x3]
    %s5062 = sld [smem:[#allocation2]]
    %v5063 = vstv %s5062
    %v5065 = vlaneseq
    %v5066 = vshrl.u32 %v5065, 7
    %v5067 = vsub.s32 0, %v5066
    %v5068 = vrot.slane %v5061, %v5067
    %v5069 = vlaneseq
    %v5070 = vshrl.u32 %v5069, 7
    %v5071 = vsub.s32 1, %v5070
    %v5072 = vrot.slane %v5061, %v5071
    %5075 = vmatprep.subr.mxu0 0.0
    %v5076 = vand.u32 %v5029, 4294901760
    %5077 = vmatpush1.msra.mxu0 %v5076
    %5078 = vmatprep.subr.mxu0 0.0
    %v5079 = vand.u32 %v5030, 4294901760
    %5080 = vmatpush1.msra.mxu0 %v5079
    %5081 = vmatprep.subr.mxu0 0.0
    %v5082 = vand.u32 %v5031, 4294901760
    %5083 = vmatpush1.msra.mxu0 %v5082
    %5084 = vmatprep.subr.mxu0 0.0
    %v5085 = vand.u32 %v5032, 4294901760
    %5086 = vmatpush1.msra.mxu0 %v5085
    %5087 = vmatprep.subr.mxu0 0.0
    %v5088 = vand.u32 %v5033, 4294901760
    %5089 = vmatpush1.msra.mxu0 %v5088
    %5090 = vmatprep.subr.mxu0 0.0
    %v5091 = vand.u32 %v5034, 4294901760
    %5092 = vmatpush1.msra.mxu0 %v5091
    %5093 = vmatprep.subr.mxu0 0.0
    %v5094 = vand.u32 %v5035, 4294901760
    %5095 = vmatpush1.msra.mxu0 %v5094
    %5096 = vmatprep.subr.mxu0 0.0
    %v5097 = vand.u32 %v5036, 4294901760
    %5098 = vmatpush1.msra.mxu0 %v5097
    %5099 = vmatprep.subr.mxu0 0.0
    %v5100 = vand.u32 %v5037, 4294901760
    %5101 = vmatpush1.msra.mxu0 %v5100
    %5102 = vmatprep.subr.mxu0 0.0
    %v5103 = vand.u32 %v5038, 4294901760
    %5104 = vmatpush1.msra.mxu0 %v5103
    %5105 = vmatprep.subr.mxu0 0.0
    %v5106 = vand.u32 %v5039, 4294901760
    %5107 = vmatpush1.msra.mxu0 %v5106
    %5108 = vmatprep.subr.mxu0 0.0
    %v5109 = vand.u32 %v5040, 4294901760
    %5110 = vmatpush1.msra.mxu0 %v5109
    %5111 = vmatprep.subr.mxu0 0.0
    %v5112 = vand.u32 %v5041, 4294901760
    %5113 = vmatpush1.msra.mxu0 %v5112
    %5114 = vmatprep.subr.mxu0 0.0
    %v5115 = vand.u32 %v5042, 4294901760
    %5116 = vmatpush1.msra.mxu0 %v5115
    %5117 = vmatprep.subr.mxu0 0.0
    %v5118 = vand.u32 %v5043, 4294901760
    %5119 = vmatpush1.msra.mxu0 %v5118
    %5120 = vmatprep.subr.mxu0 0.0
    %v5121 = vand.u32 %v5044, 4294901760
    %5122 = vmatpush1.msra.mxu0 %v5121
    %5123 = vmatprep.subr.mxu0 0.0
    %v5124 = vand.u32 %v5045, 4294901760
    %5125 = vmatpush1.msra.mxu0 %v5124
    %5126 = vmatprep.subr.mxu0 0.0
    %v5127 = vand.u32 %v5046, 4294901760
    %5128 = vmatpush1.msra.mxu0 %v5127
    %5129 = vmatprep.subr.mxu0 0.0
    %v5130 = vand.u32 %v5047, 4294901760
    %5131 = vmatpush1.msra.mxu0 %v5130
    %5132 = vmatprep.subr.mxu0 0.0
    %v5133 = vand.u32 %v5048, 4294901760
    %5134 = vmatpush1.msra.mxu0 %v5133
    %5135 = vmatprep.subr.mxu0 0.0
    %v5136 = vand.u32 %v5049, 4294901760
    %5137 = vmatpush1.msra.mxu0 %v5136
    %5138 = vmatprep.subr.mxu0 0.0
    %v5139 = vand.u32 %v5050, 4294901760
    %5140 = vmatpush1.msra.mxu0 %v5139
    %5141 = vmatprep.subr.mxu0 0.0
    %v5142 = vand.u32 %v5051, 4294901760
    %5143 = vmatpush1.msra.mxu0 %v5142
    %5144 = vmatprep.subr.mxu0 0.0
    %v5145 = vand.u32 %v5052, 4294901760
    %5146 = vmatpush1.msra.mxu0 %v5145
    %5147 = vmatprep.subr.mxu0 0.0
    %v5148 = vand.u32 %v5053, 4294901760
    %5149 = vmatpush1.msra.mxu0 %v5148
    %5150 = vmatprep.subr.mxu0 0.0
    %v5151 = vand.u32 %v5054, 4294901760
    %5152 = vmatpush1.msra.mxu0 %v5151
    %5153 = vmatprep.subr.mxu0 0.0
    %v5154 = vand.u32 %v5055, 4294901760
    %5155 = vmatpush1.msra.mxu0 %v5154
    %5156 = vmatprep.subr.mxu0 0.0
    %v5157 = vand.u32 %v5056, 4294901760
    %5158 = vmatpush1.msra.mxu0 %v5157
    %5159 = vmatprep.subr.mxu0 0.0
    %v5160 = vand.u32 %v5057, 4294901760
    %5161 = vmatpush1.msra.mxu0 %v5160
    %5162 = vmatprep.subr.mxu0 0.0
    %v5163 = vand.u32 %v5058, 4294901760
    %5164 = vmatpush1.msra.mxu0 %v5163
    %5165 = vmatprep.subr.mxu0 0.0
    %v5166 = vand.u32 %v5059, 4294901760
    %5167 = vmatpush1.msra.mxu0 %v5166
    %5168 = vmatprep.subr.mxu0 0.0
    %v5169 = vand.u32 %v5060, 4294901760
    %5170 = vmatpush1.msra.mxu0 %v5169
    %v5171 = vand.u32 %v5072, 4294901760
    %v5172 = vsub.f32 %v5072, %v5171
    %v5173 = vand.u32 %v5172, 4294901760
    %v5174 = vsub.f32 %v5172, %v5173
    %v5175 = vand.u32 %v5174, 4294901760
    %5176 = vmatprep.mubr.f32.mxu0 %v5175
    %v5177 = vand.u32 %v5068, 4294901760
    %v5178 = vsub.f32 %v5068, %v5177
    %v5179 = vand.u32 %v5178, 4294901760
    %v5180 = vsub.f32 %v5178, %v5179
    %v5181 = vand.u32 %v5180, 4294901760
    %5182 = vmatmul.mubr.f32.gmra.mrb[0].mxu0 %v5181
    %v5183 = vpop.f32.mrb[0].mxu0
    %v5184 = vadd.f32 %v5063, %v5183
    %v5185 = vpop.f32.mrb[0].mxu0
    %5186 = vdwg.mxu0
    %5187 = vmatprep.subr.mxu0 0.0
    %v5188 = vand.u32 %v5029, 4294901760
    %v5189 = vsub.f32 %v5029, %v5188
    %v5190 = vand.u32 %v5189, 4294901760
    %v5191 = vsub.f32 %v5189, %v5190
    %v5192 = vand.u32 %v5191, 4294901760
    %5193 = vmatpush1.msra.mxu0 %v5192
    %5194 = vmatprep.subr.mxu0 0.0
    %v5195 = vand.u32 %v5030, 4294901760
    %v5196 = vsub.f32 %v5030, %v5195
    %v5197 = vand.u32 %v5196, 4294901760
    %v5198 = vsub.f32 %v5196, %v5197
    %v5199 = vand.u32 %v5198, 4294901760
    %5200 = vmatpush1.msra.mxu0 %v5199
    %5201 = vmatprep.subr.mxu0 0.0
    %v5202 = vand.u32 %v5031, 4294901760
    %v5203 = vsub.f32 %v5031, %v5202
    %v5204 = vand.u32 %v5203, 4294901760
    %v5205 = vsub.f32 %v5203, %v5204
    %v5206 = vand.u32 %v5205, 4294901760
    %5207 = vmatpush1.msra.mxu0 %v5206
    %5208 = vmatprep.subr.mxu0 0.0
    %v5209 = vand.u32 %v5032, 4294901760
    %v5210 = vsub.f32 %v5032, %v5209
    %v5211 = vand.u32 %v5210, 4294901760
    %v5212 = vsub.f32 %v5210, %v5211
    %v5213 = vand.u32 %v5212, 4294901760
    %5214 = vmatpush1.msra.mxu0 %v5213
    %5215 = vmatprep.subr.mxu0 0.0
    %v5216 = vand.u32 %v5033, 4294901760
    %v5217 = vsub.f32 %v5033, %v5216
    %v5218 = vand.u32 %v5217, 4294901760
    %v5219 = vsub.f32 %v5217, %v5218
    %v5220 = vand.u32 %v5219, 4294901760
    %5221 = vmatpush1.msra.mxu0 %v5220
    %5222 = vmatprep.subr.mxu0 0.0
    %v5223 = vand.u32 %v5034, 4294901760
    %v5224 = vsub.f32 %v5034, %v5223
    %v5225 = vand.u32 %v5224, 4294901760
    %v5226 = vsub.f32 %v5224, %v5225
    %v5227 = vand.u32 %v5226, 4294901760
    %5228 = vmatpush1.msra.mxu0 %v5227
    %5229 = vmatprep.subr.mxu0 0.0
    %v5230 = vand.u32 %v5035, 4294901760
    %v5231 = vsub.f32 %v5035, %v5230
    %v5232 = vand.u32 %v5231, 4294901760
    %v5233 = vsub.f32 %v5231, %v5232
    %v5234 = vand.u32 %v5233, 4294901760
    %5235 = vmatpush1.msra.mxu0 %v5234
    %5236 = vmatprep.subr.mxu0 0.0
    %v5237 = vand.u32 %v5036, 4294901760
    %v5238 = vsub.f32 %v5036, %v5237
    %v5239 = vand.u32 %v5238, 4294901760
    %v5240 = vsub.f32 %v5238, %v5239
    %v5241 = vand.u32 %v5240, 4294901760
    %5242 = vmatpush1.msra.mxu0 %v5241
    %5243 = vmatprep.subr.mxu0 0.0
    %v5244 = vand.u32 %v5037, 4294901760
    %v5245 = vsub.f32 %v5037, %v5244
    %v5246 = vand.u32 %v5245, 4294901760
    %v5247 = vsub.f32 %v5245, %v5246
    %v5248 = vand.u32 %v5247, 4294901760
    %5249 = vmatpush1.msra.mxu0 %v5248
    %5250 = vmatprep.subr.mxu0 0.0
    %v5251 = vand.u32 %v5038, 4294901760
    %v5252 = vsub.f32 %v5038, %v5251
    %v5253 = vand.u32 %v5252, 4294901760
    %v5254 = vsub.f32 %v5252, %v5253
    %v5255 = vand.u32 %v5254, 4294901760
    %5256 = vmatpush1.msra.mxu0 %v5255
    %5257 = vmatprep.subr.mxu0 0.0
    %v5258 = vand.u32 %v5039, 4294901760
    %v5259 = vsub.f32 %v5039, %v5258
    %v5260 = vand.u32 %v5259, 4294901760
    %v5261 = vsub.f32 %v5259, %v5260
    %v5262 = vand.u32 %v5261, 4294901760
    %5263 = vmatpush1.msra.mxu0 %v5262
    %5264 = vmatprep.subr.mxu0 0.0
    %v5265 = vand.u32 %v5040, 4294901760
    %v5266 = vsub.f32 %v5040, %v5265
    %v5267 = vand.u32 %v5266, 4294901760
    %v5268 = vsub.f32 %v5266, %v5267
    %v5269 = vand.u32 %v5268, 4294901760
    %5270 = vmatpush1.msra.mxu0 %v5269
    %5271 = vmatprep.subr.mxu0 0.0
    %v5272 = vand.u32 %v5041, 4294901760
    %v5273 = vsub.f32 %v5041, %v5272
    %v5274 = vand.u32 %v5273, 4294901760
    %v5275 = vsub.f32 %v5273, %v5274
    %v5276 = vand.u32 %v5275, 4294901760
    %5277 = vmatpush1.msra.mxu0 %v5276
    %5278 = vmatprep.subr.mxu0 0.0
    %v5279 = vand.u32 %v5042, 4294901760
    %v5280 = vsub.f32 %v5042, %v5279
    %v5281 = vand.u32 %v5280, 4294901760
    %v5282 = vsub.f32 %v5280, %v5281
    %v5283 = vand.u32 %v5282, 4294901760
    %5284 = vmatpush1.msra.mxu0 %v5283
    %5285 = vmatprep.subr.mxu0 0.0
    %v5286 = vand.u32 %v5043, 4294901760
    %v5287 = vsub.f32 %v5043, %v5286
    %v5288 = vand.u32 %v5287, 4294901760
    %v5289 = vsub.f32 %v5287, %v5288
    %v5290 = vand.u32 %v5289, 4294901760
    %5291 = vmatpush1.msra.mxu0 %v5290
    %5292 = vmatprep.subr.mxu0 0.0
    %v5293 = vand.u32 %v5044, 4294901760
    %v5294 = vsub.f32 %v5044, %v5293
    %v5295 = vand.u32 %v5294, 4294901760
    %v5296 = vsub.f32 %v5294, %v5295
    %v5297 = vand.u32 %v5296, 4294901760
    %5298 = vmatpush1.msra.mxu0 %v5297
    %5299 = vmatprep.subr.mxu0 0.0
    %v5300 = vand.u32 %v5045, 4294901760
    %v5301 = vsub.f32 %v5045, %v5300
    %v5302 = vand.u32 %v5301, 4294901760
    %v5303 = vsub.f32 %v5301, %v5302
    %v5304 = vand.u32 %v5303, 4294901760
    %5305 = vmatpush1.msra.mxu0 %v5304
    %5306 = vmatprep.subr.mxu0 0.0
    %v5307 = vand.u32 %v5046, 4294901760
    %v5308 = vsub.f32 %v5046, %v5307
    %v5309 = vand.u32 %v5308, 4294901760
    %v5310 = vsub.f32 %v5308, %v5309
    %v5311 = vand.u32 %v5310, 4294901760
    %5312 = vmatpush1.msra.mxu0 %v5311
    %5313 = vmatprep.subr.mxu0 0.0
    %v5314 = vand.u32 %v5047, 4294901760
    %v5315 = vsub.f32 %v5047, %v5314
    %v5316 = vand.u32 %v5315, 4294901760
    %v5317 = vsub.f32 %v5315, %v5316
    %v5318 = vand.u32 %v5317, 4294901760
    %5319 = vmatpush1.msra.mxu0 %v5318
    %5320 = vmatprep.subr.mxu0 0.0
    %v5321 = vand.u32 %v5048, 4294901760
    %v5322 = vsub.f32 %v5048, %v5321
    %v5323 = vand.u32 %v5322, 4294901760
    %v5324 = vsub.f32 %v5322, %v5323
    %v5325 = vand.u32 %v5324, 4294901760
    %5326 = vmatpush1.msra.mxu0 %v5325
    %5327 = vmatprep.subr.mxu0 0.0
    %v5328 = vand.u32 %v5049, 4294901760
    %v5329 = vsub.f32 %v5049, %v5328
    %v5330 = vand.u32 %v5329, 4294901760
    %v5331 = vsub.f32 %v5329, %v5330
    %v5332 = vand.u32 %v5331, 4294901760
    %5333 = vmatpush1.msra.mxu0 %v5332
    %5334 = vmatprep.subr.mxu0 0.0
    %v5335 = vand.u32 %v5050, 4294901760
    %v5336 = vsub.f32 %v5050, %v5335
    %v5337 = vand.u32 %v5336, 4294901760
    %v5338 = vsub.f32 %v5336, %v5337
    %v5339 = vand.u32 %v5338, 4294901760
    %5340 = vmatpush1.msra.mxu0 %v5339
    %5341 = vmatprep.subr.mxu0 0.0
    %v5342 = vand.u32 %v5051, 4294901760
    %v5343 = vsub.f32 %v5051, %v5342
    %v5344 = vand.u32 %v5343, 4294901760
    %v5345 = vsub.f32 %v5343, %v5344
    %v5346 = vand.u32 %v5345, 4294901760
    %5347 = vmatpush1.msra.mxu0 %v5346
    %5348 = vmatprep.subr.mxu0 0.0
    %v5349 = vand.u32 %v5052, 4294901760
    %v5350 = vsub.f32 %v5052, %v5349
    %v5351 = vand.u32 %v5350, 4294901760
    %v5352 = vsub.f32 %v5350, %v5351
    %v5353 = vand.u32 %v5352, 4294901760
    %5354 = vmatpush1.msra.mxu0 %v5353
    %5355 = vmatprep.subr.mxu0 0.0
    %v5356 = vand.u32 %v5053, 4294901760
    %v5357 = vsub.f32 %v5053, %v5356
    %v5358 = vand.u32 %v5357, 4294901760
    %v5359 = vsub.f32 %v5357, %v5358
    %v5360 = vand.u32 %v5359, 4294901760
    %5361 = vmatpush1.msra.mxu0 %v5360
    %5362 = vmatprep.subr.mxu0 0.0
    %v5363 = vand.u32 %v5054, 4294901760
    %v5364 = vsub.f32 %v5054, %v5363
    %v5365 = vand.u32 %v5364, 4294901760
    %v5366 = vsub.f32 %v5364, %v5365
    %v5367 = vand.u32 %v5366, 4294901760
    %5368 = vmatpush1.msra.mxu0 %v5367
    %5369 = vmatprep.subr.mxu0 0.0
    %v5370 = vand.u32 %v5055, 4294901760
    %v5371 = vsub.f32 %v5055, %v5370
    %v5372 = vand.u32 %v5371, 4294901760
    %v5373 = vsub.f32 %v5371, %v5372
    %v5374 = vand.u32 %v5373, 4294901760
    %5375 = vmatpush1.msra.mxu0 %v5374
    %5376 = vmatprep.subr.mxu0 0.0
    %v5377 = vand.u32 %v5056, 4294901760
    %v5378 = vsub.f32 %v5056, %v5377
    %v5379 = vand.u32 %v5378, 4294901760
    %v5380 = vsub.f32 %v5378, %v5379
    %v5381 = vand.u32 %v5380, 4294901760
    %5382 = vmatpush1.msra.mxu0 %v5381
    %5383 = vmatprep.subr.mxu0 0.0
    %v5384 = vand.u32 %v5057, 4294901760
    %v5385 = vsub.f32 %v5057, %v5384
    %v5386 = vand.u32 %v5385, 4294901760
    %v5387 = vsub.f32 %v5385, %v5386
    %v5388 = vand.u32 %v5387, 4294901760
    %5389 = vmatpush1.msra.mxu0 %v5388
    %5390 = vmatprep.subr.mxu0 0.0
    %v5391 = vand.u32 %v5058, 4294901760
    %v5392 = vsub.f32 %v5058, %v5391
    %v5393 = vand.u32 %v5392, 4294901760
    %v5394 = vsub.f32 %v5392, %v5393
    %v5395 = vand.u32 %v5394, 4294901760
    %5396 = vmatpush1.msra.mxu0 %v5395
    %5397 = vmatprep.subr.mxu0 0.0
    %v5398 = vand.u32 %v5059, 4294901760
    %v5399 = vsub.f32 %v5059, %v5398
    %v5400 = vand.u32 %v5399, 4294901760
    %v5401 = vsub.f32 %v5399, %v5400
    %v5402 = vand.u32 %v5401, 4294901760
    %5403 = vmatpush1.msra.mxu0 %v5402
    %5404 = vmatprep.subr.mxu0 0.0
    %v5405 = vand.u32 %v5060, 4294901760
    %v5406 = vsub.f32 %v5060, %v5405
    %v5407 = vand.u32 %v5406, 4294901760
    %v5408 = vsub.f32 %v5406, %v5407
    %v5409 = vand.u32 %v5408, 4294901760
    %5410 = vmatpush1.msra.mxu0 %v5409
    %v5411 = vand.u32 %v5072, 4294901760
    %5412 = vmatprep.mubr.f32.mxu0 %v5411
    %v5413 = vand.u32 %v5068, 4294901760
    %5414 = vmatmul.mubr.f32.gmra.mrb[0].mxu0 %v5413
    %v5415 = vpop.f32.mrb[0].mxu0
    %v5416 = vadd.f32 %v5184, %v5415
    %v5417 = vpop.f32.mrb[0].mxu0
    %5418 = vdwg.mxu0
    %5419 = vmatprep.subr.mxu0 0.0
    %v5420 = vand.u32 %v5029, 4294901760
    %v5421 = vsub.f32 %v5029, %v5420
    %5422 = vmatpush1.msra.mxu0 %v5421
    %5423 = vmatprep.subr.mxu0 0.0
    %v5424 = vand.u32 %v5030, 4294901760
    %v5425 = vsub.f32 %v5030, %v5424
    %5426 = vmatpush1.msra.mxu0 %v5425
    %5427 = vmatprep.subr.mxu0 0.0
    %v5428 = vand.u32 %v5031, 4294901760
    %v5429 = vsub.f32 %v5031, %v5428
    %5430 = vmatpush1.msra.mxu0 %v5429
    %5431 = vmatprep.subr.mxu0 0.0
    %v5432 = vand.u32 %v5032, 4294901760
    %v5433 = vsub.f32 %v5032, %v5432
    %5434 = vmatpush1.msra.mxu0 %v5433
    %5435 = vmatprep.subr.mxu0 0.0
    %v5436 = vand.u32 %v5033, 4294901760
    %v5437 = vsub.f32 %v5033, %v5436
    %5438 = vmatpush1.msra.mxu0 %v5437
    %5439 = vmatprep.subr.mxu0 0.0
    %v5440 = vand.u32 %v5034, 4294901760
    %v5441 = vsub.f32 %v5034, %v5440
    %5442 = vmatpush1.msra.mxu0 %v5441
    %5443 = vmatprep.subr.mxu0 0.0
    %v5444 = vand.u32 %v5035, 4294901760
    %v5445 = vsub.f32 %v5035, %v5444
    %5446 = vmatpush1.msra.mxu0 %v5445
    %5447 = vmatprep.subr.mxu0 0.0
    %v5448 = vand.u32 %v5036, 4294901760
    %v5449 = vsub.f32 %v5036, %v5448
    %5450 = vmatpush1.msra.mxu0 %v5449
    %5451 = vmatprep.subr.mxu0 0.0
    %v5452 = vand.u32 %v5037, 4294901760
    %v5453 = vsub.f32 %v5037, %v5452
    %5454 = vmatpush1.msra.mxu0 %v5453
    %5455 = vmatprep.subr.mxu0 0.0
    %v5456 = vand.u32 %v5038, 4294901760
    %v5457 = vsub.f32 %v5038, %v5456
    %5458 = vmatpush1.msra.mxu0 %v5457
    %5459 = vmatprep.subr.mxu0 0.0
    %v5460 = vand.u32 %v5039, 4294901760
    %v5461 = vsub.f32 %v5039, %v5460
    %5462 = vmatpush1.msra.mxu0 %v5461
    %5463 = vmatprep.subr.mxu0 0.0
    %v5464 = vand.u32 %v5040, 4294901760
    %v5465 = vsub.f32 %v5040, %v5464
    %5466 = vmatpush1.msra.mxu0 %v5465
    %5467 = vmatprep.subr.mxu0 0.0
    %v5468 = vand.u32 %v5041, 4294901760
    %v5469 = vsub.f32 %v5041, %v5468
    %5470 = vmatpush1.msra.mxu0 %v5469
    %5471 = vmatprep.subr.mxu0 0.0
    %v5472 = vand.u32 %v5042, 4294901760
    %v5473 = vsub.f32 %v5042, %v5472
    %5474 = vmatpush1.msra.mxu0 %v5473
    %5475 = vmatprep.subr.mxu0 0.0
    %v5476 = vand.u32 %v5043, 4294901760
    %v5477 = vsub.f32 %v5043, %v5476
    %5478 = vmatpush1.msra.mxu0 %v5477
    %5479 = vmatprep.subr.mxu0 0.0
    %v5480 = vand.u32 %v5044, 4294901760
    %v5481 = vsub.f32 %v5044, %v5480
    %5482 = vmatpush1.msra.mxu0 %v5481
    %5483 = vmatprep.subr.mxu0 0.0
    %v5484 = vand.u32 %v5045, 4294901760
    %v5485 = vsub.f32 %v5045, %v5484
    %5486 = vmatpush1.msra.mxu0 %v5485
    %5487 = vmatprep.subr.mxu0 0.0
    %v5488 = vand.u32 %v5046, 4294901760
    %v5489 = vsub.f32 %v5046, %v5488
    %5490 = vmatpush1.msra.mxu0 %v5489
    %5491 = vmatprep.subr.mxu0 0.0
    %v5492 = vand.u32 %v5047, 4294901760
    %v5493 = vsub.f32 %v5047, %v5492
    %5494 = vmatpush1.msra.mxu0 %v5493
    %5495 = vmatprep.subr.mxu0 0.0
    %v5496 = vand.u32 %v5048, 4294901760
    %v5497 = vsub.f32 %v5048, %v5496
    %5498 = vmatpush1.msra.mxu0 %v5497
    %5499 = vmatprep.subr.mxu0 0.0
    %v5500 = vand.u32 %v5049, 4294901760
    %v5501 = vsub.f32 %v5049, %v5500
    %5502 = vmatpush1.msra.mxu0 %v5501
    %5503 = vmatprep.subr.mxu0 0.0
    %v5504 = vand.u32 %v5050, 4294901760
    %v5505 = vsub.f32 %v5050, %v5504
    %5506 = vmatpush1.msra.mxu0 %v5505
    %5507 = vmatprep.subr.mxu0 0.0
    %v5508 = vand.u32 %v5051, 4294901760
    %v5509 = vsub.f32 %v5051, %v5508
    %5510 = vmatpush1.msra.mxu0 %v5509
    %5511 = vmatprep.subr.mxu0 0.0
    %v5512 = vand.u32 %v5052, 4294901760
    %v5513 = vsub.f32 %v5052, %v5512
    %5514 = vmatpush1.msra.mxu0 %v5513
    %5515 = vmatprep.subr.mxu0 0.0
    %v5516 = vand.u32 %v5053, 4294901760
    %v5517 = vsub.f32 %v5053, %v5516
    %5518 = vmatpush1.msra.mxu0 %v5517
    %5519 = vmatprep.subr.mxu0 0.0
    %v5520 = vand.u32 %v5054, 4294901760
    %v5521 = vsub.f32 %v5054, %v5520
    %5522 = vmatpush1.msra.mxu0 %v5521
    %5523 = vmatprep.subr.mxu0 0.0
    %v5524 = vand.u32 %v5055, 4294901760
    %v5525 = vsub.f32 %v5055, %v5524
    %5526 = vmatpush1.msra.mxu0 %v5525
    %5527 = vmatprep.subr.mxu0 0.0
    %v5528 = vand.u32 %v5056, 4294901760
    %v5529 = vsub.f32 %v5056, %v5528
    %5530 = vmatpush1.msra.mxu0 %v5529
    %5531 = vmatprep.subr.mxu0 0.0
    %v5532 = vand.u32 %v5057, 4294901760
    %v5533 = vsub.f32 %v5057, %v5532
    %5534 = vmatpush1.msra.mxu0 %v5533
    %5535 = vmatprep.subr.mxu0 0.0
    %v5536 = vand.u32 %v5058, 4294901760
    %v5537 = vsub.f32 %v5058, %v5536
    %5538 = vmatpush1.msra.mxu0 %v5537
    %5539 = vmatprep.subr.mxu0 0.0
    %v5540 = vand.u32 %v5059, 4294901760
    %v5541 = vsub.f32 %v5059, %v5540
    %5542 = vmatpush1.msra.mxu0 %v5541
    %5543 = vmatprep.subr.mxu0 0.0
    %v5544 = vand.u32 %v5060, 4294901760
    %v5545 = vsub.f32 %v5060, %v5544
    %5546 = vmatpush1.msra.mxu0 %v5545
    %v5547 = vand.u32 %v5072, 4294901760
    %v5548 = vsub.f32 %v5072, %v5547
    %5549 = vmatprep.mubr.f32.mxu0 %v5548
    %v5550 = vand.u32 %v5068, 4294901760
    %v5551 = vsub.f32 %v5068, %v5550
    %5552 = vmatmul.mubr.f32.gmra.mrb[0].mxu0 %v5551
    %v5553 = vpop.f32.mrb[0].mxu0
    %v5554 = vadd.f32 %v5416, %v5553
    %v5555 = vpop.f32.mrb[0].mxu0
    %5556 = vdwg.mxu0
    %5557 = vmatprep.subr.mxu0 0.0
    %v5558 = vand.u32 %v5029, 4294901760
    %5559 = vmatpush1.msra.mxu0 %v5558
    %5560 = vmatprep.subr.mxu0 0.0
    %v5561 = vand.u32 %v5030, 4294901760
    %5562 = vmatpush1.msra.mxu0 %v5561
    %5563 = vmatprep.subr.mxu0 0.0
    %v5564 = vand.u32 %v5031, 4294901760
    %5565 = vmatpush1.msra.mxu0 %v5564
    %5566 = vmatprep.subr.mxu0 0.0
    %v5567 = vand.u32 %v5032, 4294901760
    %5568 = vmatpush1.msra.mxu0 %v5567
    %5569 = vmatprep.subr.mxu0 0.0
    %v5570 = vand.u32 %v5033, 4294901760
    %5571 = vmatpush1.msra.mxu0 %v5570
    %5572 = vmatprep.subr.mxu0 0.0
    %v5573 = vand.u32 %v5034, 4294901760
    %5574 = vmatpush1.msra.mxu0 %v5573
    %5575 = vmatprep.subr.mxu0 0.0
    %v5576 = vand.u32 %v5035, 4294901760
    %5577 = vmatpush1.msra.mxu0 %v5576
    %5578 = vmatprep.subr.mxu0 0.0
    %v5579 = vand.u32 %v5036, 4294901760
    %5580 = vmatpush1.msra.mxu0 %v5579
    %5581 = vmatprep.subr.mxu0 0.0
    %v5582 = vand.u32 %v5037, 4294901760
    %5583 = vmatpush1.msra.mxu0 %v5582
    %5584 = vmatprep.subr.mxu0 0.0
    %v5585 = vand.u32 %v5038, 4294901760
    %5586 = vmatpush1.msra.mxu0 %v5585
    %5587 = vmatprep.subr.mxu0 0.0
    %v5588 = vand.u32 %v5039, 4294901760
    %5589 = vmatpush1.msra.mxu0 %v5588
    %5590 = vmatprep.subr.mxu0 0.0
    %v5591 = vand.u32 %v5040, 4294901760
    %5592 = vmatpush1.msra.mxu0 %v5591
    %5593 = vmatprep.subr.mxu0 0.0
    %v5594 = vand.u32 %v5041, 4294901760
    %5595 = vmatpush1.msra.mxu0 %v5594
    %5596 = vmatprep.subr.mxu0 0.0
    %v5597 = vand.u32 %v5042, 4294901760
    %5598 = vmatpush1.msra.mxu0 %v5597
    %5599 = vmatprep.subr.mxu0 0.0
    %v5600 = vand.u32 %v5043, 4294901760
    %5601 = vmatpush1.msra.mxu0 %v5600
    %5602 = vmatprep.subr.mxu0 0.0
    %v5603 = vand.u32 %v5044, 4294901760
    %5604 = vmatpush1.msra.mxu0 %v5603
    %5605 = vmatprep.subr.mxu0 0.0
    %v5606 = vand.u32 %v5045, 4294901760
    %5607 = vmatpush1.msra.mxu0 %v5606
    %5608 = vmatprep.subr.mxu0 0.0
    %v5609 = vand.u32 %v5046, 4294901760
    %5610 = vmatpush1.msra.mxu0 %v5609
    %5611 = vmatprep.subr.mxu0 0.0
    %v5612 = vand.u32 %v5047, 4294901760
    %5613 = vmatpush1.msra.mxu0 %v5612
    %5614 = vmatprep.subr.mxu0 0.0
    %v5615 = vand.u32 %v5048, 4294901760
    %5616 = vmatpush1.msra.mxu0 %v5615
    %5617 = vmatprep.subr.mxu0 0.0
    %v5618 = vand.u32 %v5049, 4294901760
    %5619 = vmatpush1.msra.mxu0 %v5618
    %5620 = vmatprep.subr.mxu0 0.0
    %v5621 = vand.u32 %v5050, 4294901760
    %5622 = vmatpush1.msra.mxu0 %v5621
    %5623 = vmatprep.subr.mxu0 0.0
    %v5624 = vand.u32 %v5051, 4294901760
    %5625 = vmatpush1.msra.mxu0 %v5624
    %5626 = vmatprep.subr.mxu0 0.0
    %v5627 = vand.u32 %v5052, 4294901760
    %5628 = vmatpush1.msra.mxu0 %v5627
    %5629 = vmatprep.subr.mxu0 0.0
    %v5630 = vand.u32 %v5053, 4294901760
    %5631 = vmatpush1.msra.mxu0 %v5630
    %5632 = vmatprep.subr.mxu0 0.0
    %v5633 = vand.u32 %v5054, 4294901760
    %5634 = vmatpush1.msra.mxu0 %v5633
    %5635 = vmatprep.subr.mxu0 0.0
    %v5636 = vand.u32 %v5055, 4294901760
    %5637 = vmatpush1.msra.mxu0 %v5636
    %5638 = vmatprep.subr.mxu0 0.0
    %v5639 = vand.u32 %v5056, 4294901760
    %5640 = vmatpush1.msra.mxu0 %v5639
    %5641 = vmatprep.subr.mxu0 0.0
    %v5642 = vand.u32 %v5057, 4294901760
    %5643 = vmatpush1.msra.mxu0 %v5642
    %5644 = vmatprep.subr.mxu0 0.0
    %v5645 = vand.u32 %v5058, 4294901760
    %5646 = vmatpush1.msra.mxu0 %v5645
    %5647 = vmatprep.subr.mxu0 0.0
    %v5648 = vand.u32 %v5059, 4294901760
    %5649 = vmatpush1.msra.mxu0 %v5648
    %5650 = vmatprep.subr.mxu0 0.0
    %v5651 = vand.u32 %v5060, 4294901760
    %5652 = vmatpush1.msra.mxu0 %v5651
    %v5653 = vand.u32 %v5072, 4294901760
    %v5654 = vsub.f32 %v5072, %v5653
    %v5655 = vand.u32 %v5654, 4294901760
    %5656 = vmatprep.mubr.f32.mxu0 %v5655
    %v5657 = vand.u32 %v5068, 4294901760
    %v5658 = vsub.f32 %v5068, %v5657
    %v5659 = vand.u32 %v5658, 4294901760
    %5660 = vmatmul.mubr.f32.gmra.mrb[0].mxu0 %v5659
    %v5661 = vpop.f32.mrb[0].mxu0
    %v5662 = vadd.f32 %v5554, %v5661
    %v5663 = vpop.f32.mrb[0].mxu0
    %5664 = vdwg.mxu0
    %5665 = vmatprep.subr.mxu0 0.0
    %v5666 = vand.u32 %v5029, 4294901760
    %v5667 = vsub.f32 %v5029, %v5666
    %v5668 = vand.u32 %v5667, 4294901760
    %5669 = vmatpush1.msra.mxu0 %v5668
    %5670 = vmatprep.subr.mxu0 0.0
    %v5671 = vand.u32 %v5030, 4294901760
    %v5672 = vsub.f32 %v5030, %v5671
    %v5673 = vand.u32 %v5672, 4294901760
    %5674 = vmatpush1.msra.mxu0 %v5673
    %5675 = vmatprep.subr.mxu0 0.0
    %v5676 = vand.u32 %v5031, 4294901760
    %v5677 = vsub.f32 %v5031, %v5676
    %v5678 = vand.u32 %v5677, 4294901760
    %5679 = vmatpush1.msra.mxu0 %v5678
    %5680 = vmatprep.subr.mxu0 0.0
    %v5681 = vand.u32 %v5032, 4294901760
    %v5682 = vsub.f32 %v5032, %v5681
    %v5683 = vand.u32 %v5682, 4294901760
    %5684 = vmatpush1.msra.mxu0 %v5683
    %5685 = vmatprep.subr.mxu0 0.0
    %v5686 = vand.u32 %v5033, 4294901760
    %v5687 = vsub.f32 %v5033, %v5686
    %v5688 = vand.u32 %v5687, 4294901760
    %5689 = vmatpush1.msra.mxu0 %v5688
    %5690 = vmatprep.subr.mxu0 0.0
    %v5691 = vand.u32 %v5034, 4294901760
    %v5692 = vsub.f32 %v5034, %v5691
    %v5693 = vand.u32 %v5692, 4294901760
    %5694 = vmatpush1.msra.mxu0 %v5693
    %5695 = vmatprep.subr.mxu0 0.0
    %v5696 = vand.u32 %v5035, 4294901760
    %v5697 = vsub.f32 %v5035, %v5696
    %v5698 = vand.u32 %v5697, 4294901760
    %5699 = vmatpush1.msra.mxu0 %v5698
    %5700 = vmatprep.subr.mxu0 0.0
    %v5701 = vand.u32 %v5036, 4294901760
    %v5702 = vsub.f32 %v5036, %v5701
    %v5703 = vand.u32 %v5702, 4294901760
    %5704 = vmatpush1.msra.mxu0 %v5703
    %5705 = vmatprep.subr.mxu0 0.0
    %v5706 = vand.u32 %v5037, 4294901760
    %v5707 = vsub.f32 %v5037, %v5706
    %v5708 = vand.u32 %v5707, 4294901760
    %5709 = vmatpush1.msra.mxu0 %v5708
    %5710 = vmatprep.subr.mxu0 0.0
    %v5711 = vand.u32 %v5038, 4294901760
    %v5712 = vsub.f32 %v5038, %v5711
    %v5713 = vand.u32 %v5712, 4294901760
    %5714 = vmatpush1.msra.mxu0 %v5713
    %5715 = vmatprep.subr.mxu0 0.0
    %v5716 = vand.u32 %v5039, 4294901760
    %v5717 = vsub.f32 %v5039, %v5716
    %v5718 = vand.u32 %v5717, 4294901760
    %5719 = vmatpush1.msra.mxu0 %v5718
    %5720 = vmatprep.subr.mxu0 0.0
    %v5721 = vand.u32 %v5040, 4294901760
    %v5722 = vsub.f32 %v5040, %v5721
    %v5723 = vand.u32 %v5722, 4294901760
    %5724 = vmatpush1.msra.mxu0 %v5723
    %5725 = vmatprep.subr.mxu0 0.0
    %v5726 = vand.u32 %v5041, 4294901760
    %v5727 = vsub.f32 %v5041, %v5726
    %v5728 = vand.u32 %v5727, 4294901760
    %5729 = vmatpush1.msra.mxu0 %v5728
    %5730 = vmatprep.subr.mxu0 0.0
    %v5731 = vand.u32 %v5042, 4294901760
    %v5732 = vsub.f32 %v5042, %v5731
    %v5733 = vand.u32 %v5732, 4294901760
    %5734 = vmatpush1.msra.mxu0 %v5733
    %5735 = vmatprep.subr.mxu0 0.0
    %v5736 = vand.u32 %v5043, 4294901760
    %v5737 = vsub.f32 %v5043, %v5736
    %v5738 = vand.u32 %v5737, 4294901760
    %5739 = vmatpush1.msra.mxu0 %v5738
    %5740 = vmatprep.subr.mxu0 0.0
    %v5741 = vand.u32 %v5044, 4294901760
    %v5742 = vsub.f32 %v5044, %v5741
    %v5743 = vand.u32 %v5742, 4294901760
    %5744 = vmatpush1.msra.mxu0 %v5743
    %5745 = vmatprep.subr.mxu0 0.0
    %v5746 = vand.u32 %v5045, 4294901760
    %v5747 = vsub.f32 %v5045, %v5746
    %v5748 = vand.u32 %v5747, 4294901760
    %5749 = vmatpush1.msra.mxu0 %v5748
    %5750 = vmatprep.subr.mxu0 0.0
    %v5751 = vand.u32 %v5046, 4294901760
    %v5752 = vsub.f32 %v5046, %v5751
    %v5753 = vand.u32 %v5752, 4294901760
    %5754 = vmatpush1.msra.mxu0 %v5753
    %5755 = vmatprep.subr.mxu0 0.0
    %v5756 = vand.u32 %v5047, 4294901760
    %v5757 = vsub.f32 %v5047, %v5756
    %v5758 = vand.u32 %v5757, 4294901760
    %5759 = vmatpush1.msra.mxu0 %v5758
    %5760 = vmatprep.subr.mxu0 0.0
    %v5761 = vand.u32 %v5048, 4294901760
    %v5762 = vsub.f32 %v5048, %v5761
    %v5763 = vand.u32 %v5762, 4294901760
    %5764 = vmatpush1.msra.mxu0 %v5763
    %5765 = vmatprep.subr.mxu0 0.0
    %v5766 = vand.u32 %v5049, 4294901760
    %v5767 = vsub.f32 %v5049, %v5766
    %v5768 = vand.u32 %v5767, 4294901760
    %5769 = vmatpush1.msra.mxu0 %v5768
    %5770 = vmatprep.subr.mxu0 0.0
    %v5771 = vand.u32 %v5050, 4294901760
    %v5772 = vsub.f32 %v5050, %v5771
    %v5773 = vand.u32 %v5772, 4294901760
    %5774 = vmatpush1.msra.mxu0 %v5773
    %5775 = vmatprep.subr.mxu0 0.0
    %v5776 = vand.u32 %v5051, 4294901760
    %v5777 = vsub.f32 %v5051, %v5776
    %v5778 = vand.u32 %v5777, 4294901760
    %5779 = vmatpush1.msra.mxu0 %v5778
    %5780 = vmatprep.subr.mxu0 0.0
    %v5781 = vand.u32 %v5052, 4294901760
    %v5782 = vsub.f32 %v5052, %v5781
    %v5783 = vand.u32 %v5782, 4294901760
    %5784 = vmatpush1.msra.mxu0 %v5783
    %5785 = vmatprep.subr.mxu0 0.0
    %v5786 = vand.u32 %v5053, 4294901760
    %v5787 = vsub.f32 %v5053, %v5786
    %v5788 = vand.u32 %v5787, 4294901760
    %5789 = vmatpush1.msra.mxu0 %v5788
    %5790 = vmatprep.subr.mxu0 0.0
    %v5791 = vand.u32 %v5054, 4294901760
    %v5792 = vsub.f32 %v5054, %v5791
    %v5793 = vand.u32 %v5792, 4294901760
    %5794 = vmatpush1.msra.mxu0 %v5793
    %5795 = vmatprep.subr.mxu0 0.0
    %v5796 = vand.u32 %v5055, 4294901760
    %v5797 = vsub.f32 %v5055, %v5796
    %v5798 = vand.u32 %v5797, 4294901760
    %5799 = vmatpush1.msra.mxu0 %v5798
    %5800 = vmatprep.subr.mxu0 0.0
    %v5801 = vand.u32 %v5056, 4294901760
    %v5802 = vsub.f32 %v5056, %v5801
    %v5803 = vand.u32 %v5802, 4294901760
    %5804 = vmatpush1.msra.mxu0 %v5803
    %5805 = vmatprep.subr.mxu0 0.0
    %v5806 = vand.u32 %v5057, 4294901760
    %v5807 = vsub.f32 %v5057, %v5806
    %v5808 = vand.u32 %v5807, 4294901760
    %5809 = vmatpush1.msra.mxu0 %v5808
    %5810 = vmatprep.subr.mxu0 0.0
    %v5811 = vand.u32 %v5058, 4294901760
    %v5812 = vsub.f32 %v5058, %v5811
    %v5813 = vand.u32 %v5812, 4294901760
    %5814 = vmatpush1.msra.mxu0 %v5813
    %5815 = vmatprep.subr.mxu0 0.0
    %v5816 = vand.u32 %v5059, 4294901760
    %v5817 = vsub.f32 %v5059, %v5816
    %v5818 = vand.u32 %v5817, 4294901760
    %5819 = vmatpush1.msra.mxu0 %v5818
    %5820 = vmatprep.subr.mxu0 0.0
    %v5821 = vand.u32 %v5060, 4294901760
    %v5822 = vsub.f32 %v5060, %v5821
    %v5823 = vand.u32 %v5822, 4294901760
    %5824 = vmatpush1.msra.mxu0 %v5823
    %v5825 = vand.u32 %v5072, 4294901760
    %5826 = vmatprep.mubr.f32.mxu0 %v5825
    %v5827 = vand.u32 %v5068, 4294901760
    %5828 = vmatmul.mubr.f32.gmra.mrb[0].mxu0 %v5827
    %v5829 = vpop.f32.mrb[0].mxu0
    %v5830 = vadd.f32 %v5662, %v5829
    %v5831 = vpop.f32.mrb[0].mxu0
    %5832 = vdwg.mxu0
    %5833 = vmatprep.subr.mxu0 0.0
    %v5834 = vand.u32 %v5029, 4294901760
    %5835 = vmatpush1.msra.mxu0 %v5834
    %5836 = vmatprep.subr.mxu0 0.0
    %v5837 = vand.u32 %v5030, 4294901760
    %5838 = vmatpush1.msra.mxu0 %v5837
    %5839 = vmatprep.subr.mxu0 0.0
    %v5840 = vand.u32 %v5031, 4294901760
    %5841 = vmatpush1.msra.mxu0 %v5840
    %5842 = vmatprep.subr.mxu0 0.0
    %v5843 = vand.u32 %v5032, 4294901760
    %5844 = vmatpush1.msra.mxu0 %v5843
    %5845 = vmatprep.subr.mxu0 0.0
    %v5846 = vand.u32 %v5033, 4294901760
    %5847 = vmatpush1.msra.mxu0 %v5846
    %5848 = vmatprep.subr.mxu0 0.0
    %v5849 = vand.u32 %v5034, 4294901760
    %5850 = vmatpush1.msra.mxu0 %v5849
    %5851 = vmatprep.subr.mxu0 0.0
    %v5852 = vand.u32 %v5035, 4294901760
    %5853 = vmatpush1.msra.mxu0 %v5852
    %5854 = vmatprep.subr.mxu0 0.0
    %v5855 = vand.u32 %v5036, 4294901760
    %5856 = vmatpush1.msra.mxu0 %v5855
    %5857 = vmatprep.subr.mxu0 0.0
    %v5858 = vand.u32 %v5037, 4294901760
    %5859 = vmatpush1.msra.mxu0 %v5858
    %5860 = vmatprep.subr.mxu0 0.0
    %v5861 = vand.u32 %v5038, 4294901760
    %5862 = vmatpush1.msra.mxu0 %v5861
    %5863 = vmatprep.subr.mxu0 0.0
    %v5864 = vand.u32 %v5039, 4294901760
    %5865 = vmatpush1.msra.mxu0 %v5864
    %5866 = vmatprep.subr.mxu0 0.0
    %v5867 = vand.u32 %v5040, 4294901760
    %5868 = vmatpush1.msra.mxu0 %v5867
    %5869 = vmatprep.subr.mxu0 0.0
    %v5870 = vand.u32 %v5041, 4294901760
    %5871 = vmatpush1.msra.mxu0 %v5870
    %5872 = vmatprep.subr.mxu0 0.0
    %v5873 = vand.u32 %v5042, 4294901760
    %5874 = vmatpush1.msra.mxu0 %v5873
    %5875 = vmatprep.subr.mxu0 0.0
    %v5876 = vand.u32 %v5043, 4294901760
    %5877 = vmatpush1.msra.mxu0 %v5876
    %5878 = vmatprep.subr.mxu0 0.0
    %v5879 = vand.u32 %v5044, 4294901760
    %5880 = vmatpush1.msra.mxu0 %v5879
    %5881 = vmatprep.subr.mxu0 0.0
    %v5882 = vand.u32 %v5045, 4294901760
    %5883 = vmatpush1.msra.mxu0 %v5882
    %5884 = vmatprep.subr.mxu0 0.0
    %v5885 = vand.u32 %v5046, 4294901760
    %5886 = vmatpush1.msra.mxu0 %v5885
    %5887 = vmatprep.subr.mxu0 0.0
    %v5888 = vand.u32 %v5047, 4294901760
    %5889 = vmatpush1.msra.mxu0 %v5888
    %5890 = vmatprep.subr.mxu0 0.0
    %v5891 = vand.u32 %v5048, 4294901760
    %5892 = vmatpush1.msra.mxu0 %v5891
    %5893 = vmatprep.subr.mxu0 0.0
    %v5894 = vand.u32 %v5049, 4294901760
    %5895 = vmatpush1.msra.mxu0 %v5894
    %5896 = vmatprep.subr.mxu0 0.0
    %v5897 = vand.u32 %v5050, 4294901760
    %5898 = vmatpush1.msra.mxu0 %v5897
    %5899 = vmatprep.subr.mxu0 0.0
    %v5900 = vand.u32 %v5051, 4294901760
    %5901 = vmatpush1.msra.mxu0 %v5900
    %5902 = vmatprep.subr.mxu0 0.0
    %v5903 = vand.u32 %v5052, 4294901760
    %5904 = vmatpush1.msra.mxu0 %v5903
    %5905 = vmatprep.subr.mxu0 0.0
    %v5906 = vand.u32 %v5053, 4294901760
    %5907 = vmatpush1.msra.mxu0 %v5906
    %5908 = vmatprep.subr.mxu0 0.0
    %v5909 = vand.u32 %v5054, 4294901760
    %5910 = vmatpush1.msra.mxu0 %v5909
    %5911 = vmatprep.subr.mxu0 0.0
    %v5912 = vand.u32 %v5055, 4294901760
    %5913 = vmatpush1.msra.mxu0 %v5912
    %5914 = vmatprep.subr.mxu0 0.0
    %v5915 = vand.u32 %v5056, 4294901760
    %5916 = vmatpush1.msra.mxu0 %v5915
    %5917 = vmatprep.subr.mxu0 0.0
    %v5918 = vand.u32 %v5057, 4294901760
    %5919 = vmatpush1.msra.mxu0 %v5918
    %5920 = vmatprep.subr.mxu0 0.0
    %v5921 = vand.u32 %v5058, 4294901760
    %5922 = vmatpush1.msra.mxu0 %v5921
    %5923 = vmatprep.subr.mxu0 0.0
    %v5924 = vand.u32 %v5059, 4294901760
    %5925 = vmatpush1.msra.mxu0 %v5924
    %5926 = vmatprep.subr.mxu0 0.0
    %v5927 = vand.u32 %v5060, 4294901760
    %5928 = vmatpush1.msra.mxu0 %v5927
    %v5929 = vand.u32 %v5072, 4294901760
    %5930 = vmatprep.mubr.f32.mxu0 %v5929
    %v5931 = vand.u32 %v5068, 4294901760
    %5932 = vmatmul.mubr.f32.gmra.mrb[0].mxu0 %v5931
    %v5933 = vpop.f32.mrb[0].mxu0
    %v5934 = vadd.f32 %v5830, %v5933
    %v5935 = vpop.f32.mrb[0].mxu0
    %5936 = vdwg.mxu0
    %vm5937 = vcmask 73728
    %5938 = vst.msk [vmem:[#allocation3] sm:$0x1] %vm5937, %v5934
    // Predicated region
    $region30: #{tpu_custom_call.1} parent=1 // pred_check
      _
    $region31: #{tpu_custom_call.1} parent=1 // pred_check_branch
      %5940 = sbr.rel (0) target = $region33
    $region32: #{tpu_custom_call.1} parent=1 // pred_region
      %s5942 = ssub.s32 16, 16
      %5943 = vsyncadd [#allocation4], %s5942
      %s5945 = sshll.u32 [#allocation3], 4
      %s5946 = int_to_ptr.vmem [resolvable:$true] %s5945
      %5948 = dma.vmem_to_hbm [thread:$0]  %s5946, 16, %s7, [#allocation4]
    $region33: #{tpu_custom_call.1} parent=1 // pred_fallthru
      _
    // Predicated region
    $region34: #{tpu_custom_call.1} parent=1 // pred_check
      _
    $region35: #{tpu_custom_call.1} parent=1 // pred_check_branch
      %5950 = sbr.rel (0) target = $region37
    $region36: #{tpu_custom_call.1} parent=1 // pred_region
      %5951 = dma.done [#allocation4], 16
    $region37: #{tpu_custom_call.1} parent=1 // pred_fallthru
      _
    %5952 = vsyncpa [#allocation4], 1

</llo_original>
